<compile_context>
chip_gen: v7x
topology: tpu7x:2x2x1
jax: 0.10.0
libtpu: 0.0.40
codegen_flags: <defaults>
</compile_context>

<pallas_src>
import functools

import jax
import jax.numpy as jnp
from jax.experimental import pallas as pl
from jax.experimental.pallas import tpu as pltpu


_VMEM_LIMIT = 32 * 1024 * 1024  # raise v5e's 16 MiB scoped default; safe on v6e/v7x (64 MiB phys)

# padded-input row offsets (dy) per output row parity for the k=5, s=2, p=2,
# output_padding=1 transposed convolution (even rows use 3 taps, odd rows 2).
_ROW_TAPS = ((0, 1, 2), (1, 2))


def _pick_tile_rows(n_rows, row_len, batch, cap=1024, min_rows=256):
    """Largest divisor t of n_rows with t*row_len matmul rows <= cap.

    If batch == 1, prefer >= 2 row tiles (so a v7x can shard the grid across
    its two TensorCores) as long as each tile keeps >= min_rows matmul rows."""
    divisors = [t for t in range(1, n_rows + 1) if n_rows % t == 0]
    fitting = [t for t in divisors if t * row_len <= cap]
    if not fitting:
        # TODO(synk): very wide latents (row_len > cap) fall back to t=1 and the
        # per-tile matmul M is then bounded only by row_len; clamp if such
        # shapes ever occur (VMEM risk on v7x).
        return 1
    best = max(fitting)
    if batch == 1 and best == n_rows and n_rows > 1:
        smaller = [t for t in fitting if t < n_rows and t * row_len >= min_rows]
        if smaller:
            best = max(smaller)
    return best


def _deconv5x5_s2_kernel(x_ref, we_ref, wo_ref, b_ref, o_ref, *, th, wc, cin, cout2):
    """One (batch, row-tile) step of the stride-2 5x5 deconv (sub-pixel form).

    x_ref  : (1, H+2, W+2, Cin) bf16   1-padded input, VMEM-resident per batch
    we_ref : (9*Cin, 2*Cout) bf16      packed weights, even output rows
    wo_ref : (6*Cin, 2*Cout) bf16      packed weights, odd output rows
    b_ref  : (1, 2*Cout) f32           bias tiled over both column parities
    o_ref  : (1, th, 2, W, 2*Cout)     row-parity-factored output tile
    """
    h = pl.program_id(1)
    r0 = h * th
    rows = th * wc
    for a, (w_ref, dys) in enumerate(((we_ref, _ROW_TAPS[0]), (wo_ref, _ROW_TAPS[1]))):
        # im2col LHS: every (dy, dx) tap slice concatenated on the channel axis.
        pieces = [
            x_ref[0, pl.ds(r0 + dy, th), pl.ds(dx, wc), :].reshape(rows, cin)
            for dy in dys for dx in range(3)
        ]
        lhs = jnp.concatenate(pieces, axis=-1)                        # (rows, T*Cin) bf16
        acc = jnp.dot(lhs, w_ref[...], preferred_element_type=jnp.float32)
        y = jnp.maximum(acc + b_ref[...], 0.0)                        # f32 epilogue (v5e-safe)
        o_ref[0, :, a] = y.reshape(th, wc, cout2).astype(o_ref.dtype)


def _deconv5x5_s2(x_nhwc, w_even, w_odd, bias2):
    """ConvTranspose2d(k=5, s=2, p=2, output_padding=1) + ReLU, NHWC bf16."""
    B, H, W, Cin = x_nhwc.shape
    Cout2 = w_even.shape[-1]                                          # 2 * Cout
    xp = jnp.pad(x_nhwc, ((0, 0), (1, 1), (1, 1), (0, 0)))
    th = _pick_tile_rows(H, W, B)
    kernel = functools.partial(_deconv5x5_s2_kernel, th=th, wc=W, cin=Cin, cout2=Cout2)
    out = pl.pallas_call(
        kernel,
        out_shape=jax.ShapeDtypeStruct((B, H, 2, W, Cout2), jnp.bfloat16),
        grid=(B, H // th),
        in_specs=[
            pl.BlockSpec((1, H + 2, W + 2, Cin), lambda b, h: (b, 0, 0, 0)),
            pl.BlockSpec(w_even.shape, lambda b, h: (0, 0)),
            pl.BlockSpec(w_odd.shape, lambda b, h: (0, 0)),
            pl.BlockSpec((1, Cout2), lambda b, h: (0, 0)),
        ],
        out_specs=pl.BlockSpec((1, th, 2, W, Cout2),
                               lambda b, h: (b, h, 0, 0, 0)),
        compiler_params=pltpu.CompilerParams(
            dimension_semantics=("parallel", "parallel"),
            vmem_limit_bytes=_VMEM_LIMIT),
    )(xp, w_even, w_odd, bias2)
    # (B, H, 2, W, 2*Cout) -> (B, 2H, 2W, Cout): pure row-major collapse of
    # adjacent dims (row = 2m+a, col = 2n+j) -- no transpose HBM pass.
    return out.reshape(B, 2 * H, 2 * W, Cout2 // 2)


def _conv3x3_kernel(x_ref, w_ref, b_ref, o_ref, *, th, wc, cin, cout):
    """One (batch, row-tile) step of the stride-1 3x3 deconv (= flipped conv).

    x_ref : (1, Ho+2, Wo+2, Cin) bf16  1-padded input, VMEM-resident per batch
    w_ref : (9*Cin, Cout) bf16         flipped taps, (dy, dx) row-major
    b_ref : (1, Cout) f32
    o_ref : (1, th, Wo, Cout)
    """
    h = pl.program_id(1)
    r0 = h * th
    rows = th * wc
    pieces = [
        x_ref[0, pl.ds(r0 + dy, th), pl.ds(dx, wc), :].reshape(rows, cin)
        for dy in range(3) for dx in range(3)
    ]
    lhs = jnp.concatenate(pieces, axis=-1)                            # (rows, 9*Cin) bf16
    acc = jnp.dot(lhs, w_ref[...], preferred_element_type=jnp.float32)
    y = acc + b_ref[...]                                              # f32 epilogue (v5e-safe)
    o_ref[0] = y.reshape(th, wc, cout).astype(o_ref.dtype)


def _deconv3x3_s1(x_nhwc, w_taps, bias, out_dtype):
    """ConvTranspose2d(k=3, s=1, p=1), NHWC."""
    B, H, W, Cin = x_nhwc.shape
    Cout = w_taps.shape[-1]
    xp = jnp.pad(x_nhwc, ((0, 0), (1, 1), (1, 1), (0, 0)))
    th = _pick_tile_rows(H, W, B)
    kernel = functools.partial(_conv3x3_kernel, th=th, wc=W, cin=Cin, cout=Cout)
    return pl.pallas_call(
        kernel,
        out_shape=jax.ShapeDtypeStruct((B, H, W, Cout), out_dtype),
        grid=(B, H // th),
        in_specs=[
            pl.BlockSpec((1, H + 2, W + 2, Cin), lambda b, h: (b, 0, 0, 0)),
            pl.BlockSpec(w_taps.shape, lambda b, h: (0, 0)),
            pl.BlockSpec((1, Cout), lambda b, h: (0, 0)),
        ],
        out_specs=pl.BlockSpec((1, th, W, Cout), lambda b, h: (b, h, 0, 0)),
        compiler_params=pltpu.CompilerParams(
            dimension_semantics=("parallel", "parallel"),
            vmem_limit_bytes=_VMEM_LIMIT),
    )(xp, w_taps, bias)


class HyperSynthesisTransformPallas:
    """net = SignalConv2D(M, M, k=5, s=2, 'same', transpose=True, ReLU)
             SignalConv2D(M, N, k=3, s=1, 'same', transpose=True)"""

    def __init__(self, N: int = 192, M: int = 192, key=jax.random.PRNGKey(0)):
        k1, k2, k3, k4 = jax.random.split(key, 4)
        # PyTorch ConvTranspose2d weight layout: (in_channels, out_channels, kH, kW)
        s1 = 1.0 / (M * 5 * 5) ** 0.5
        self.w1 = jax.random.uniform(k1, (M, M, 5, 5), jnp.float32, -s1, s1)
        self.b1 = jax.random.uniform(k2, (M,), jnp.float32, -s1, s1)
        s2 = 1.0 / (M * 3 * 3) ** 0.5
        self.w2 = jax.random.uniform(k3, (M, N, 3, 3), jnp.float32, -s2, s2)
        self.b2 = jax.random.uniform(k4, (N,), jnp.float32, -s2, s2)

        # ---- one-time weight prep (bf16, im2col-major, MXU-friendly) ----
        # layer 1: padded-input offsets (dy/dx) -> source kernel index per parity.
        kh_even = {0: 4, 1: 2, 2: 0}
        kh_odd = {1: 3, 2: 1}
        kw_even = {0: 4, 1: 2, 2: 0}
        kw_odd = {1: 3, 2: 1}   # dx=0 contributes nothing to odd output columns

        def packed_phase_weight(kh_map):
            blocks = []
            for dy in sorted(kh_map):
                for dx in range(3):
                    ev = self.w1[:, :, kh_map[dy], kw_even[dx]]            # (Cin, Cout)
                    od = (self.w1[:, :, kh_map[dy], kw_odd[dx]]
                          if dx in kw_odd else jnp.zeros_like(ev))
                    blocks.append(jnp.concatenate([ev, od], axis=1))        # (Cin, 2*Cout)
            return jnp.concatenate(blocks, axis=0).astype(jnp.bfloat16)     # (T*Cin, 2*Cout)

        self._w1_even = packed_phase_weight(kh_even)                        # (9*M, 2*M)
        self._w1_odd = packed_phase_weight(kh_odd)                          # (6*M, 2*M)
        self._b1 = jnp.concatenate([self.b1, self.b1]).reshape(1, 2 * M)    # f32

        # layer 2: flipped 3x3 taps stacked along Cin, (9*M, N), (dy, dx) row-major.
        self._w2 = jnp.concatenate(
            [self.w2[:, :, 2 - dy, 2 - dx] for dy in range(3) for dx in range(3)],
            axis=0).astype(jnp.bfloat16)
        self._b2 = self.b2.reshape(1, N)                                    # f32

    def __call__(self, z_hat_nchw):
        # NCHW (PyTorch) -> NHWC (channels on the 128-lane axis), bf16 acts.
        x = jnp.transpose(z_hat_nchw, (0, 2, 3, 1)).astype(jnp.bfloat16)
        x = _deconv5x5_s2(x, self._w1_even, self._w1_odd, self._b1)
        x = _deconv3x3_s1(x, self._w2, self._b2, out_dtype=jnp.bfloat16)
        # back to NCHW; upcast fused into the transpose.
        return jnp.transpose(x, (0, 3, 1, 2)).astype(jnp.float32)


if __name__ == "__main__":
    key = jax.random.PRNGKey(0)
    kx, kp = jax.random.split(key)

    # Small stand-ins for the real M = N = 192 hyperprior sizes.
    B, M, N, H, W = 2, 16, 8, 8, 8
    z_hat = jax.random.normal(kx, (B, M, H, W), jnp.float32)   # NCHW like PyTorch

    model = HyperSynthesisTransformPallas(N=N, M=M, key=kp)
    fwd = jax.jit(model.__call__)
    y = fwd(z_hat)
    jax.block_until_ready(y)

    assert y.shape == (B, N, 2 * H, 2 * W), y.shape
    assert y.dtype == jnp.float32

    # Reference: XLA dilated conv with the SAME bf16-rounded weights/activations
    # (validates the packed sub-pixel tap tables and flipped 3x3 weights).
    def ref_deconv(x_nhwc, w_t, b, stride, relu):
        k = w_t.shape[-1]
        pad = k // 2
        lo, hi = k - 1 - pad, k - 1 - pad + (stride - 1)
        wf = jnp.transpose(w_t[:, :, ::-1, ::-1], (2, 3, 0, 1))  # (K,K,Cin,Cout)
        wf = wf.astype(jnp.bfloat16).astype(jnp.float32)
        out = jax.lax.conv_general_dilated(
            x_nhwc, wf, window_strides=(1, 1),
            padding=[(lo, hi), (lo, hi)], lhs_dilation=(stride, stride),
            dimension_numbers=("NHWC", "HWIO", "NHWC"),
            precision=jax.lax.Precision.HIGHEST)
        out = out + b
        return jnp.maximum(out, 0.0) if relu else out

    xr = jnp.transpose(z_hat, (0, 2, 3, 1)).astype(jnp.bfloat16).astype(jnp.float32)
    r = ref_deconv(xr, model.w1, model.b1, 2, True)
    r = r.astype(jnp.bfloat16).astype(jnp.float32)
    r = ref_deconv(r, model.w2, model.b2, 1, False)
    r = jnp.transpose(r, (0, 3, 1, 2))
    err = float(jnp.max(jnp.abs(y - r)))
    assert err < 2e-2, err

    print("KERNEL_OK")
</pallas_src>

<mosaic_0001>
module attributes {stable_mosaic.version = 11 : i64} {
  func.func @_deconv5x5_s2_kernel(%arg0: i32, %arg1: i32, %arg2: memref<1x10x10x16xbf16, #tpu.memory_space<vmem>>, %arg3: memref<144x32xbf16, #tpu.memory_space<vmem>>, %arg4: memref<96x32xbf16, #tpu.memory_space<vmem>>, %arg5: memref<1x32xf32, #tpu.memory_space<vmem>>, %arg6: memref<1x8x2x8x32xbf16, #tpu.memory_space<vmem>>) attributes {dimension_semantics = [#tpu.dimension_semantics<parallel>, #tpu.dimension_semantics<parallel>], iteration_bounds = array<i64: 2, 1>, scalar_prefetch = 0 : i64, scratch_operands = 0 : i64, tpu.core_type = #tpu.core_type<tc>, window_params = [{transform_indices = @transform_0, window_bounds = array<i64: 1, 10, 10, 16>}, {pipeline_mode = #tpu.pipeline_mode<synchronous>, transform_indices = @transform_1, window_bounds = array<i64: 144, 32>}, {pipeline_mode = #tpu.pipeline_mode<synchronous>, transform_indices = @transform_2, window_bounds = array<i64: 96, 32>}, {pipeline_mode = #tpu.pipeline_mode<synchronous>, transform_indices = @transform_3, window_bounds = array<i64: 1, 32>}, {transform_indices = @transform_4, window_bounds = array<i64: 1, 8, 2, 8, 32>}]} {
    %c8_i32 = arith.constant 8 : i32
    %0 = arith.muli %arg1, %c8_i32 : i32
    %c0_i32 = arith.constant 0 : i32
    %1 = arith.addi %0, %c0_i32 : i32
    %c0 = arith.constant 0 : index
    %2 = arith.index_cast %1 : i32 to index
    %c0_0 = arith.constant 0 : index
    %c0_1 = arith.constant 0 : index
    %3 = vector.load %arg2[%c0, %2, %c0_0, %c0_1] : memref<1x10x10x16xbf16, #tpu.memory_space<vmem>>, vector<1x8x8x16xbf16>
    %4 = vector.shape_cast %3 : vector<1x8x8x16xbf16> to vector<8x8x16xbf16>
    %5 = vector.shape_cast %4 : vector<8x8x16xbf16> to vector<64x16xbf16>
    %c0_i32_2 = arith.constant 0 : i32
    %6 = arith.addi %0, %c0_i32_2 : i32
    %c0_3 = arith.constant 0 : index
    %7 = arith.index_cast %6 : i32 to index
    %c1 = arith.constant 1 : index
    %c0_4 = arith.constant 0 : index
    %8 = vector.load %arg2[%c0_3, %7, %c1, %c0_4] : memref<1x10x10x16xbf16, #tpu.memory_space<vmem>>, vector<1x8x8x16xbf16>
    %9 = vector.shape_cast %8 : vector<1x8x8x16xbf16> to vector<8x8x16xbf16>
    %10 = vector.shape_cast %9 : vector<8x8x16xbf16> to vector<64x16xbf16>
    %c0_i32_5 = arith.constant 0 : i32
    %11 = arith.addi %0, %c0_i32_5 : i32
    %c0_6 = arith.constant 0 : index
    %12 = arith.index_cast %11 : i32 to index
    %c2 = arith.constant 2 : index
    %c0_7 = arith.constant 0 : index
    %13 = vector.load %arg2[%c0_6, %12, %c2, %c0_7] : memref<1x10x10x16xbf16, #tpu.memory_space<vmem>>, vector<1x8x8x16xbf16>
    %14 = vector.shape_cast %13 : vector<1x8x8x16xbf16> to vector<8x8x16xbf16>
    %15 = vector.shape_cast %14 : vector<8x8x16xbf16> to vector<64x16xbf16>
    %c1_i32 = arith.constant 1 : i32
    %16 = arith.addi %0, %c1_i32 : i32
    %c0_8 = arith.constant 0 : index
    %17 = arith.index_cast %16 : i32 to index
    %c0_9 = arith.constant 0 : index
    %c0_10 = arith.constant 0 : index
    %18 = vector.load %arg2[%c0_8, %17, %c0_9, %c0_10] : memref<1x10x10x16xbf16, #tpu.memory_space<vmem>>, vector<1x8x8x16xbf16>
    %19 = vector.shape_cast %18 : vector<1x8x8x16xbf16> to vector<8x8x16xbf16>
    %20 = vector.shape_cast %19 : vector<8x8x16xbf16> to vector<64x16xbf16>
    %c1_i32_11 = arith.constant 1 : i32
    %21 = arith.addi %0, %c1_i32_11 : i32
    %c0_12 = arith.constant 0 : index
    %22 = arith.index_cast %21 : i32 to index
    %c1_13 = arith.constant 1 : index
    %c0_14 = arith.constant 0 : index
    %23 = vector.load %arg2[%c0_12, %22, %c1_13, %c0_14] : memref<1x10x10x16xbf16, #tpu.memory_space<vmem>>, vector<1x8x8x16xbf16>
    %24 = vector.shape_cast %23 : vector<1x8x8x16xbf16> to vector<8x8x16xbf16>
    %25 = vector.shape_cast %24 : vector<8x8x16xbf16> to vector<64x16xbf16>
    %c1_i32_15 = arith.constant 1 : i32
    %26 = arith.addi %0, %c1_i32_15 : i32
    %c0_16 = arith.constant 0 : index
    %27 = arith.index_cast %26 : i32 to index
    %c2_17 = arith.constant 2 : index
    %c0_18 = arith.constant 0 : index
    %28 = vector.load %arg2[%c0_16, %27, %c2_17, %c0_18] : memref<1x10x10x16xbf16, #tpu.memory_space<vmem>>, vector<1x8x8x16xbf16>
    %29 = vector.shape_cast %28 : vector<1x8x8x16xbf16> to vector<8x8x16xbf16>
    %30 = vector.shape_cast %29 : vector<8x8x16xbf16> to vector<64x16xbf16>
    %c2_i32 = arith.constant 2 : i32
    %31 = arith.addi %0, %c2_i32 : i32
    %c0_19 = arith.constant 0 : index
    %32 = arith.index_cast %31 : i32 to index
    %c0_20 = arith.constant 0 : index
    %c0_21 = arith.constant 0 : index
    %33 = vector.load %arg2[%c0_19, %32, %c0_20, %c0_21] : memref<1x10x10x16xbf16, #tpu.memory_space<vmem>>, vector<1x8x8x16xbf16>
    %34 = vector.shape_cast %33 : vector<1x8x8x16xbf16> to vector<8x8x16xbf16>
    %35 = vector.shape_cast %34 : vector<8x8x16xbf16> to vector<64x16xbf16>
    %c2_i32_22 = arith.constant 2 : i32
    %36 = arith.addi %0, %c2_i32_22 : i32
    %c0_23 = arith.constant 0 : index
    %37 = arith.index_cast %36 : i32 to index
    %c1_24 = arith.constant 1 : index
    %c0_25 = arith.constant 0 : index
    %38 = vector.load %arg2[%c0_23, %37, %c1_24, %c0_25] : memref<1x10x10x16xbf16, #tpu.memory_space<vmem>>, vector<1x8x8x16xbf16>
    %39 = vector.shape_cast %38 : vector<1x8x8x16xbf16> to vector<8x8x16xbf16>
    %40 = vector.shape_cast %39 : vector<8x8x16xbf16> to vector<64x16xbf16>
    %c2_i32_26 = arith.constant 2 : i32
    %41 = arith.addi %0, %c2_i32_26 : i32
    %c0_27 = arith.constant 0 : index
    %42 = arith.index_cast %41 : i32 to index
    %c2_28 = arith.constant 2 : index
    %c0_29 = arith.constant 0 : index
    %43 = vector.load %arg2[%c0_27, %42, %c2_28, %c0_29] : memref<1x10x10x16xbf16, #tpu.memory_space<vmem>>, vector<1x8x8x16xbf16>
    %44 = vector.shape_cast %43 : vector<1x8x8x16xbf16> to vector<8x8x16xbf16>
    %45 = vector.shape_cast %44 : vector<8x8x16xbf16> to vector<64x16xbf16>
    %46 = tpu.concatenate %5, %10, %15, %20, %25, %30, %35, %40, %45 in 1 : vector<64x16xbf16>, vector<64x16xbf16>, vector<64x16xbf16>, vector<64x16xbf16>, vector<64x16xbf16>, vector<64x16xbf16>, vector<64x16xbf16>, vector<64x16xbf16>, vector<64x16xbf16> -> vector<64x144xbf16>
    %c0_30 = arith.constant 0 : index
    %c0_31 = arith.constant 0 : index
    %47 = vector.load %arg3[%c0_30, %c0_31] : memref<144x32xbf16, #tpu.memory_space<vmem>>, vector<144x32xbf16>
    %cst = arith.constant dense<0.000000e+00> : vector<64x32xf32>
    %48 = tpu.matmul %46, %47, %cst {dimension_numbers = #tpu.dot_dimension_numbers<[1], [0], [0], [1], [0, 0, 1, 1], [], []>} : vector<64x144xbf16>, vector<144x32xbf16>, vector<64x32xf32> -> vector<64x32xf32>
    %c0_32 = arith.constant 0 : index
    %c0_33 = arith.constant 0 : index
    %49 = vector.load %arg5[%c0_32, %c0_33] : memref<1x32xf32, #tpu.memory_space<vmem>>, vector<1x32xf32>
    %50 = vector.broadcast %49 : vector<1x32xf32> to vector<64x32xf32>
    %51 = arith.addf %48, %50 : vector<64x32xf32>
    %cst_34 = arith.constant 0.000000e+00 : f32
    %52 = vector.broadcast %cst_34 : f32 to vector<64x32xf32>
    %53 = arith.maximumf %51, %52 : vector<64x32xf32>
    %54 = vector.shape_cast %53 : vector<64x32xf32> to vector<8x8x32xf32>
    %55 = arith.truncf %54 : vector<8x8x32xf32> to vector<8x8x32xbf16>
    %c0_35 = arith.constant 0 : index
    %c0_36 = arith.constant 0 : index
    %c0_37 = arith.constant 0 : index
    %c0_38 = arith.constant 0 : index
    %c0_39 = arith.constant 0 : index
    %56 = vector.load %arg6[%c0_35, %c0_36, %c0_37, %c0_38, %c0_39] : memref<1x8x2x8x32xbf16, #tpu.memory_space<vmem>>, vector<1x8x1x8x32xbf16>
    %57 = vector.shape_cast %56 : vector<1x8x1x8x32xbf16> to vector<8x8x32xbf16>
    %58 = vector.shape_cast %55 : vector<8x8x32xbf16> to vector<1x8x1x8x32xbf16>
    tpu.vector_store %arg6[%c0_35, %c0_36, %c0_37, %c0_38, %c0_39], %58 {strides = array<i32>} : memref<1x8x2x8x32xbf16, #tpu.memory_space<vmem>>, vector<1x8x1x8x32xbf16>,
    %c1_i32_40 = arith.constant 1 : i32
    %59 = arith.addi %0, %c1_i32_40 : i32
    %c0_41 = arith.constant 0 : index
    %60 = arith.index_cast %59 : i32 to index
    %c0_42 = arith.constant 0 : index
    %c0_43 = arith.constant 0 : index
    %61 = vector.load %arg2[%c0_41, %60, %c0_42, %c0_43] : memref<1x10x10x16xbf16, #tpu.memory_space<vmem>>, vector<1x8x8x16xbf16>
    %62 = vector.shape_cast %61 : vector<1x8x8x16xbf16> to vector<8x8x16xbf16>
    %63 = vector.shape_cast %62 : vector<8x8x16xbf16> to vector<64x16xbf16>
    %c1_i32_44 = arith.constant 1 : i32
    %64 = arith.addi %0, %c1_i32_44 : i32
    %c0_45 = arith.constant 0 : index
    %65 = arith.index_cast %64 : i32 to index
    %c1_46 = arith.constant 1 : index
    %c0_47 = arith.constant 0 : index
    %66 = vector.load %arg2[%c0_45, %65, %c1_46, %c0_47] : memref<1x10x10x16xbf16, #tpu.memory_space<vmem>>, vector<1x8x8x16xbf16>
    %67 = vector.shape_cast %66 : vector<1x8x8x16xbf16> to vector<8x8x16xbf16>
    %68 = vector.shape_cast %67 : vector<8x8x16xbf16> to vector<64x16xbf16>
    %c1_i32_48 = arith.constant 1 : i32
    %69 = arith.addi %0, %c1_i32_48 : i32
    %c0_49 = arith.constant 0 : index
    %70 = arith.index_cast %69 : i32 to index
    %c2_50 = arith.constant 2 : index
    %c0_51 = arith.constant 0 : index
    %71 = vector.load %arg2[%c0_49, %70, %c2_50, %c0_51] : memref<1x10x10x16xbf16, #tpu.memory_space<vmem>>, vector<1x8x8x16xbf16>
    %72 = vector.shape_cast %71 : vector<1x8x8x16xbf16> to vector<8x8x16xbf16>
    %73 = vector.shape_cast %72 : vector<8x8x16xbf16> to vector<64x16xbf16>
    %c2_i32_52 = arith.constant 2 : i32
    %74 = arith.addi %0, %c2_i32_52 : i32
    %c0_53 = arith.constant 0 : index
    %75 = arith.index_cast %74 : i32 to index
    %c0_54 = arith.constant 0 : index
    %c0_55 = arith.constant 0 : index
    %76 = vector.load %arg2[%c0_53, %75, %c0_54, %c0_55] : memref<1x10x10x16xbf16, #tpu.memory_space<vmem>>, vector<1x8x8x16xbf16>
    %77 = vector.shape_cast %76 : vector<1x8x8x16xbf16> to vector<8x8x16xbf16>
    %78 = vector.shape_cast %77 : vector<8x8x16xbf16> to vector<64x16xbf16>
    %c2_i32_56 = arith.constant 2 : i32
    %79 = arith.addi %0, %c2_i32_56 : i32
    %c0_57 = arith.constant 0 : index
    %80 = arith.index_cast %79 : i32 to index
    %c1_58 = arith.constant 1 : index
    %c0_59 = arith.constant 0 : index
    %81 = vector.load %arg2[%c0_57, %80, %c1_58, %c0_59] : memref<1x10x10x16xbf16, #tpu.memory_space<vmem>>, vector<1x8x8x16xbf16>
    %82 = vector.shape_cast %81 : vector<1x8x8x16xbf16> to vector<8x8x16xbf16>
    %83 = vector.shape_cast %82 : vector<8x8x16xbf16> to vector<64x16xbf16>
    %c2_i32_60 = arith.constant 2 : i32
    %84 = arith.addi %0, %c2_i32_60 : i32
    %c0_61 = arith.constant 0 : index
    %85 = arith.index_cast %84 : i32 to index
    %c2_62 = arith.constant 2 : index
    %c0_63 = arith.constant 0 : index
    %86 = vector.load %arg2[%c0_61, %85, %c2_62, %c0_63] : memref<1x10x10x16xbf16, #tpu.memory_space<vmem>>, vector<1x8x8x16xbf16>
    %87 = vector.shape_cast %86 : vector<1x8x8x16xbf16> to vector<8x8x16xbf16>
    %88 = vector.shape_cast %87 : vector<8x8x16xbf16> to vector<64x16xbf16>
    %89 = tpu.concatenate %63, %68, %73, %78, %83, %88 in 1 : vector<64x16xbf16>, vector<64x16xbf16>, vector<64x16xbf16>, vector<64x16xbf16>, vector<64x16xbf16>, vector<64x16xbf16> -> vector<64x96xbf16>
    %c0_64 = arith.constant 0 : index
    %c0_65 = arith.constant 0 : index
    %90 = vector.load %arg4[%c0_64, %c0_65] : memref<96x32xbf16, #tpu.memory_space<vmem>>, vector<96x32xbf16>
    %cst_66 = arith.constant dense<0.000000e+00> : vector<64x32xf32>
    %91 = tpu.matmul %89, %90, %cst_66 {dimension_numbers = #tpu.dot_dimension_numbers<[1], [0], [0], [1], [0, 0, 1, 1], [], []>} : vector<64x96xbf16>, vector<96x32xbf16>, vector<64x32xf32> -> vector<64x32xf32>
    %c0_67 = arith.constant 0 : index
    %c0_68 = arith.constant 0 : index
    %92 = vector.load %arg5[%c0_67, %c0_68] : memref<1x32xf32, #tpu.memory_space<vmem>>, vector<1x32xf32>
    %93 = vector.broadcast %92 : vector<1x32xf32> to vector<64x32xf32>
    %94 = arith.addf %91, %93 : vector<64x32xf32>
    %cst_69 = arith.constant 0.000000e+00 : f32
    %95 = vector.broadcast %cst_69 : f32 to vector<64x32xf32>
    %96 = arith.maximumf %94, %95 : vector<64x32xf32>
    %97 = vector.shape_cast %96 : vector<64x32xf32> to vector<8x8x32xf32>
    %98 = arith.truncf %97 : vector<8x8x32xf32> to vector<8x8x32xbf16>
    %c0_70 = arith.constant 0 : index
    %c0_71 = arith.constant 0 : index
    %c1_72 = arith.constant 1 : index
    %c0_73 = arith.constant 0 : index
    %c0_74 = arith.constant 0 : index
    %99 = vector.load %arg6[%c0_70, %c0_71, %c1_72, %c0_73, %c0_74] : memref<1x8x2x8x32xbf16, #tpu.memory_space<vmem>>, vector<1x8x1x8x32xbf16>
    %100 = vector.shape_cast %99 : vector<1x8x1x8x32xbf16> to vector<8x8x32xbf16>
    %101 = vector.shape_cast %98 : vector<8x8x32xbf16> to vector<1x8x1x8x32xbf16>
    tpu.vector_store %arg6[%c0_70, %c0_71, %c1_72, %c0_73, %c0_74], %101 {strides = array<i32>} : memref<1x8x2x8x32xbf16, #tpu.memory_space<vmem>>, vector<1x8x1x8x32xbf16>,
    return
  }
  func.func @transform_0(%arg0: i32, %arg1: i32) -> (i32, i32, i32, i32) {
    %c0_i32 = arith.constant 0 : i32
    %c0_i32_0 = arith.constant 0 : i32
    %c0_i32_1 = arith.constant 0 : i32
    %c0_i32_2 = arith.constant 0 : i32
    return %arg0, %c0_i32, %c0_i32_0, %c0_i32_1 : i32, i32, i32, i32
  }
  func.func @transform_1(%arg0: i32, %arg1: i32) -> (i32, i32) {
    %c0_i32 = arith.constant 0 : i32
    %c0_i32_0 = arith.constant 0 : i32
    %c0_i32_1 = arith.constant 0 : i32
    return %c0_i32, %c0_i32_0 : i32, i32
  }
  func.func @transform_2(%arg0: i32, %arg1: i32) -> (i32, i32) {
    %c0_i32 = arith.constant 0 : i32
    %c0_i32_0 = arith.constant 0 : i32
    %c0_i32_1 = arith.constant 0 : i32
    return %c0_i32, %c0_i32_0 : i32, i32
  }
  func.func @transform_3(%arg0: i32, %arg1: i32) -> (i32, i32) {
    %c0_i32 = arith.constant 0 : i32
    %c0_i32_0 = arith.constant 0 : i32
    %c0_i32_1 = arith.constant 0 : i32
    return %c0_i32, %c0_i32_0 : i32, i32
  }
  func.func @transform_4(%arg0: i32, %arg1: i32) -> (i32, i32, i32, i32, i32) {
    %c0_i32 = arith.constant 0 : i32
    %c0_i32_0 = arith.constant 0 : i32
    %c0_i32_1 = arith.constant 0 : i32
    %c0_i32_2 = arith.constant 0 : i32
    return %arg0, %arg1, %c0_i32, %c0_i32_0, %c0_i32_1 : i32, i32, i32, i32, i32
  }
}

module attributes {stable_mosaic.version = 11 : i64} {
  func.func @_conv3x3_kernel(%arg0: i32, %arg1: i32, %arg2: memref<1x18x18x16xbf16, #tpu.memory_space<vmem>>, %arg3: memref<144x8xbf16, #tpu.memory_space<vmem>>, %arg4: memref<1x8xf32, #tpu.memory_space<vmem>>, %arg5: memref<1x16x16x8xbf16, #tpu.memory_space<vmem>>) attributes {dimension_semantics = [#tpu.dimension_semantics<parallel>, #tpu.dimension_semantics<parallel>], iteration_bounds = array<i64: 2, 1>, scalar_prefetch = 0 : i64, scratch_operands = 0 : i64, tpu.core_type = #tpu.core_type<tc>, window_params = [{transform_indices = @transform_0, window_bounds = array<i64: 1, 18, 18, 16>}, {pipeline_mode = #tpu.pipeline_mode<synchronous>, transform_indices = @transform_1, window_bounds = array<i64: 144, 8>}, {pipeline_mode = #tpu.pipeline_mode<synchronous>, transform_indices = @transform_2, window_bounds = array<i64: 1, 8>}, {transform_indices = @transform_3, window_bounds = array<i64: 1, 16, 16, 8>}]} {
    %c16_i32 = arith.constant 16 : i32
    %0 = arith.muli %arg1, %c16_i32 : i32
    %c0_i32 = arith.constant 0 : i32
    %1 = arith.addi %0, %c0_i32 : i32
    %c0 = arith.constant 0 : index
    %2 = arith.index_cast %1 : i32 to index
    %c0_0 = arith.constant 0 : index
    %c0_1 = arith.constant 0 : index
    %3 = vector.load %arg2[%c0, %2, %c0_0, %c0_1] : memref<1x18x18x16xbf16, #tpu.memory_space<vmem>>, vector<1x16x16x16xbf16>
    %4 = vector.shape_cast %3 : vector<1x16x16x16xbf16> to vector<16x16x16xbf16>
    %5 = vector.shape_cast %4 : vector<16x16x16xbf16> to vector<256x16xbf16>
    %c0_i32_2 = arith.constant 0 : i32
    %6 = arith.addi %0, %c0_i32_2 : i32
    %c0_3 = arith.constant 0 : index
    %7 = arith.index_cast %6 : i32 to index
    %c1 = arith.constant 1 : index
    %c0_4 = arith.constant 0 : index
    %8 = vector.load %arg2[%c0_3, %7, %c1, %c0_4] : memref<1x18x18x16xbf16, #tpu.memory_space<vmem>>, vector<1x16x16x16xbf16>
    %9 = vector.shape_cast %8 : vector<1x16x16x16xbf16> to vector<16x16x16xbf16>
    %10 = vector.shape_cast %9 : vector<16x16x16xbf16> to vector<256x16xbf16>
    %c0_i32_5 = arith.constant 0 : i32
    %11 = arith.addi %0, %c0_i32_5 : i32
    %c0_6 = arith.constant 0 : index
    %12 = arith.index_cast %11 : i32 to index
    %c2 = arith.constant 2 : index
    %c0_7 = arith.constant 0 : index
    %13 = vector.load %arg2[%c0_6, %12, %c2, %c0_7] : memref<1x18x18x16xbf16, #tpu.memory_space<vmem>>, vector<1x16x16x16xbf16>
    %14 = vector.shape_cast %13 : vector<1x16x16x16xbf16> to vector<16x16x16xbf16>
    %15 = vector.shape_cast %14 : vector<16x16x16xbf16> to vector<256x16xbf16>
    %c1_i32 = arith.constant 1 : i32
    %16 = arith.addi %0, %c1_i32 : i32
    %c0_8 = arith.constant 0 : index
    %17 = arith.index_cast %16 : i32 to index
    %c0_9 = arith.constant 0 : index
    %c0_10 = arith.constant 0 : index
    %18 = vector.load %arg2[%c0_8, %17, %c0_9, %c0_10] : memref<1x18x18x16xbf16, #tpu.memory_space<vmem>>, vector<1x16x16x16xbf16>
    %19 = vector.shape_cast %18 : vector<1x16x16x16xbf16> to vector<16x16x16xbf16>
    %20 = vector.shape_cast %19 : vector<16x16x16xbf16> to vector<256x16xbf16>
    %c1_i32_11 = arith.constant 1 : i32
    %21 = arith.addi %0, %c1_i32_11 : i32
    %c0_12 = arith.constant 0 : index
    %22 = arith.index_cast %21 : i32 to index
    %c1_13 = arith.constant 1 : index
    %c0_14 = arith.constant 0 : index
    %23 = vector.load %arg2[%c0_12, %22, %c1_13, %c0_14] : memref<1x18x18x16xbf16, #tpu.memory_space<vmem>>, vector<1x16x16x16xbf16>
    %24 = vector.shape_cast %23 : vector<1x16x16x16xbf16> to vector<16x16x16xbf16>
    %25 = vector.shape_cast %24 : vector<16x16x16xbf16> to vector<256x16xbf16>
    %c1_i32_15 = arith.constant 1 : i32
    %26 = arith.addi %0, %c1_i32_15 : i32
    %c0_16 = arith.constant 0 : index
    %27 = arith.index_cast %26 : i32 to index
    %c2_17 = arith.constant 2 : index
    %c0_18 = arith.constant 0 : index
    %28 = vector.load %arg2[%c0_16, %27, %c2_17, %c0_18] : memref<1x18x18x16xbf16, #tpu.memory_space<vmem>>, vector<1x16x16x16xbf16>
    %29 = vector.shape_cast %28 : vector<1x16x16x16xbf16> to vector<16x16x16xbf16>
    %30 = vector.shape_cast %29 : vector<16x16x16xbf16> to vector<256x16xbf16>
    %c2_i32 = arith.constant 2 : i32
    %31 = arith.addi %0, %c2_i32 : i32
    %c0_19 = arith.constant 0 : index
    %32 = arith.index_cast %31 : i32 to index
    %c0_20 = arith.constant 0 : index
    %c0_21 = arith.constant 0 : index
    %33 = vector.load %arg2[%c0_19, %32, %c0_20, %c0_21] : memref<1x18x18x16xbf16, #tpu.memory_space<vmem>>, vector<1x16x16x16xbf16>
    %34 = vector.shape_cast %33 : vector<1x16x16x16xbf16> to vector<16x16x16xbf16>
    %35 = vector.shape_cast %34 : vector<16x16x16xbf16> to vector<256x16xbf16>
    %c2_i32_22 = arith.constant 2 : i32
    %36 = arith.addi %0, %c2_i32_22 : i32
    %c0_23 = arith.constant 0 : index
    %37 = arith.index_cast %36 : i32 to index
    %c1_24 = arith.constant 1 : index
    %c0_25 = arith.constant 0 : index
    %38 = vector.load %arg2[%c0_23, %37, %c1_24, %c0_25] : memref<1x18x18x16xbf16, #tpu.memory_space<vmem>>, vector<1x16x16x16xbf16>
    %39 = vector.shape_cast %38 : vector<1x16x16x16xbf16> to vector<16x16x16xbf16>
    %40 = vector.shape_cast %39 : vector<16x16x16xbf16> to vector<256x16xbf16>
    %c2_i32_26 = arith.constant 2 : i32
    %41 = arith.addi %0, %c2_i32_26 : i32
    %c0_27 = arith.constant 0 : index
    %42 = arith.index_cast %41 : i32 to index
    %c2_28 = arith.constant 2 : index
    %c0_29 = arith.constant 0 : index
    %43 = vector.load %arg2[%c0_27, %42, %c2_28, %c0_29] : memref<1x18x18x16xbf16, #tpu.memory_space<vmem>>, vector<1x16x16x16xbf16>
    %44 = vector.shape_cast %43 : vector<1x16x16x16xbf16> to vector<16x16x16xbf16>
    %45 = vector.shape_cast %44 : vector<16x16x16xbf16> to vector<256x16xbf16>
    %46 = tpu.concatenate %5, %10, %15, %20, %25, %30, %35, %40, %45 in 1 : vector<256x16xbf16>, vector<256x16xbf16>, vector<256x16xbf16>, vector<256x16xbf16>, vector<256x16xbf16>, vector<256x16xbf16>, vector<256x16xbf16>, vector<256x16xbf16>, vector<256x16xbf16> -> vector<256x144xbf16>
    %c0_30 = arith.constant 0 : index
    %c0_31 = arith.constant 0 : index
    %47 = vector.load %arg3[%c0_30, %c0_31] : memref<144x8xbf16, #tpu.memory_space<vmem>>, vector<144x8xbf16>
    %cst = arith.constant dense<0.000000e+00> : vector<256x8xf32>
    %48 = tpu.matmul %46, %47, %cst {dimension_numbers = #tpu.dot_dimension_numbers<[1], [0], [0], [1], [0, 0, 1, 1], [], []>} : vector<256x144xbf16>, vector<144x8xbf16>, vector<256x8xf32> -> vector<256x8xf32>
    %c0_32 = arith.constant 0 : index
    %c0_33 = arith.constant 0 : index
    %49 = vector.load %arg4[%c0_32, %c0_33] : memref<1x8xf32, #tpu.memory_space<vmem>>, vector<1x8xf32>
    %50 = vector.broadcast %49 : vector<1x8xf32> to vector<256x8xf32>
    %51 = arith.addf %48, %50 : vector<256x8xf32>
    %52 = vector.shape_cast %51 : vector<256x8xf32> to vector<16x16x8xf32>
    %53 = arith.truncf %52 : vector<16x16x8xf32> to vector<16x16x8xbf16>
    %c0_34 = arith.constant 0 : index
    %c0_35 = arith.constant 0 : index
    %c0_36 = arith.constant 0 : index
    %c0_37 = arith.constant 0 : index
    %54 = vector.load %arg5[%c0_34, %c0_35, %c0_36, %c0_37] : memref<1x16x16x8xbf16, #tpu.memory_space<vmem>>, vector<1x16x16x8xbf16>
    %55 = vector.shape_cast %54 : vector<1x16x16x8xbf16> to vector<16x16x8xbf16>
    %56 = vector.shape_cast %53 : vector<16x16x8xbf16> to vector<1x16x16x8xbf16>
    tpu.vector_store %arg5[%c0_34, %c0_35, %c0_36, %c0_37], %56 {strides = array<i32>} : memref<1x16x16x8xbf16, #tpu.memory_space<vmem>>, vector<1x16x16x8xbf16>,
    return
  }
  func.func @transform_0(%arg0: i32, %arg1: i32) -> (i32, i32, i32, i32) {
    %c0_i32 = arith.constant 0 : i32
    %c0_i32_0 = arith.constant 0 : i32
    %c0_i32_1 = arith.constant 0 : i32
    %c0_i32_2 = arith.constant 0 : i32
    return %arg0, %c0_i32, %c0_i32_0, %c0_i32_1 : i32, i32, i32, i32
  }
  func.func @transform_1(%arg0: i32, %arg1: i32) -> (i32, i32) {
    %c0_i32 = arith.constant 0 : i32
    %c0_i32_0 = arith.constant 0 : i32
    %c0_i32_1 = arith.constant 0 : i32
    return %c0_i32, %c0_i32_0 : i32, i32
  }
  func.func @transform_2(%arg0: i32, %arg1: i32) -> (i32, i32) {
    %c0_i32 = arith.constant 0 : i32
    %c0_i32_0 = arith.constant 0 : i32
    %c0_i32_1 = arith.constant 0 : i32
    return %c0_i32, %c0_i32_0 : i32, i32
  }
  func.func @transform_3(%arg0: i32, %arg1: i32) -> (i32, i32, i32, i32) {
    %c0_i32 = arith.constant 0 : i32
    %c0_i32_0 = arith.constant 0 : i32
    %c0_i32_1 = arith.constant 0 : i32
    return %arg0, %arg1, %c0_i32, %c0_i32_0 : i32, i32, i32, i32
  }
}

</mosaic_0001>

<llo_original>
// kernel: a_call__.2
$region0: #{a_call__.2}
  #allocation0 [shape = 'u32[]', space=smem, size = 0x4, offset = 0x4, fixed_abs, tag = 'smem constant byte address 0x4 - core index']
  #allocation1 [shape = 'u32[144,128]{1,0:T(1,128)}', space=vmem, size = 0x12000, scoped, tag = 'internal scratch']
  %s0 = inlined_call_operand.vmem [shape: bf16[2,10,10,16], index: 0, kind: input, shape index: {}]
  %s1 = inlined_call_operand.vmem [shape: bf16[144,32], index: 1, kind: input, shape index: {}]
  %s2 = inlined_call_operand.vmem [shape: bf16[96,32], index: 2, kind: input, shape index: {}]
  %s3 = inlined_call_operand.vmem [shape: f32[1,32], index: 3, kind: input, shape index: {}]
  %s4 = inlined_call_operand.vmem [shape: bf16[2,8,2,8,32], index: 4, kind: output, shape index: {}]
  %s5 = sld [smem:[#allocation0]]
  $region49: #{a_call__.2} parent=0
    _
  %s7 = ssub.s32 1, %s5
  %s8 = scalar_select 0, %s7, %s5
  loop: start=0, step=1, limit=4
  $region2: #{a_call__.2} parent=0 // loop_pre_header
    _
  $region3: #{a_call__.2} parent=0 // loop_header
    %s10 = sphi 0, %s14
    %p11 = scmp.ge.s32.totalorder %s10, 4
    %s17 = sphi 0, %s29
    %s18 = sphi 0, %s25
    %s19 = sphi 0, %s17
    %s20 = sphi 0, %s18
    %s21 = sphi 0, %s19
    %s22 = sphi 0, %s20
    %s32 = sphi 0, %s34
    %s35 = sphi 0, %s32
    %s36 = sphi 0, %s35
    %s52 = sphi 0, %s36
    %s56 = sphi 0, %s56
    %s58 = sphi 0, %s56
    %s59 = sphi 0, %s58
    %s73 = sphi 0, %s59
    %s77 = sphi 0, %s77
    %s79 = sphi 0, %s77
    %s80 = sphi 0, %s79
    %s94 = sphi 0, %s80
    %s98 = sphi 0, %s98
    %s100 = sphi 0, %s98
    %s101 = sphi 0, %s100
    %s115 = sphi 0, %s101
    %s123 = sphi 0, %s125
    %s126 = sphi 0, %s123
    %s127 = sphi 0, %s126
    %s143 = sphi 0, %s127
  $region4: #{a_call__.2} parent=0 // loop_header_branch
    %13 = sbr.rel (%p11) target = $region8
  $region5: #{a_call__.2} parent=0 // loop_body
    %s15 = ssub.s32 %s10, 1
    %s16 = ssub.s32 %s10, 2
    %s23 = sadd.s32 1, %s18
    %p24 = scmp.ge.s32.totalorder %s23, 1
    %s25 = scalar_select %p24, 0, %s23
    %s26 = sadd.s32 1, %s17
    %s27 = scalar_select %p24, %s26, %s17
    %p28 = scmp.ge.s32.totalorder %s27, 2
    %s29 = scalar_select %p28, 0, %s27
    %s30 = ssub.s32 %s17, %s29
    %p31 = scmp.eq.s32.totalorder %s30, 0
    %s33 = sadd.s32 %s32, 1
    %s34 = scalar_select %p31, %s32, %s33
    %p37 = pneg %p31
    %p38 = scmp.eq.s32.totalorder %s10, 1
    %p39 = por %p37, %p38
    %p40 = scmp.ne.s32.totalorder %s32, %s35
    %p41 = scmp.eq.s32.totalorder %s10, 0
    %p42 = por %p40, %p41
    %p43 = scmp.ne.s32.totalorder %s32, %s35
    %p44 = scmp.eq.s32.totalorder %s15, 1
    %p45 = por %p43, %p44
    %p46 = scmp.ne.s32.totalorder %s35, %s36
    %p47 = scmp.eq.s32.totalorder %s15, 0
    %p48 = por %p46, %p47
    %p49 = scmp.ne.s32.totalorder %s35, %s36
    %p50 = scmp.eq.s32.totalorder %s16, 1
    %p51 = por %p49, %p50
    %p53 = scmp.ne.s32.totalorder %s36, %s52
    %p54 = scmp.eq.s32.totalorder %s16, 0
    %p55 = por %p53, %p54
    %s57 = sadd.s32 %s56, 1
    %p60 = scmp.eq.s32.totalorder %s10, 1
    %p61 = scmp.ne.s32.totalorder %s56, %s58
    %p62 = scmp.eq.s32.totalorder %s10, 0
    %p63 = por %p61, %p62
    %p64 = scmp.ne.s32.totalorder %s56, %s58
    %p65 = scmp.eq.s32.totalorder %s15, 1
    %p66 = por %p64, %p65
    %p67 = scmp.ne.s32.totalorder %s58, %s59
    %p68 = scmp.eq.s32.totalorder %s15, 0
    %p69 = por %p67, %p68
    %p70 = scmp.ne.s32.totalorder %s58, %s59
    %p71 = scmp.eq.s32.totalorder %s16, 1
    %p72 = por %p70, %p71
    %p74 = scmp.ne.s32.totalorder %s59, %s73
    %p75 = scmp.eq.s32.totalorder %s16, 0
    %p76 = por %p74, %p75
    %s78 = sadd.s32 %s77, 1
    %p81 = scmp.eq.s32.totalorder %s10, 1
    %p82 = scmp.ne.s32.totalorder %s77, %s79
    %p83 = scmp.eq.s32.totalorder %s10, 0
    %p84 = por %p82, %p83
    %p85 = scmp.ne.s32.totalorder %s77, %s79
    %p86 = scmp.eq.s32.totalorder %s15, 1
    %p87 = por %p85, %p86
    %p88 = scmp.ne.s32.totalorder %s79, %s80
    %p89 = scmp.eq.s32.totalorder %s15, 0
    %p90 = por %p88, %p89
    %p91 = scmp.ne.s32.totalorder %s79, %s80
    %p92 = scmp.eq.s32.totalorder %s16, 1
    %p93 = por %p91, %p92
    %p95 = scmp.ne.s32.totalorder %s80, %s94
    %p96 = scmp.eq.s32.totalorder %s16, 0
    %p97 = por %p95, %p96
    %s99 = sadd.s32 %s98, 1
    %p102 = scmp.eq.s32.totalorder %s10, 1
    %p103 = scmp.ne.s32.totalorder %s98, %s100
    %p104 = scmp.eq.s32.totalorder %s10, 0
    %p105 = por %p103, %p104
    %p106 = scmp.ne.s32.totalorder %s98, %s100
    %p107 = scmp.eq.s32.totalorder %s15, 1
    %p108 = por %p106, %p107
    %p109 = scmp.ne.s32.totalorder %s100, %s101
    %p110 = scmp.eq.s32.totalorder %s15, 0
    %p111 = por %p109, %p110
    %p112 = scmp.ne.s32.totalorder %s100, %s101
    %p113 = scmp.eq.s32.totalorder %s16, 1
    %p114 = por %p112, %p113
    %p116 = scmp.ne.s32.totalorder %s101, %s115
    %p117 = scmp.eq.s32.totalorder %s16, 0
    %p118 = por %p116, %p117
    %s119 = ssub.s32 %s17, %s29
    %s120 = ssub.s32 %s18, %s25
    %s121 = sor.u32 %s119, %s120
    %p122 = scmp.eq.s32.totalorder %s121, 0
    %s124 = sadd.s32 %s123, 1
    %s125 = scalar_select %p122, %s123, %s124
    %p128 = pneg %p122
    %p129 = scmp.eq.s32.totalorder %s10, 1
    %p130 = por %p128, %p129
    %p131 = scmp.ne.s32.totalorder %s123, %s126
    %p132 = scmp.eq.s32.totalorder %s10, 0
    %p133 = por %p131, %p132
    %p134 = scmp.ne.s32.totalorder %s123, %s126
    %p135 = scmp.eq.s32.totalorder %s15, 1
    %p136 = por %p134, %p135
    %p137 = scmp.ne.s32.totalorder %s126, %s127
    %p138 = scmp.eq.s32.totalorder %s15, 0
    %p139 = por %p137, %p138
    %p140 = scmp.ne.s32.totalorder %s126, %s127
    %p141 = scmp.eq.s32.totalorder %s16, 1
    %p142 = por %p140, %p141
    %p144 = scmp.ne.s32.totalorder %s127, %s143
    %p145 = scmp.eq.s32.totalorder %s16, 0
    %p146 = por %p144, %p145
    %p147 = scmp.le.s32.totalorder 1, %s10
    %p148 = scmp.lt.s32.totalorder %s10, 3
    %p149 = pnand %p147, %p148
    %p150 = pneg %p149
    // Predicated region
    $region9: #{a_call__.2} parent=5 // pred_check
      _
    $region10: #{a_call__.2} parent=5 // pred_check_branch
      %152 = sbr.rel (%p149) target = $region12
    $region11: #{a_call__.2} parent=5 // pred_region
      %s153 = ssub.s32 %s10, 1
      // Predicated region
      $region13: #{a_call__.2} parent=11 // pred_check
        %p154 = pneg %p69
      $region14: #{a_call__.2} parent=11 // pred_check_branch
        %156 = sbr.rel (%p154) target = $region16
      $region15: #{a_call__.2} parent=11 // pred_region
        _
      $region16: #{a_call__.2} parent=11 // pred_fallthru
        _
      // Predicated region
      $region17: #{a_call__.2} parent=11 // pred_check
        %p157 = pneg %p90
      $region18: #{a_call__.2} parent=11 // pred_check_branch
        %159 = sbr.rel (%p157) target = $region20
      $region19: #{a_call__.2} parent=11 // pred_region
        _
      $region20: #{a_call__.2} parent=11 // pred_fallthru
        _
      // Predicated region
      $region21: #{a_call__.2} parent=11 // pred_check
        %p160 = pneg %p111
      $region22: #{a_call__.2} parent=11 // pred_check_branch
        %162 = sbr.rel (%p160) target = $region24
      $region23: #{a_call__.2} parent=11 // pred_region
        _
      $region24: #{a_call__.2} parent=11 // pred_fallthru
        _
    $region12: #{a_call__.2} parent=5 // pred_fallthru
      _
    %p163 = scmp.lt.s32.totalorder %s10, 2
    // Predicated region
    $region25: #{a_call__.2} parent=5 // pred_check
      %p164 = pneg %p163
    $region26: #{a_call__.2} parent=5 // pred_check_branch
      %166 = sbr.rel (%p164) target = $region28
    $region27: #{a_call__.2} parent=5 // pred_region
      // Predicated region
      $region29: #{a_call__.2} parent=27 // pred_check
        %p167 = pneg %p42
      $region30: #{a_call__.2} parent=27 // pred_check_branch
        %169 = sbr.rel (%p167) target = $region32
      $region31: #{a_call__.2} parent=27 // pred_region
        %p170 = scmp.lt.s32.totalorder %s17, 1
        %s171 = scalar_select %p170, %s17, 1
        %s172 = smul.addr %s171, 20
        %s173 = smul.addr %s172, 4
        %s174 = scalar_lea.vmem %s0, %s173
      $region32: #{a_call__.2} parent=27 // pred_fallthru
        _
    $region28: #{a_call__.2} parent=5 // pred_fallthru
      _
    %p175 = scmp.le.s32.totalorder 1, %s10
    %p176 = scmp.lt.s32.totalorder %s10, 3
    %p177 = pnand %p175, %p176
    %p178 = pneg %p177
    // Predicated region
    $region33: #{a_call__.2} parent=5 // pred_check
      _
    $region34: #{a_call__.2} parent=5 // pred_check_branch
      %180 = sbr.rel (%p177) target = $region36
    $region35: #{a_call__.2} parent=5 // pred_region
      %s181 = ssub.s32 %s10, 1
      %p182 = scmp.lt.s32.totalorder %s19, 1
      %s183 = scalar_select %p182, %s19, 1
      %s184 = smul.addr %s183, 20
      %s185 = smul.addr %s184, 4
      %s186 = scalar_lea.vmem %s0, %s185
      %p187 = pneg %p48
      %p188 = pneg %p45
      %p189 = pneg %p69
      %p190 = pneg %p66
      %p191 = pneg %p90
      %p192 = pneg %p87
      %p193 = pneg %p111
      %p194 = pneg %p108
      %p195 = pneg %p139
      %p196 = pneg %p136
      %s197 = smul.u32 8, %s20
      %p198 = scmp.lt.s32.totalorder %s19, 1
      %s199 = scalar_select %p198, %s19, 1
      %p200 = scmp.lt.s32.totalorder %s197, 7
      %s201 = scalar_select %p200, %s197, 7
      %s202 = smul.addr %s201, 2
      %s203 = smul.addr %s199, 16
      %s204 = sadd.s32 %s202, %s203
      %s205 = smul.addr %s204, 4
      %s206 = scalar_lea.vmem %s4, %s205
      %p207 = scmp.lt.s32.totalorder %s19, 1
      %s208 = scalar_select %p207, %s19, 1
      %s209 = smul.addr %s208, 20
      %s210 = smul.addr %s209, 4
      %s211 = scalar_lea.vmem %s0, %s210
      %s212 = smul.u32 8, %s20
      %p213 = scmp.lt.s32.totalorder %s19, 1
      %s214 = scalar_select %p213, %s19, 1
      %p215 = scmp.lt.s32.totalorder %s212, 7
      %s216 = scalar_select %p215, %s212, 7
      %s217 = smul.addr %s216, 2
      %s218 = smul.addr %s214, 16
      %s219 = sadd.s32 %s217, %s218
      %s220 = smul.addr %s219, 4
      %s221 = scalar_lea.vmem %s4, %s220
      %s222 = smul.u32 8, %s20
      %s224 = smul.u32 %s20, 8
      %s225 = smul.u32 %s224, 2
      %s226 = smul.addr %s225, 4
      %s227 = scalar_lea.vmem %s211, %s226
      %v228 = vld [vmem:[%s227] sm:$0xf]
      %v229 = vld [vmem:[%s227 + $0x8] sm:$0xf]
      %v230 = vld [vmem:[%s227 + $0x10] sm:$0xf]
      %v231 = vld [vmem:[%s227 + $0x18] sm:$0xf]
      %v232 = vld [vmem:[%s227 + $0x20] sm:$0xf]
      %v233 = vld [vmem:[%s227 + $0x28] sm:$0xf]
      %v234 = vld [vmem:[%s227 + $0x30] sm:$0xf]
      %v235 = vld [vmem:[%s227 + $0x38] sm:$0xf]
      %v236 = vld [vmem:[%s227 + $0x4] sm:$0x1]
      %v237 = vld [vmem:[%s227 + $0xc] sm:$0x1]
      %v238 = vld [vmem:[%s227 + $0x14] sm:$0x1]
      %v239 = vld [vmem:[%s227 + $0x1c] sm:$0x1]
      %v240 = vld [vmem:[%s227 + $0x24] sm:$0x1]
      %v241 = vld [vmem:[%s227 + $0x2c] sm:$0x1]
      %v242 = vld [vmem:[%s227 + $0x34] sm:$0x1]
      %v243 = vld [vmem:[%s227 + $0x3c] sm:$0x1]
      %vm244 = vsmask.f32 3328
      %vm245 = vsmask.f32 7440
      %vm246 = vmor %vm244, %vm245
      %v248 = vshrl.u32 %v228, 16
      %v250 = vrot.slane %v248, 4
      %v251 = vshll.u32 %v228, 16
      %v253 = vrot.slane %v251, 5
      %v254 = vor.u32 %v250, %v253
      %v255 = vrot.slane %v254, 4
      %v257 = vshll.u32 %v236, 16
      %v259 = vrot.slane %v257, 5
      %v260 = vsel %vm246, %v255, %v259
      %v262 = vshrl.u32 %v229, 16
      %v264 = vrot.slane %v262, 4
      %v265 = vshll.u32 %v229, 16
      %v267 = vrot.slane %v265, 5
      %v268 = vor.u32 %v264, %v267
      %v269 = vrot.slane %v268, 4
      %v271 = vshll.u32 %v237, 16
      %v273 = vrot.slane %v271, 5
      %v274 = vsel %vm246, %v269, %v273
      %v276 = vshrl.u32 %v230, 16
      %v278 = vrot.slane %v276, 4
      %v279 = vshll.u32 %v230, 16
      %v281 = vrot.slane %v279, 5
      %v282 = vor.u32 %v278, %v281
      %v283 = vrot.slane %v282, 4
      %v285 = vshll.u32 %v238, 16
      %v287 = vrot.slane %v285, 5
      %v288 = vsel %vm246, %v283, %v287
      %v290 = vshrl.u32 %v231, 16
      %v292 = vrot.slane %v290, 4
      %v293 = vshll.u32 %v231, 16
      %v295 = vrot.slane %v293, 5
      %v296 = vor.u32 %v292, %v295
      %v297 = vrot.slane %v296, 4
      %v299 = vshll.u32 %v239, 16
      %v301 = vrot.slane %v299, 5
      %v302 = vsel %vm246, %v297, %v301
      %v304 = vshrl.u32 %v232, 16
      %v306 = vrot.slane %v304, 4
      %v307 = vshll.u32 %v232, 16
      %v309 = vrot.slane %v307, 5
      %v310 = vor.u32 %v306, %v309
      %v311 = vrot.slane %v310, 4
      %v313 = vshll.u32 %v240, 16
      %v315 = vrot.slane %v313, 5
      %v316 = vsel %vm246, %v311, %v315
      %v318 = vshrl.u32 %v233, 16
      %v320 = vrot.slane %v318, 4
      %v321 = vshll.u32 %v233, 16
      %v323 = vrot.slane %v321, 5
      %v324 = vor.u32 %v320, %v323
      %v325 = vrot.slane %v324, 4
      %v327 = vshll.u32 %v241, 16
      %v329 = vrot.slane %v327, 5
      %v330 = vsel %vm246, %v325, %v329
      %v332 = vshrl.u32 %v234, 16
      %v334 = vrot.slane %v332, 4
      %v335 = vshll.u32 %v234, 16
      %v337 = vrot.slane %v335, 5
      %v338 = vor.u32 %v334, %v337
      %v339 = vrot.slane %v338, 4
      %v341 = vshll.u32 %v242, 16
      %v343 = vrot.slane %v341, 5
      %v344 = vsel %vm246, %v339, %v343
      %v346 = vshrl.u32 %v235, 16
      %v348 = vrot.slane %v346, 4
      %v349 = vshll.u32 %v235, 16
      %v351 = vrot.slane %v349, 5
      %v352 = vor.u32 %v348, %v351
      %v353 = vrot.slane %v352, 4
      %v355 = vshll.u32 %v243, 16
      %v357 = vrot.slane %v355, 5
      %v358 = vsel %vm246, %v353, %v357
      %v359 = vld [vmem:[%s227] sm:$0xe]
      %v360 = vld [vmem:[%s227 + $0x8] sm:$0xe]
      %v361 = vld [vmem:[%s227 + $0x10] sm:$0xe]
      %v362 = vld [vmem:[%s227 + $0x18] sm:$0xe]
      %v363 = vld [vmem:[%s227 + $0x20] sm:$0xe]
      %v364 = vld [vmem:[%s227 + $0x28] sm:$0xe]
      %v365 = vld [vmem:[%s227 + $0x30] sm:$0xe]
      %v366 = vld [vmem:[%s227 + $0x38] sm:$0xe]
      %vm383 = vcmask 1042432
      %vm384 = vcmask 1046532
      %vm385 = vmor %vm383, %vm384
      %v386 = vrot.slane %v359, 5
      %v387 = vrot.slane %v386, 4
      %v388 = vrot.slane %v236, 5
      %v389 = vsel %vm385, %v387, %v388
      %v390 = vrot.slane %v360, 5
      %v391 = vrot.slane %v390, 4
      %v392 = vrot.slane %v237, 5
      %v393 = vsel %vm385, %v391, %v392
      %v394 = vrot.slane %v361, 5
      %v395 = vrot.slane %v394, 4
      %v396 = vrot.slane %v238, 5
      %v397 = vsel %vm385, %v395, %v396
      %v398 = vrot.slane %v362, 5
      %v399 = vrot.slane %v398, 4
      %v400 = vrot.slane %v239, 5
      %v401 = vsel %vm385, %v399, %v400
      %v402 = vrot.slane %v363, 5
      %v403 = vrot.slane %v402, 4
      %v404 = vrot.slane %v240, 5
      %v405 = vsel %vm385, %v403, %v404
      %v406 = vrot.slane %v364, 5
      %v407 = vrot.slane %v406, 4
      %v408 = vrot.slane %v241, 5
      %v409 = vsel %vm385, %v407, %v408
      %v410 = vrot.slane %v365, 5
      %v411 = vrot.slane %v410, 4
      %v412 = vrot.slane %v242, 5
      %v413 = vsel %vm385, %v411, %v412
      %v414 = vrot.slane %v366, 5
      %v415 = vrot.slane %v414, 4
      %v416 = vrot.slane %v243, 5
      %v417 = vsel %vm385, %v415, %v416
      %s418 = sadd.s32 %s224, 1
      %s419 = smul.u32 %s418, 2
      %s420 = smul.addr %s419, 4
      %s421 = scalar_lea.vmem %s211, %s420
      %v422 = vld [vmem:[%s421] sm:$0xf]
      %v423 = vld [vmem:[%s421 + $0x8] sm:$0xf]
      %v424 = vld [vmem:[%s421 + $0x10] sm:$0xf]
      %v425 = vld [vmem:[%s421 + $0x18] sm:$0xf]
      %v426 = vld [vmem:[%s421 + $0x20] sm:$0xf]
      %v427 = vld [vmem:[%s421 + $0x28] sm:$0xf]
      %v428 = vld [vmem:[%s421 + $0x30] sm:$0xf]
      %v429 = vld [vmem:[%s421 + $0x38] sm:$0xf]
      %v430 = vld [vmem:[%s421 + $0x4] sm:$0x1]
      %v431 = vld [vmem:[%s421 + $0xc] sm:$0x1]
      %v432 = vld [vmem:[%s421 + $0x14] sm:$0x1]
      %v433 = vld [vmem:[%s421 + $0x1c] sm:$0x1]
      %v434 = vld [vmem:[%s421 + $0x24] sm:$0x1]
      %v435 = vld [vmem:[%s421 + $0x2c] sm:$0x1]
      %v436 = vld [vmem:[%s421 + $0x34] sm:$0x1]
      %v437 = vld [vmem:[%s421 + $0x3c] sm:$0x1]
      %v439 = vshrl.u32 %v422, 16
      %v441 = vrot.slane %v439, 4
      %v442 = vshll.u32 %v422, 16
      %v444 = vrot.slane %v442, 5
      %v445 = vor.u32 %v441, %v444
      %v446 = vrot.slane %v445, 4
      %v448 = vshll.u32 %v430, 16
      %v450 = vrot.slane %v448, 5
      %v451 = vsel %vm246, %v446, %v450
      %v453 = vshrl.u32 %v423, 16
      %v455 = vrot.slane %v453, 4
      %v456 = vshll.u32 %v423, 16
      %v458 = vrot.slane %v456, 5
      %v459 = vor.u32 %v455, %v458
      %v460 = vrot.slane %v459, 4
      %v462 = vshll.u32 %v431, 16
      %v464 = vrot.slane %v462, 5
      %v465 = vsel %vm246, %v460, %v464
      %v467 = vshrl.u32 %v424, 16
      %v469 = vrot.slane %v467, 4
      %v470 = vshll.u32 %v424, 16
      %v472 = vrot.slane %v470, 5
      %v473 = vor.u32 %v469, %v472
      %v474 = vrot.slane %v473, 4
      %v476 = vshll.u32 %v432, 16
      %v478 = vrot.slane %v476, 5
      %v479 = vsel %vm246, %v474, %v478
      %v481 = vshrl.u32 %v425, 16
      %v483 = vrot.slane %v481, 4
      %v484 = vshll.u32 %v425, 16
      %v486 = vrot.slane %v484, 5
      %v487 = vor.u32 %v483, %v486
      %v488 = vrot.slane %v487, 4
      %v490 = vshll.u32 %v433, 16
      %v492 = vrot.slane %v490, 5
      %v493 = vsel %vm246, %v488, %v492
      %v495 = vshrl.u32 %v426, 16
      %v497 = vrot.slane %v495, 4
      %v498 = vshll.u32 %v426, 16
      %v500 = vrot.slane %v498, 5
      %v501 = vor.u32 %v497, %v500
      %v502 = vrot.slane %v501, 4
      %v504 = vshll.u32 %v434, 16
      %v506 = vrot.slane %v504, 5
      %v507 = vsel %vm246, %v502, %v506
      %v509 = vshrl.u32 %v427, 16
      %v511 = vrot.slane %v509, 4
      %v512 = vshll.u32 %v427, 16
      %v514 = vrot.slane %v512, 5
      %v515 = vor.u32 %v511, %v514
      %v516 = vrot.slane %v515, 4
      %v518 = vshll.u32 %v435, 16
      %v520 = vrot.slane %v518, 5
      %v521 = vsel %vm246, %v516, %v520
      %v523 = vshrl.u32 %v428, 16
      %v525 = vrot.slane %v523, 4
      %v526 = vshll.u32 %v428, 16
      %v528 = vrot.slane %v526, 5
      %v529 = vor.u32 %v525, %v528
      %v530 = vrot.slane %v529, 4
      %v532 = vshll.u32 %v436, 16
      %v534 = vrot.slane %v532, 5
      %v535 = vsel %vm246, %v530, %v534
      %v537 = vshrl.u32 %v429, 16
      %v539 = vrot.slane %v537, 4
      %v540 = vshll.u32 %v429, 16
      %v542 = vrot.slane %v540, 5
      %v543 = vor.u32 %v539, %v542
      %v544 = vrot.slane %v543, 4
      %v546 = vshll.u32 %v437, 16
      %v548 = vrot.slane %v546, 5
      %v549 = vsel %vm246, %v544, %v548
      %v550 = vld [vmem:[%s421] sm:$0xe]
      %v551 = vld [vmem:[%s421 + $0x8] sm:$0xe]
      %v552 = vld [vmem:[%s421 + $0x10] sm:$0xe]
      %v553 = vld [vmem:[%s421 + $0x18] sm:$0xe]
      %v554 = vld [vmem:[%s421 + $0x20] sm:$0xe]
      %v555 = vld [vmem:[%s421 + $0x28] sm:$0xe]
      %v556 = vld [vmem:[%s421 + $0x30] sm:$0xe]
      %v557 = vld [vmem:[%s421 + $0x38] sm:$0xe]
      %v574 = vrot.slane %v550, 5
      %v575 = vrot.slane %v574, 4
      %v576 = vrot.slane %v430, 5
      %v577 = vsel %vm385, %v575, %v576
      %v578 = vrot.slane %v551, 5
      %v579 = vrot.slane %v578, 4
      %v580 = vrot.slane %v431, 5
      %v581 = vsel %vm385, %v579, %v580
      %v582 = vrot.slane %v552, 5
      %v583 = vrot.slane %v582, 4
      %v584 = vrot.slane %v432, 5
      %v585 = vsel %vm385, %v583, %v584
      %v586 = vrot.slane %v553, 5
      %v587 = vrot.slane %v586, 4
      %v588 = vrot.slane %v433, 5
      %v589 = vsel %vm385, %v587, %v588
      %v590 = vrot.slane %v554, 5
      %v591 = vrot.slane %v590, 4
      %v592 = vrot.slane %v434, 5
      %v593 = vsel %vm385, %v591, %v592
      %v594 = vrot.slane %v555, 5
      %v595 = vrot.slane %v594, 4
      %v596 = vrot.slane %v435, 5
      %v597 = vsel %vm385, %v595, %v596
      %v598 = vrot.slane %v556, 5
      %v599 = vrot.slane %v598, 4
      %v600 = vrot.slane %v436, 5
      %v601 = vsel %vm385, %v599, %v600
      %v602 = vrot.slane %v557, 5
      %v603 = vrot.slane %v602, 4
      %v604 = vrot.slane %v437, 5
      %v605 = vsel %vm385, %v603, %v604
      %s606 = sadd.s32 %s224, 2
      %s607 = smul.u32 %s606, 2
      %s608 = smul.addr %s607, 4
      %s609 = scalar_lea.vmem %s211, %s608
      %v610 = vld [vmem:[%s609] sm:$0xf]
      %v611 = vld [vmem:[%s609 + $0x8] sm:$0xf]
      %v612 = vld [vmem:[%s609 + $0x10] sm:$0xf]
      %v613 = vld [vmem:[%s609 + $0x18] sm:$0xf]
      %v614 = vld [vmem:[%s609 + $0x20] sm:$0xf]
      %v615 = vld [vmem:[%s609 + $0x28] sm:$0xf]
      %v616 = vld [vmem:[%s609 + $0x30] sm:$0xf]
      %v617 = vld [vmem:[%s609 + $0x38] sm:$0xf]
      %v618 = vld [vmem:[%s609 + $0x4] sm:$0x1]
      %v619 = vld [vmem:[%s609 + $0xc] sm:$0x1]
      %v620 = vld [vmem:[%s609 + $0x14] sm:$0x1]
      %v621 = vld [vmem:[%s609 + $0x1c] sm:$0x1]
      %v622 = vld [vmem:[%s609 + $0x24] sm:$0x1]
      %v623 = vld [vmem:[%s609 + $0x2c] sm:$0x1]
      %v624 = vld [vmem:[%s609 + $0x34] sm:$0x1]
      %v625 = vld [vmem:[%s609 + $0x3c] sm:$0x1]
      %v627 = vshrl.u32 %v610, 16
      %v629 = vrot.slane %v627, 4
      %v630 = vshll.u32 %v610, 16
      %v632 = vrot.slane %v630, 5
      %v633 = vor.u32 %v629, %v632
      %v634 = vrot.slane %v633, 4
      %v636 = vshll.u32 %v618, 16
      %v638 = vrot.slane %v636, 5
      %v639 = vsel %vm246, %v634, %v638
      %v641 = vshrl.u32 %v611, 16
      %v643 = vrot.slane %v641, 4
      %v644 = vshll.u32 %v611, 16
      %v646 = vrot.slane %v644, 5
      %v647 = vor.u32 %v643, %v646
      %v648 = vrot.slane %v647, 4
      %v650 = vshll.u32 %v619, 16
      %v652 = vrot.slane %v650, 5
      %v653 = vsel %vm246, %v648, %v652
      %v655 = vshrl.u32 %v612, 16
      %v657 = vrot.slane %v655, 4
      %v658 = vshll.u32 %v612, 16
      %v660 = vrot.slane %v658, 5
      %v661 = vor.u32 %v657, %v660
      %v662 = vrot.slane %v661, 4
      %v664 = vshll.u32 %v620, 16
      %v666 = vrot.slane %v664, 5
      %v667 = vsel %vm246, %v662, %v666
      %v669 = vshrl.u32 %v613, 16
      %v671 = vrot.slane %v669, 4
      %v672 = vshll.u32 %v613, 16
      %v674 = vrot.slane %v672, 5
      %v675 = vor.u32 %v671, %v674
      %v676 = vrot.slane %v675, 4
      %v678 = vshll.u32 %v621, 16
      %v680 = vrot.slane %v678, 5
      %v681 = vsel %vm246, %v676, %v680
      %v683 = vshrl.u32 %v614, 16
      %v685 = vrot.slane %v683, 4
      %v686 = vshll.u32 %v614, 16
      %v688 = vrot.slane %v686, 5
      %v689 = vor.u32 %v685, %v688
      %v690 = vrot.slane %v689, 4
      %v692 = vshll.u32 %v622, 16
      %v694 = vrot.slane %v692, 5
      %v695 = vsel %vm246, %v690, %v694
      %v697 = vshrl.u32 %v615, 16
      %v699 = vrot.slane %v697, 4
      %v700 = vshll.u32 %v615, 16
      %v702 = vrot.slane %v700, 5
      %v703 = vor.u32 %v699, %v702
      %v704 = vrot.slane %v703, 4
      %v706 = vshll.u32 %v623, 16
      %v708 = vrot.slane %v706, 5
      %v709 = vsel %vm246, %v704, %v708
      %v711 = vshrl.u32 %v616, 16
      %v713 = vrot.slane %v711, 4
      %v714 = vshll.u32 %v616, 16
      %v716 = vrot.slane %v714, 5
      %v717 = vor.u32 %v713, %v716
      %v718 = vrot.slane %v717, 4
      %v720 = vshll.u32 %v624, 16
      %v722 = vrot.slane %v720, 5
      %v723 = vsel %vm246, %v718, %v722
      %v725 = vshrl.u32 %v617, 16
      %v727 = vrot.slane %v725, 4
      %v728 = vshll.u32 %v617, 16
      %v730 = vrot.slane %v728, 5
      %v731 = vor.u32 %v727, %v730
      %v732 = vrot.slane %v731, 4
      %v734 = vshll.u32 %v625, 16
      %v736 = vrot.slane %v734, 5
      %v737 = vsel %vm246, %v732, %v736
      %v738 = vld [vmem:[%s609] sm:$0xe]
      %v739 = vld [vmem:[%s609 + $0x8] sm:$0xe]
      %v740 = vld [vmem:[%s609 + $0x10] sm:$0xe]
      %v741 = vld [vmem:[%s609 + $0x18] sm:$0xe]
      %v742 = vld [vmem:[%s609 + $0x20] sm:$0xe]
      %v743 = vld [vmem:[%s609 + $0x28] sm:$0xe]
      %v744 = vld [vmem:[%s609 + $0x30] sm:$0xe]
      %v745 = vld [vmem:[%s609 + $0x38] sm:$0xe]
      %v762 = vrot.slane %v738, 5
      %v763 = vrot.slane %v762, 4
      %v764 = vrot.slane %v618, 5
      %v765 = vsel %vm385, %v763, %v764
      %v766 = vrot.slane %v739, 5
      %v767 = vrot.slane %v766, 4
      %v768 = vrot.slane %v619, 5
      %v769 = vsel %vm385, %v767, %v768
      %v770 = vrot.slane %v740, 5
      %v771 = vrot.slane %v770, 4
      %v772 = vrot.slane %v620, 5
      %v773 = vsel %vm385, %v771, %v772
      %v774 = vrot.slane %v741, 5
      %v775 = vrot.slane %v774, 4
      %v776 = vrot.slane %v621, 5
      %v777 = vsel %vm385, %v775, %v776
      %v778 = vrot.slane %v742, 5
      %v779 = vrot.slane %v778, 4
      %v780 = vrot.slane %v622, 5
      %v781 = vsel %vm385, %v779, %v780
      %v782 = vrot.slane %v743, 5
      %v783 = vrot.slane %v782, 4
      %v784 = vrot.slane %v623, 5
      %v785 = vsel %vm385, %v783, %v784
      %v786 = vrot.slane %v744, 5
      %v787 = vrot.slane %v786, 4
      %v788 = vrot.slane %v624, 5
      %v789 = vsel %vm385, %v787, %v788
      %v790 = vrot.slane %v745, 5
      %v791 = vrot.slane %v790, 4
      %v792 = vrot.slane %v625, 5
      %v793 = vsel %vm385, %v791, %v792
      %v802 = vunpack.c.l.b16 %v228
      %v803 = vunpack.c.l.b16 %v229
      %v804 = vunpack.c.l.b16 %v230
      %v805 = vunpack.c.l.b16 %v231
      %v806 = vunpack.c.l.b16 %v232
      %v807 = vunpack.c.l.b16 %v233
      %v808 = vunpack.c.l.b16 %v234
      %v809 = vunpack.c.l.b16 %v235
      %v810 = vpack.c.b16 %v803, %v802
      %v811 = vpack.c.b16 %v805, %v804
      %v812 = vpack.c.b16 %v807, %v806
      %v813 = vpack.c.b16 %v809, %v808
      %v814 = vunpack.c.l.b16 %v260
      %v815 = vunpack.c.l.b16 %v274
      %v816 = vunpack.c.l.b16 %v288
      %v817 = vunpack.c.l.b16 %v302
      %v818 = vunpack.c.l.b16 %v316
      %v819 = vunpack.c.l.b16 %v330
      %v820 = vunpack.c.l.b16 %v344
      %v821 = vunpack.c.l.b16 %v358
      %v822 = vpack.c.b16 %v815, %v814
      %v823 = vpack.c.b16 %v817, %v816
      %v824 = vpack.c.b16 %v819, %v818
      %v825 = vpack.c.b16 %v821, %v820
      %826 = vrot.lane.b32.xlu0 %v822, 16
      %v827 = vpop.permute.xlu0 %826
      %828 = vrot.lane.b32.xlu0 %v823, 16
      %v829 = vpop.permute.xlu0 %828
      %830 = vrot.lane.b32.xlu0 %v824, 16
      %v831 = vpop.permute.xlu0 %830
      %832 = vrot.lane.b32.xlu0 %v825, 16
      %v833 = vpop.permute.xlu0 %832
      %v834 = vunpack.c.l.b16 %v389
      %v835 = vunpack.c.l.b16 %v393
      %v836 = vunpack.c.l.b16 %v397
      %v837 = vunpack.c.l.b16 %v401
      %v838 = vunpack.c.l.b16 %v405
      %v839 = vunpack.c.l.b16 %v409
      %v840 = vunpack.c.l.b16 %v413
      %v841 = vunpack.c.l.b16 %v417
      %v842 = vpack.c.b16 %v835, %v834
      %v843 = vpack.c.b16 %v837, %v836
      %v844 = vpack.c.b16 %v839, %v838
      %v845 = vpack.c.b16 %v841, %v840
      %846 = vrot.lane.b32.xlu0 %v842, 32
      %v847 = vpop.permute.xlu0 %846
      %848 = vrot.lane.b32.xlu0 %v843, 32
      %v849 = vpop.permute.xlu0 %848
      %850 = vrot.lane.b32.xlu0 %v844, 32
      %v851 = vpop.permute.xlu0 %850
      %852 = vrot.lane.b32.xlu0 %v845, 32
      %v853 = vpop.permute.xlu0 %852
      %v862 = vunpack.c.l.b16 %v422
      %v863 = vunpack.c.l.b16 %v423
      %v864 = vunpack.c.l.b16 %v424
      %v865 = vunpack.c.l.b16 %v425
      %v866 = vunpack.c.l.b16 %v426
      %v867 = vunpack.c.l.b16 %v427
      %v868 = vunpack.c.l.b16 %v428
      %v869 = vunpack.c.l.b16 %v429
      %v870 = vpack.c.b16 %v863, %v862
      %v871 = vpack.c.b16 %v865, %v864
      %v872 = vpack.c.b16 %v867, %v866
      %v873 = vpack.c.b16 %v869, %v868
      %874 = vrot.lane.b32.xlu0 %v870, 48
      %v875 = vpop.permute.xlu0 %874
      %876 = vrot.lane.b32.xlu0 %v871, 48
      %v877 = vpop.permute.xlu0 %876
      %878 = vrot.lane.b32.xlu0 %v872, 48
      %v879 = vpop.permute.xlu0 %878
      %880 = vrot.lane.b32.xlu0 %v873, 48
      %v881 = vpop.permute.xlu0 %880
      %v882 = vunpack.c.l.b16 %v451
      %v883 = vunpack.c.l.b16 %v465
      %v884 = vunpack.c.l.b16 %v479
      %v885 = vunpack.c.l.b16 %v493
      %v886 = vunpack.c.l.b16 %v507
      %v887 = vunpack.c.l.b16 %v521
      %v888 = vunpack.c.l.b16 %v535
      %v889 = vunpack.c.l.b16 %v549
      %v890 = vpack.c.b16 %v883, %v882
      %v891 = vpack.c.b16 %v885, %v884
      %v892 = vpack.c.b16 %v887, %v886
      %v893 = vpack.c.b16 %v889, %v888
      %894 = vrot.lane.b32.xlu0 %v890, 64
      %v895 = vpop.permute.xlu0 %894
      %896 = vrot.lane.b32.xlu0 %v891, 64
      %v897 = vpop.permute.xlu0 %896
      %898 = vrot.lane.b32.xlu0 %v892, 64
      %v899 = vpop.permute.xlu0 %898
      %900 = vrot.lane.b32.xlu0 %v893, 64
      %v901 = vpop.permute.xlu0 %900
      %v902 = vunpack.c.l.b16 %v577
      %v903 = vunpack.c.l.b16 %v581
      %v904 = vunpack.c.l.b16 %v585
      %v905 = vunpack.c.l.b16 %v589
      %v906 = vunpack.c.l.b16 %v593
      %v907 = vunpack.c.l.b16 %v597
      %v908 = vunpack.c.l.b16 %v601
      %v909 = vunpack.c.l.b16 %v605
      %v910 = vpack.c.b16 %v903, %v902
      %v911 = vpack.c.b16 %v905, %v904
      %v912 = vpack.c.b16 %v907, %v906
      %v913 = vpack.c.b16 %v909, %v908
      %914 = vrot.lane.b32.xlu0 %v910, 80
      %v915 = vpop.permute.xlu0 %914
      %916 = vrot.lane.b32.xlu0 %v911, 80
      %v917 = vpop.permute.xlu0 %916
      %918 = vrot.lane.b32.xlu0 %v912, 80
      %v919 = vpop.permute.xlu0 %918
      %920 = vrot.lane.b32.xlu0 %v913, 80
      %v921 = vpop.permute.xlu0 %920
      %v930 = vunpack.c.l.b16 %v610
      %v931 = vunpack.c.l.b16 %v611
      %v932 = vunpack.c.l.b16 %v612
      %v933 = vunpack.c.l.b16 %v613
      %v934 = vunpack.c.l.b16 %v614
      %v935 = vunpack.c.l.b16 %v615
      %v936 = vunpack.c.l.b16 %v616
      %v937 = vunpack.c.l.b16 %v617
      %v938 = vpack.c.b16 %v931, %v930
      %v939 = vpack.c.b16 %v933, %v932
      %v940 = vpack.c.b16 %v935, %v934
      %v941 = vpack.c.b16 %v937, %v936
      %942 = vrot.lane.b32.xlu0 %v938, 96
      %v943 = vpop.permute.xlu0 %942
      %944 = vrot.lane.b32.xlu0 %v939, 96
      %v945 = vpop.permute.xlu0 %944
      %946 = vrot.lane.b32.xlu0 %v940, 96
      %v947 = vpop.permute.xlu0 %946
      %948 = vrot.lane.b32.xlu0 %v941, 96
      %v949 = vpop.permute.xlu0 %948
      %v950 = vunpack.c.l.b16 %v639
      %v951 = vunpack.c.l.b16 %v653
      %v952 = vunpack.c.l.b16 %v667
      %v953 = vunpack.c.l.b16 %v681
      %v954 = vunpack.c.l.b16 %v695
      %v955 = vunpack.c.l.b16 %v709
      %v956 = vunpack.c.l.b16 %v723
      %v957 = vunpack.c.l.b16 %v737
      %v958 = vpack.c.b16 %v951, %v950
      %v959 = vpack.c.b16 %v953, %v952
      %v960 = vpack.c.b16 %v955, %v954
      %v961 = vpack.c.b16 %v957, %v956
      %962 = vrot.lane.b32.xlu0 %v958, 112
      %v963 = vpop.permute.xlu0 %962
      %964 = vrot.lane.b32.xlu0 %v959, 112
      %v965 = vpop.permute.xlu0 %964
      %966 = vrot.lane.b32.xlu0 %v960, 112
      %v967 = vpop.permute.xlu0 %966
      %968 = vrot.lane.b32.xlu0 %v961, 112
      %v969 = vpop.permute.xlu0 %968
      %v970 = vunpack.c.l.b16 %v765
      %v971 = vunpack.c.l.b16 %v769
      %v972 = vunpack.c.l.b16 %v773
      %v973 = vunpack.c.l.b16 %v777
      %v974 = vunpack.c.l.b16 %v781
      %v975 = vunpack.c.l.b16 %v785
      %v976 = vunpack.c.l.b16 %v789
      %v977 = vunpack.c.l.b16 %v793
      %v978 = vpack.c.b16 %v971, %v970
      %v979 = vpack.c.b16 %v973, %v972
      %v980 = vpack.c.b16 %v975, %v974
      %v981 = vpack.c.b16 %v977, %v976
      %vm982 = vcmask 130048
      %v985 = vsel %vm982, %v810, %v827
      %v988 = vsel %vm982, %v811, %v829
      %v991 = vsel %vm982, %v812, %v831
      %v994 = vsel %vm982, %v813, %v833
      %vm995 = vcmask 261120
      %v997 = vsel %vm995, %v985, %v847
      %v999 = vsel %vm995, %v988, %v849
      %v1001 = vsel %vm995, %v991, %v851
      %v1003 = vsel %vm995, %v994, %v853
      %vm1004 = vcmask 392192
      %v1006 = vsel %vm1004, %v997, %v875
      %v1008 = vsel %vm1004, %v999, %v877
      %v1010 = vsel %vm1004, %v1001, %v879
      %v1012 = vsel %vm1004, %v1003, %v881
      %vm1013 = vcmask 523264
      %v1015 = vsel %vm1013, %v1006, %v895
      %v1017 = vsel %vm1013, %v1008, %v897
      %v1019 = vsel %vm1013, %v1010, %v899
      %v1021 = vsel %vm1013, %v1012, %v901
      %vm1022 = vcmask 654336
      %v1024 = vsel %vm1022, %v1015, %v915
      %v1026 = vsel %vm1022, %v1017, %v917
      %v1028 = vsel %vm1022, %v1019, %v919
      %v1030 = vsel %vm1022, %v1021, %v921
      %vm1031 = vcmask 785408
      %v1033 = vsel %vm1031, %v1024, %v943
      %v1035 = vsel %vm1031, %v1026, %v945
      %v1037 = vsel %vm1031, %v1028, %v947
      %v1039 = vsel %vm1031, %v1030, %v949
      %vm1040 = vcmask 916480
      %v1042 = vsel %vm1040, %v1033, %v963
      %v1045 = vsel %vm1040, %v1035, %v965
      %v1048 = vsel %vm1040, %v1037, %v967
      %v1051 = vsel %vm1040, %v1039, %v969
      %v1053 = vld [vmem:[%s1] sm:$0xf]
      %v1054 = vld [vmem:[%s1 + $0x4] sm:$0xf]
      %v1055 = vld [vmem:[%s1 + $0x8] sm:$0xf]
      %v1056 = vld [vmem:[%s1 + $0xc] sm:$0xf]
      %v1057 = vld [vmem:[%s1 + $0x10] sm:$0xf]
      %v1058 = vld [vmem:[%s1 + $0x14] sm:$0xf]
      %v1059 = vld [vmem:[%s1 + $0x18] sm:$0xf]
      %v1060 = vld [vmem:[%s1 + $0x1c] sm:$0xf]
      %v1061 = vld [vmem:[%s1 + $0x20] sm:$0xf]
      %v1062 = vld [vmem:[%s1 + $0x24] sm:$0xf]
      %v1063 = vld [vmem:[%s1 + $0x28] sm:$0xf]
      %v1064 = vld [vmem:[%s1 + $0x2c] sm:$0xf]
      %v1065 = vld [vmem:[%s1 + $0x30] sm:$0xf]
      %v1066 = vld [vmem:[%s1 + $0x34] sm:$0xf]
      %v1067 = vld [vmem:[%s1 + $0x38] sm:$0xf]
      %v1068 = vld [vmem:[%s1 + $0x3c] sm:$0xf]
      %v1069 = vld [vmem:[%s1 + $0x40] sm:$0xf]
      %v1070 = vld [vmem:[%s1 + $0x44] sm:$0xf]
      %v1071 = vld [vmem:[%s3] sm:$0x1]
      %v1073 = vlaneseq
      %v1074 = vshrl.u32 %v1073, 7
      %v1075 = vsub.s32 0, %v1074
      %v1076 = vrot.slane %v1071, %v1075
      %v1096 = vunpack.c.l.b16 %v1053
      %v1097 = vunpack.c.l.b16 %v1054
      %v1098 = vunpack.c.l.b16 %v1055
      %v1099 = vunpack.c.l.b16 %v1056
      %v1100 = vunpack.c.l.b16 %v1057
      %v1101 = vunpack.c.l.b16 %v1058
      %v1102 = vunpack.c.l.b16 %v1059
      %v1103 = vunpack.c.l.b16 %v1060
      %v1104 = vunpack.c.l.b16 %v1061
      %v1105 = vunpack.c.l.b16 %v1062
      %v1106 = vunpack.c.l.b16 %v1063
      %v1107 = vunpack.c.l.b16 %v1064
      %v1108 = vunpack.c.l.b16 %v1065
      %v1109 = vunpack.c.l.b16 %v1066
      %v1110 = vunpack.c.l.b16 %v1067
      %v1111 = vunpack.c.l.b16 %v1068
      %v1112 = vunpack.c.l.b16 %v1069
      %v1113 = vunpack.c.l.b16 %v1070
      %v1114 = vpack.c.b16 %v1097, %v1096
      %v1115 = vpack.c.b16 %v1099, %v1098
      %v1116 = vpack.c.b16 %v1101, %v1100
      %v1117 = vpack.c.b16 %v1103, %v1102
      %v1118 = vpack.c.b16 %v1105, %v1104
      %v1119 = vpack.c.b16 %v1107, %v1106
      %v1120 = vpack.c.b16 %v1109, %v1108
      %v1121 = vpack.c.b16 %v1111, %v1110
      %v1122 = vpack.c.b16 %v1113, %v1112
      %v1133 = vsel %vm982, %v978, 0
      %v1136 = vsel %vm982, %v979, 0
      %v1139 = vsel %vm982, %v980, 0
      %v1142 = vsel %vm982, %v981, 0
      %1144 = vmatprep.subr.bf16.mxu0 0
      %1145 = vmatpush1.bf16.msra.mxu0 %v1114
      %1146 = vmatprep.subr.bf16.mxu0 0
      %1147 = vmatpush1.bf16.msra.mxu0 %v1115
      %1148 = vmatprep.subr.bf16.mxu0 0
      %1149 = vmatpush1.bf16.msra.mxu0 %v1116
      %1150 = vmatprep.subr.bf16.mxu0 0
      %1151 = vmatpush1.bf16.msra.mxu0 %v1117
      %1152 = vmatprep.subr.bf16.mxu0 0
      %1153 = vmatpush1.bf16.msra.mxu0 %v1118
      %1154 = vmatprep.subr.bf16.mxu0 0
      %1155 = vmatpush1.bf16.msra.mxu0 %v1119
      %1156 = vmatprep.subr.bf16.mxu0 0
      %1157 = vmatpush1.bf16.msra.mxu0 %v1120
      %1158 = vmatprep.subr.bf16.mxu0 0
      %1159 = vmatpush1.bf16.msra.mxu0 %v1121
      %1160 = vmatprep.subr.bf16.mxu0 0
      %1161 = vmatpush1.bf16.msra.mxu0 %v1122
      %1162 = vmatprep.subr.bf16.mxu0 0
      %1163 = vmatpush1.bf16.msra.mxu0 0
      %1164 = vmatprep.subr.bf16.mxu0 0
      %1165 = vmatpush1.bf16.msra.mxu0 0
      %1166 = vmatprep.subr.bf16.mxu0 0
      %1167 = vmatpush1.bf16.msra.mxu0 0
      %1168 = vmatprep.subr.bf16.mxu0 0
      %1169 = vmatpush1.bf16.msra.mxu0 0
      %1170 = vmatprep.subr.bf16.mxu0 0
      %1171 = vmatpush1.bf16.msra.mxu0 0
      %1172 = vmatprep.subr.bf16.mxu0 0
      %1173 = vmatpush1.bf16.msra.mxu0 0
      %1174 = vmatprep.subr.bf16.mxu0 0
      %1175 = vmatpush1.bf16.msra.mxu0 0
      %1176 = vmatprep.mubr.bf16.mxu0 %v1133
      %1177 = vmatmul.mubr.bf16.gmra.mrb[0].mxu0 %v1042
      %v1178 = vpop.f32.mrb[0].mxu0
      %v1179 = vadd.f32 %v1076, %v1178
      %v1180 = vpop.f32.mrb[0].mxu0
      %v1181 = vpop.f32.mrb[0].mxu0
      %v1182 = vadd.f32 %v1076, %v1181
      %v1183 = vpop.f32.mrb[0].mxu0
      %1184 = vmatprep.mubr.bf16.mxu0 %v1136
      %1185 = vmatmul.mubr.bf16.gmra.mrb[0].mxu0 %v1045
      %v1186 = vpop.f32.mrb[0].mxu0
      %v1187 = vadd.f32 %v1076, %v1186
      %v1188 = vpop.f32.mrb[0].mxu0
      %v1189 = vpop.f32.mrb[0].mxu0
      %v1190 = vadd.f32 %v1076, %v1189
      %v1191 = vpop.f32.mrb[0].mxu0
      %1192 = vmatprep.mubr.bf16.mxu0 %v1139
      %1193 = vmatmul.mubr.bf16.gmra.mrb[0].mxu0 %v1048
      %v1194 = vpop.f32.mrb[0].mxu0
      %v1195 = vadd.f32 %v1076, %v1194
      %v1196 = vpop.f32.mrb[0].mxu0
      %v1197 = vpop.f32.mrb[0].mxu0
      %v1198 = vadd.f32 %v1076, %v1197
      %v1199 = vpop.f32.mrb[0].mxu0
      %1200 = vmatprep.mubr.bf16.mxu0 %v1142
      %1201 = vmatmul.mubr.bf16.gmra.mrb[0].mxu0 %v1051
      %v1202 = vpop.f32.mrb[0].mxu0
      %v1203 = vadd.f32 %v1076, %v1202
      %v1204 = vpop.f32.mrb[0].mxu0
      %v1205 = vpop.f32.mrb[0].mxu0
      %v1206 = vadd.f32 %v1076, %v1205
      %v1207 = vpop.f32.mrb[0].mxu0
      %1208 = vdwg.mxu0
      %v1209 = vmax.f32 %v1179, 0.0
      %v1210 = vmax.f32 %v1182, 0.0
      %v1211 = vmax.f32 %v1187, 0.0
      %v1212 = vmax.f32 %v1190, 0.0
      %v1213 = vmax.f32 %v1195, 0.0
      %v1214 = vmax.f32 %v1198, 0.0
      %v1215 = vmax.f32 %v1203, 0.0
      %v1216 = vmax.f32 %v1206, 0.0
      %v1217 = vpack.c.bf16 %v1209, %v1209
      %v1218 = vpack.c.bf16 %v1210, %v1210
      %v1219 = vpack.c.bf16 %v1211, %v1211
      %v1220 = vpack.c.bf16 %v1212, %v1212
      %v1221 = vpack.c.bf16 %v1213, %v1213
      %v1222 = vpack.c.bf16 %v1214, %v1214
      %v1223 = vpack.c.bf16 %v1215, %v1215
      %v1224 = vpack.c.bf16 %v1216, %v1216
      %vm1225 = vcmask 257024
      %1226 = vst.msk [vmem:[%s221] sm:$0xf] %vm1225, %v1217
      %1227 = vst.msk [vmem:[%s221 + $0x8] sm:$0xf] %vm1225, %v1218
      %1228 = vst.msk [vmem:[%s221 + $0x10] sm:$0xf] %vm1225, %v1219
      %1229 = vst.msk [vmem:[%s221 + $0x18] sm:$0xf] %vm1225, %v1220
      %1230 = vst.msk [vmem:[%s221 + $0x20] sm:$0xf] %vm1225, %v1221
      %1231 = vst.msk [vmem:[%s221 + $0x28] sm:$0xf] %vm1225, %v1222
      %1232 = vst.msk [vmem:[%s221 + $0x30] sm:$0xf] %vm1225, %v1223
      %1233 = vst.msk [vmem:[%s221 + $0x38] sm:$0xf] %vm1225, %v1224
      %v1234 = vld [vmem:[%s421] sm:$0xf]
      %v1235 = vld [vmem:[%s421 + $0x8] sm:$0xf]
      %v1236 = vld [vmem:[%s421 + $0x10] sm:$0xf]
      %v1237 = vld [vmem:[%s421 + $0x18] sm:$0xf]
      %v1238 = vld [vmem:[%s421 + $0x20] sm:$0xf]
      %v1239 = vld [vmem:[%s421 + $0x28] sm:$0xf]
      %v1240 = vld [vmem:[%s421 + $0x30] sm:$0xf]
      %v1241 = vld [vmem:[%s421 + $0x38] sm:$0xf]
      %v1242 = vld [vmem:[%s421 + $0x4] sm:$0x1]
      %v1243 = vld [vmem:[%s421 + $0xc] sm:$0x1]
      %v1244 = vld [vmem:[%s421 + $0x14] sm:$0x1]
      %v1245 = vld [vmem:[%s421 + $0x1c] sm:$0x1]
      %v1246 = vld [vmem:[%s421 + $0x24] sm:$0x1]
      %v1247 = vld [vmem:[%s421 + $0x2c] sm:$0x1]
      %v1248 = vld [vmem:[%s421 + $0x34] sm:$0x1]
      %v1249 = vld [vmem:[%s421 + $0x3c] sm:$0x1]
      %v1251 = vshrl.u32 %v1234, 16
      %v1253 = vrot.slane %v1251, 4
      %v1254 = vshll.u32 %v1234, 16
      %v1256 = vrot.slane %v1254, 5
      %v1257 = vor.u32 %v1253, %v1256
      %v1258 = vrot.slane %v1257, 4
      %v1260 = vshll.u32 %v1242, 16
      %v1262 = vrot.slane %v1260, 5
      %v1263 = vsel %vm246, %v1258, %v1262
      %v1265 = vshrl.u32 %v1235, 16
      %v1267 = vrot.slane %v1265, 4
      %v1268 = vshll.u32 %v1235, 16
      %v1270 = vrot.slane %v1268, 5
      %v1271 = vor.u32 %v1267, %v1270
      %v1272 = vrot.slane %v1271, 4
      %v1274 = vshll.u32 %v1243, 16
      %v1276 = vrot.slane %v1274, 5
      %v1277 = vsel %vm246, %v1272, %v1276
      %v1279 = vshrl.u32 %v1236, 16
      %v1281 = vrot.slane %v1279, 4
      %v1282 = vshll.u32 %v1236, 16
      %v1284 = vrot.slane %v1282, 5
      %v1285 = vor.u32 %v1281, %v1284
      %v1286 = vrot.slane %v1285, 4
      %v1288 = vshll.u32 %v1244, 16
      %v1290 = vrot.slane %v1288, 5
      %v1291 = vsel %vm246, %v1286, %v1290
      %v1293 = vshrl.u32 %v1237, 16
      %v1295 = vrot.slane %v1293, 4
      %v1296 = vshll.u32 %v1237, 16
      %v1298 = vrot.slane %v1296, 5
      %v1299 = vor.u32 %v1295, %v1298
      %v1300 = vrot.slane %v1299, 4
      %v1302 = vshll.u32 %v1245, 16
      %v1304 = vrot.slane %v1302, 5
      %v1305 = vsel %vm246, %v1300, %v1304
      %v1307 = vshrl.u32 %v1238, 16
      %v1309 = vrot.slane %v1307, 4
      %v1310 = vshll.u32 %v1238, 16
      %v1312 = vrot.slane %v1310, 5
      %v1313 = vor.u32 %v1309, %v1312
      %v1314 = vrot.slane %v1313, 4
      %v1316 = vshll.u32 %v1246, 16
      %v1318 = vrot.slane %v1316, 5
      %v1319 = vsel %vm246, %v1314, %v1318
      %v1321 = vshrl.u32 %v1239, 16
      %v1323 = vrot.slane %v1321, 4
      %v1324 = vshll.u32 %v1239, 16
      %v1326 = vrot.slane %v1324, 5
      %v1327 = vor.u32 %v1323, %v1326
      %v1328 = vrot.slane %v1327, 4
      %v1330 = vshll.u32 %v1247, 16
      %v1332 = vrot.slane %v1330, 5
      %v1333 = vsel %vm246, %v1328, %v1332
      %v1335 = vshrl.u32 %v1240, 16
      %v1337 = vrot.slane %v1335, 4
      %v1338 = vshll.u32 %v1240, 16
      %v1340 = vrot.slane %v1338, 5
      %v1341 = vor.u32 %v1337, %v1340
      %v1342 = vrot.slane %v1341, 4
      %v1344 = vshll.u32 %v1248, 16
      %v1346 = vrot.slane %v1344, 5
      %v1347 = vsel %vm246, %v1342, %v1346
      %v1349 = vshrl.u32 %v1241, 16
      %v1351 = vrot.slane %v1349, 4
      %v1352 = vshll.u32 %v1241, 16
      %v1354 = vrot.slane %v1352, 5
      %v1355 = vor.u32 %v1351, %v1354
      %v1356 = vrot.slane %v1355, 4
      %v1358 = vshll.u32 %v1249, 16
      %v1360 = vrot.slane %v1358, 5
      %v1361 = vsel %vm246, %v1356, %v1360
      %v1362 = vld [vmem:[%s421] sm:$0xe]
      %v1363 = vld [vmem:[%s421 + $0x8] sm:$0xe]
      %v1364 = vld [vmem:[%s421 + $0x10] sm:$0xe]
      %v1365 = vld [vmem:[%s421 + $0x18] sm:$0xe]
      %v1366 = vld [vmem:[%s421 + $0x20] sm:$0xe]
      %v1367 = vld [vmem:[%s421 + $0x28] sm:$0xe]
      %v1368 = vld [vmem:[%s421 + $0x30] sm:$0xe]
      %v1369 = vld [vmem:[%s421 + $0x38] sm:$0xe]
      %v1386 = vrot.slane %v1362, 5
      %v1387 = vrot.slane %v1386, 4
      %v1388 = vrot.slane %v1242, 5
      %v1389 = vsel %vm385, %v1387, %v1388
      %v1390 = vrot.slane %v1363, 5
      %v1391 = vrot.slane %v1390, 4
      %v1392 = vrot.slane %v1243, 5
      %v1393 = vsel %vm385, %v1391, %v1392
      %v1394 = vrot.slane %v1364, 5
      %v1395 = vrot.slane %v1394, 4
      %v1396 = vrot.slane %v1244, 5
      %v1397 = vsel %vm385, %v1395, %v1396
      %v1398 = vrot.slane %v1365, 5
      %v1399 = vrot.slane %v1398, 4
      %v1400 = vrot.slane %v1245, 5
      %v1401 = vsel %vm385, %v1399, %v1400
      %v1402 = vrot.slane %v1366, 5
      %v1403 = vrot.slane %v1402, 4
      %v1404 = vrot.slane %v1246, 5
      %v1405 = vsel %vm385, %v1403, %v1404
      %v1406 = vrot.slane %v1367, 5
      %v1407 = vrot.slane %v1406, 4
      %v1408 = vrot.slane %v1247, 5
      %v1409 = vsel %vm385, %v1407, %v1408
      %v1410 = vrot.slane %v1368, 5
      %v1411 = vrot.slane %v1410, 4
      %v1412 = vrot.slane %v1248, 5
      %v1413 = vsel %vm385, %v1411, %v1412
      %v1414 = vrot.slane %v1369, 5
      %v1415 = vrot.slane %v1414, 4
      %v1416 = vrot.slane %v1249, 5
      %v1417 = vsel %vm385, %v1415, %v1416
      %v1418 = vld [vmem:[%s609] sm:$0xf]
      %v1419 = vld [vmem:[%s609 + $0x8] sm:$0xf]
      %v1420 = vld [vmem:[%s609 + $0x10] sm:$0xf]
      %v1421 = vld [vmem:[%s609 + $0x18] sm:$0xf]
      %v1422 = vld [vmem:[%s609 + $0x20] sm:$0xf]
      %v1423 = vld [vmem:[%s609 + $0x28] sm:$0xf]
      %v1424 = vld [vmem:[%s609 + $0x30] sm:$0xf]
      %v1425 = vld [vmem:[%s609 + $0x38] sm:$0xf]
      %v1426 = vld [vmem:[%s609 + $0x4] sm:$0x1]
      %v1427 = vld [vmem:[%s609 + $0xc] sm:$0x1]
      %v1428 = vld [vmem:[%s609 + $0x14] sm:$0x1]
      %v1429 = vld [vmem:[%s609 + $0x1c] sm:$0x1]
      %v1430 = vld [vmem:[%s609 + $0x24] sm:$0x1]
      %v1431 = vld [vmem:[%s609 + $0x2c] sm:$0x1]
      %v1432 = vld [vmem:[%s609 + $0x34] sm:$0x1]
      %v1433 = vld [vmem:[%s609 + $0x3c] sm:$0x1]
      %v1435 = vshrl.u32 %v1418, 16
      %v1437 = vrot.slane %v1435, 4
      %v1438 = vshll.u32 %v1418, 16
      %v1440 = vrot.slane %v1438, 5
      %v1441 = vor.u32 %v1437, %v1440
      %v1442 = vrot.slane %v1441, 4
      %v1444 = vshll.u32 %v1426, 16
      %v1446 = vrot.slane %v1444, 5
      %v1447 = vsel %vm246, %v1442, %v1446
      %v1449 = vshrl.u32 %v1419, 16
      %v1451 = vrot.slane %v1449, 4
      %v1452 = vshll.u32 %v1419, 16
      %v1454 = vrot.slane %v1452, 5
      %v1455 = vor.u32 %v1451, %v1454
      %v1456 = vrot.slane %v1455, 4
      %v1458 = vshll.u32 %v1427, 16
      %v1460 = vrot.slane %v1458, 5
      %v1461 = vsel %vm246, %v1456, %v1460
      %v1463 = vshrl.u32 %v1420, 16
      %v1465 = vrot.slane %v1463, 4
      %v1466 = vshll.u32 %v1420, 16
      %v1468 = vrot.slane %v1466, 5
      %v1469 = vor.u32 %v1465, %v1468
      %v1470 = vrot.slane %v1469, 4
      %v1472 = vshll.u32 %v1428, 16
      %v1474 = vrot.slane %v1472, 5
      %v1475 = vsel %vm246, %v1470, %v1474
      %v1477 = vshrl.u32 %v1421, 16
      %v1479 = vrot.slane %v1477, 4
      %v1480 = vshll.u32 %v1421, 16
      %v1482 = vrot.slane %v1480, 5
      %v1483 = vor.u32 %v1479, %v1482
      %v1484 = vrot.slane %v1483, 4
      %v1486 = vshll.u32 %v1429, 16
      %v1488 = vrot.slane %v1486, 5
      %v1489 = vsel %vm246, %v1484, %v1488
      %v1491 = vshrl.u32 %v1422, 16
      %v1493 = vrot.slane %v1491, 4
      %v1494 = vshll.u32 %v1422, 16
      %v1496 = vrot.slane %v1494, 5
      %v1497 = vor.u32 %v1493, %v1496
      %v1498 = vrot.slane %v1497, 4
      %v1500 = vshll.u32 %v1430, 16
      %v1502 = vrot.slane %v1500, 5
      %v1503 = vsel %vm246, %v1498, %v1502
      %v1505 = vshrl.u32 %v1423, 16
      %v1507 = vrot.slane %v1505, 4
      %v1508 = vshll.u32 %v1423, 16
      %v1510 = vrot.slane %v1508, 5
      %v1511 = vor.u32 %v1507, %v1510
      %v1512 = vrot.slane %v1511, 4
      %v1514 = vshll.u32 %v1431, 16
      %v1516 = vrot.slane %v1514, 5
      %v1517 = vsel %vm246, %v1512, %v1516
      %v1519 = vshrl.u32 %v1424, 16
      %v1521 = vrot.slane %v1519, 4
      %v1522 = vshll.u32 %v1424, 16
      %v1524 = vrot.slane %v1522, 5
      %v1525 = vor.u32 %v1521, %v1524
      %v1526 = vrot.slane %v1525, 4
      %v1528 = vshll.u32 %v1432, 16
      %v1530 = vrot.slane %v1528, 5
      %v1531 = vsel %vm246, %v1526, %v1530
      %v1533 = vshrl.u32 %v1425, 16
      %v1535 = vrot.slane %v1533, 4
      %v1536 = vshll.u32 %v1425, 16
      %v1538 = vrot.slane %v1536, 5
      %v1539 = vor.u32 %v1535, %v1538
      %v1540 = vrot.slane %v1539, 4
      %v1542 = vshll.u32 %v1433, 16
      %v1544 = vrot.slane %v1542, 5
      %v1545 = vsel %vm246, %v1540, %v1544
      %v1546 = vld [vmem:[%s609] sm:$0xe]
      %v1547 = vld [vmem:[%s609 + $0x8] sm:$0xe]
      %v1548 = vld [vmem:[%s609 + $0x10] sm:$0xe]
      %v1549 = vld [vmem:[%s609 + $0x18] sm:$0xe]
      %v1550 = vld [vmem:[%s609 + $0x20] sm:$0xe]
      %v1551 = vld [vmem:[%s609 + $0x28] sm:$0xe]
      %v1552 = vld [vmem:[%s609 + $0x30] sm:$0xe]
      %v1553 = vld [vmem:[%s609 + $0x38] sm:$0xe]
      %v1570 = vrot.slane %v1546, 5
      %v1571 = vrot.slane %v1570, 4
      %v1572 = vrot.slane %v1426, 5
      %v1573 = vsel %vm385, %v1571, %v1572
      %v1574 = vrot.slane %v1547, 5
      %v1575 = vrot.slane %v1574, 4
      %v1576 = vrot.slane %v1427, 5
      %v1577 = vsel %vm385, %v1575, %v1576
      %v1578 = vrot.slane %v1548, 5
      %v1579 = vrot.slane %v1578, 4
      %v1580 = vrot.slane %v1428, 5
      %v1581 = vsel %vm385, %v1579, %v1580
      %v1582 = vrot.slane %v1549, 5
      %v1583 = vrot.slane %v1582, 4
      %v1584 = vrot.slane %v1429, 5
      %v1585 = vsel %vm385, %v1583, %v1584
      %v1586 = vrot.slane %v1550, 5
      %v1587 = vrot.slane %v1586, 4
      %v1588 = vrot.slane %v1430, 5
      %v1589 = vsel %vm385, %v1587, %v1588
      %v1590 = vrot.slane %v1551, 5
      %v1591 = vrot.slane %v1590, 4
      %v1592 = vrot.slane %v1431, 5
      %v1593 = vsel %vm385, %v1591, %v1592
      %v1594 = vrot.slane %v1552, 5
      %v1595 = vrot.slane %v1594, 4
      %v1596 = vrot.slane %v1432, 5
      %v1597 = vsel %vm385, %v1595, %v1596
      %v1598 = vrot.slane %v1553, 5
      %v1599 = vrot.slane %v1598, 4
      %v1600 = vrot.slane %v1433, 5
      %v1601 = vsel %vm385, %v1599, %v1600
      %v1610 = vunpack.c.l.b16 %v1234
      %v1611 = vunpack.c.l.b16 %v1235
      %v1612 = vunpack.c.l.b16 %v1236
      %v1613 = vunpack.c.l.b16 %v1237
      %v1614 = vunpack.c.l.b16 %v1238
      %v1615 = vunpack.c.l.b16 %v1239
      %v1616 = vunpack.c.l.b16 %v1240
      %v1617 = vunpack.c.l.b16 %v1241
      %v1618 = vpack.c.b16 %v1611, %v1610
      %v1619 = vpack.c.b16 %v1613, %v1612
      %v1620 = vpack.c.b16 %v1615, %v1614
      %v1621 = vpack.c.b16 %v1617, %v1616
      %v1622 = vunpack.c.l.b16 %v1263
      %v1623 = vunpack.c.l.b16 %v1277
      %v1624 = vunpack.c.l.b16 %v1291
      %v1625 = vunpack.c.l.b16 %v1305
      %v1626 = vunpack.c.l.b16 %v1319
      %v1627 = vunpack.c.l.b16 %v1333
      %v1628 = vunpack.c.l.b16 %v1347
      %v1629 = vunpack.c.l.b16 %v1361
      %v1630 = vpack.c.b16 %v1623, %v1622
      %v1631 = vpack.c.b16 %v1625, %v1624
      %v1632 = vpack.c.b16 %v1627, %v1626
      %v1633 = vpack.c.b16 %v1629, %v1628
      %1634 = vrot.lane.b32.xlu0 %v1630, 16
      %v1635 = vpop.permute.xlu0 %1634
      %1636 = vrot.lane.b32.xlu0 %v1631, 16
      %v1637 = vpop.permute.xlu0 %1636
      %1638 = vrot.lane.b32.xlu0 %v1632, 16
      %v1639 = vpop.permute.xlu0 %1638
      %1640 = vrot.lane.b32.xlu0 %v1633, 16
      %v1641 = vpop.permute.xlu0 %1640
      %v1642 = vunpack.c.l.b16 %v1389
      %v1643 = vunpack.c.l.b16 %v1393
      %v1644 = vunpack.c.l.b16 %v1397
      %v1645 = vunpack.c.l.b16 %v1401
      %v1646 = vunpack.c.l.b16 %v1405
      %v1647 = vunpack.c.l.b16 %v1409
      %v1648 = vunpack.c.l.b16 %v1413
      %v1649 = vunpack.c.l.b16 %v1417
      %v1650 = vpack.c.b16 %v1643, %v1642
      %v1651 = vpack.c.b16 %v1645, %v1644
      %v1652 = vpack.c.b16 %v1647, %v1646
      %v1653 = vpack.c.b16 %v1649, %v1648
      %1654 = vrot.lane.b32.xlu0 %v1650, 32
      %v1655 = vpop.permute.xlu0 %1654
      %1656 = vrot.lane.b32.xlu0 %v1651, 32
      %v1657 = vpop.permute.xlu0 %1656
      %1658 = vrot.lane.b32.xlu0 %v1652, 32
      %v1659 = vpop.permute.xlu0 %1658
      %1660 = vrot.lane.b32.xlu0 %v1653, 32
      %v1661 = vpop.permute.xlu0 %1660
      %v1670 = vunpack.c.l.b16 %v1418
      %v1671 = vunpack.c.l.b16 %v1419
      %v1672 = vunpack.c.l.b16 %v1420
      %v1673 = vunpack.c.l.b16 %v1421
      %v1674 = vunpack.c.l.b16 %v1422
      %v1675 = vunpack.c.l.b16 %v1423
      %v1676 = vunpack.c.l.b16 %v1424
      %v1677 = vunpack.c.l.b16 %v1425
      %v1678 = vpack.c.b16 %v1671, %v1670
      %v1679 = vpack.c.b16 %v1673, %v1672
      %v1680 = vpack.c.b16 %v1675, %v1674
      %v1681 = vpack.c.b16 %v1677, %v1676
      %1682 = vrot.lane.b32.xlu0 %v1678, 48
      %v1683 = vpop.permute.xlu0 %1682
      %1684 = vrot.lane.b32.xlu0 %v1679, 48
      %v1685 = vpop.permute.xlu0 %1684
      %1686 = vrot.lane.b32.xlu0 %v1680, 48
      %v1687 = vpop.permute.xlu0 %1686
      %1688 = vrot.lane.b32.xlu0 %v1681, 48
      %v1689 = vpop.permute.xlu0 %1688
      %v1690 = vunpack.c.l.b16 %v1447
      %v1691 = vunpack.c.l.b16 %v1461
      %v1692 = vunpack.c.l.b16 %v1475
      %v1693 = vunpack.c.l.b16 %v1489
      %v1694 = vunpack.c.l.b16 %v1503
      %v1695 = vunpack.c.l.b16 %v1517
      %v1696 = vunpack.c.l.b16 %v1531
      %v1697 = vunpack.c.l.b16 %v1545
      %v1698 = vpack.c.b16 %v1691, %v1690
      %v1699 = vpack.c.b16 %v1693, %v1692
      %v1700 = vpack.c.b16 %v1695, %v1694
      %v1701 = vpack.c.b16 %v1697, %v1696
      %1702 = vrot.lane.b32.xlu0 %v1698, 64
      %v1703 = vpop.permute.xlu0 %1702
      %1704 = vrot.lane.b32.xlu0 %v1699, 64
      %v1705 = vpop.permute.xlu0 %1704
      %1706 = vrot.lane.b32.xlu0 %v1700, 64
      %v1707 = vpop.permute.xlu0 %1706
      %1708 = vrot.lane.b32.xlu0 %v1701, 64
      %v1709 = vpop.permute.xlu0 %1708
      %v1710 = vunpack.c.l.b16 %v1573
      %v1711 = vunpack.c.l.b16 %v1577
      %v1712 = vunpack.c.l.b16 %v1581
      %v1713 = vunpack.c.l.b16 %v1585
      %v1714 = vunpack.c.l.b16 %v1589
      %v1715 = vunpack.c.l.b16 %v1593
      %v1716 = vunpack.c.l.b16 %v1597
      %v1717 = vunpack.c.l.b16 %v1601
      %v1718 = vpack.c.b16 %v1711, %v1710
      %v1719 = vpack.c.b16 %v1713, %v1712
      %v1720 = vpack.c.b16 %v1715, %v1714
      %v1721 = vpack.c.b16 %v1717, %v1716
      %1722 = vrot.lane.b32.xlu0 %v1718, 80
      %v1723 = vpop.permute.xlu0 %1722
      %1724 = vrot.lane.b32.xlu0 %v1719, 80
      %v1725 = vpop.permute.xlu0 %1724
      %1726 = vrot.lane.b32.xlu0 %v1720, 80
      %v1727 = vpop.permute.xlu0 %1726
      %1728 = vrot.lane.b32.xlu0 %v1721, 80
      %v1729 = vpop.permute.xlu0 %1728
      %v1732 = vsel %vm982, %v1618, %v1635
      %v1735 = vsel %vm982, %v1619, %v1637
      %v1738 = vsel %vm982, %v1620, %v1639
      %v1741 = vsel %vm982, %v1621, %v1641
      %v1743 = vsel %vm995, %v1732, %v1655
      %v1745 = vsel %vm995, %v1735, %v1657
      %v1747 = vsel %vm995, %v1738, %v1659
      %v1749 = vsel %vm995, %v1741, %v1661
      %v1751 = vsel %vm1004, %v1743, %v1683
      %v1753 = vsel %vm1004, %v1745, %v1685
      %v1755 = vsel %vm1004, %v1747, %v1687
      %v1757 = vsel %vm1004, %v1749, %v1689
      %v1759 = vsel %vm1013, %v1751, %v1703
      %v1761 = vsel %vm1013, %v1753, %v1705
      %v1763 = vsel %vm1013, %v1755, %v1707
      %v1765 = vsel %vm1013, %v1757, %v1709
      %v1767 = vsel %vm1022, %v1759, %v1723
      %v1769 = vsel %vm1022, %v1761, %v1725
      %v1771 = vsel %vm1022, %v1763, %v1727
      %v1773 = vsel %vm1022, %v1765, %v1729
      %v1774 = vld [vmem:[%s2] sm:$0xf]
      %v1775 = vld [vmem:[%s2 + $0x4] sm:$0xf]
      %v1776 = vld [vmem:[%s2 + $0x8] sm:$0xf]
      %v1777 = vld [vmem:[%s2 + $0xc] sm:$0xf]
      %v1778 = vld [vmem:[%s2 + $0x10] sm:$0xf]
      %v1779 = vld [vmem:[%s2 + $0x14] sm:$0xf]
      %v1780 = vld [vmem:[%s2 + $0x18] sm:$0xf]
      %v1781 = vld [vmem:[%s2 + $0x1c] sm:$0xf]
      %v1782 = vld [vmem:[%s2 + $0x20] sm:$0xf]
      %v1783 = vld [vmem:[%s2 + $0x24] sm:$0xf]
      %v1784 = vld [vmem:[%s2 + $0x28] sm:$0xf]
      %v1785 = vld [vmem:[%s2 + $0x2c] sm:$0xf]
      %v1786 = vld [vmem:[%s3] sm:$0x1]
      %v1788 = vlaneseq
      %v1789 = vshrl.u32 %v1788, 7
      %v1790 = vsub.s32 0, %v1789
      %v1791 = vrot.slane %v1786, %v1790
      %v1805 = vunpack.c.l.b16 %v1774
      %v1806 = vunpack.c.l.b16 %v1775
      %v1807 = vunpack.c.l.b16 %v1776
      %v1808 = vunpack.c.l.b16 %v1777
      %v1809 = vunpack.c.l.b16 %v1778
      %v1810 = vunpack.c.l.b16 %v1779
      %v1811 = vunpack.c.l.b16 %v1780
      %v1812 = vunpack.c.l.b16 %v1781
      %v1813 = vunpack.c.l.b16 %v1782
      %v1814 = vunpack.c.l.b16 %v1783
      %v1815 = vunpack.c.l.b16 %v1784
      %v1816 = vunpack.c.l.b16 %v1785
      %v1817 = vpack.c.b16 %v1806, %v1805
      %v1818 = vpack.c.b16 %v1808, %v1807
      %v1819 = vpack.c.b16 %v1810, %v1809
      %v1820 = vpack.c.b16 %v1812, %v1811
      %v1821 = vpack.c.b16 %v1814, %v1813
      %v1822 = vpack.c.b16 %v1816, %v1815
      %v1829 = vsel %vm1031, %v1767, 0
      %v1831 = vsel %vm1031, %v1769, 0
      %v1833 = vsel %vm1031, %v1771, 0
      %v1835 = vsel %vm1031, %v1773, 0
      %1837 = vmatprep.subr.bf16.mxu0 0
      %1838 = vmatpush1.bf16.msra.mxu0 %v1817
      %1839 = vmatprep.subr.bf16.mxu0 0
      %1840 = vmatpush1.bf16.msra.mxu0 %v1818
      %1841 = vmatprep.subr.bf16.mxu0 0
      %1842 = vmatpush1.bf16.msra.mxu0 %v1819
      %1843 = vmatprep.subr.bf16.mxu0 0
      %1844 = vmatpush1.bf16.msra.mxu0 %v1820
      %1845 = vmatprep.subr.bf16.mxu0 0
      %1846 = vmatpush1.bf16.msra.mxu0 %v1821
      %1847 = vmatprep.subr.bf16.mxu0 0
      %1848 = vmatpush1.bf16.msra.mxu0 %v1822
      %1849 = vmatprep.subr.bf16.mxu0 0
      %1850 = vmatpush1.bf16.msra.mxu0 0
      %1851 = vmatprep.subr.bf16.mxu0 0
      %1852 = vmatpush1.bf16.msra.mxu0 0
      %1853 = vmatprep.subr.bf16.mxu0 0
      %1854 = vmatpush1.bf16.msra.mxu0 0
      %1855 = vmatprep.subr.bf16.mxu0 0
      %1856 = vmatpush1.bf16.msra.mxu0 0
      %1857 = vmatprep.subr.bf16.mxu0 0
      %1858 = vmatpush1.bf16.msra.mxu0 0
      %1859 = vmatprep.subr.bf16.mxu0 0
      %1860 = vmatpush1.bf16.msra.mxu0 0
      %1861 = vmatprep.subr.bf16.mxu0 0
      %1862 = vmatpush1.bf16.msra.mxu0 0
      %1863 = vmatprep.subr.bf16.mxu0 0
      %1864 = vmatpush1.bf16.msra.mxu0 0
      %1865 = vmatprep.subr.bf16.mxu0 0
      %1866 = vmatpush1.bf16.msra.mxu0 0
      %1867 = vmatprep.subr.bf16.mxu0 0
      %1868 = vmatpush1.bf16.msra.mxu0 0
      %1869 = vmatprep.mubr.bf16.mxu0 0
      %1870 = vmatmul.mubr.bf16.gmra.mrb[0].mxu0 %v1829
      %v1871 = vpop.f32.mrb[0].mxu0
      %v1872 = vadd.f32 %v1791, %v1871
      %v1873 = vpop.f32.mrb[0].mxu0
      %v1874 = vpop.f32.mrb[0].mxu0
      %v1875 = vadd.f32 %v1791, %v1874
      %v1876 = vpop.f32.mrb[0].mxu0
      %1877 = vmatprep.mubr.bf16.mxu0 0
      %1878 = vmatmul.mubr.bf16.gmra.mrb[0].mxu0 %v1831
      %v1879 = vpop.f32.mrb[0].mxu0
      %v1880 = vadd.f32 %v1791, %v1879
      %v1881 = vpop.f32.mrb[0].mxu0
      %v1882 = vpop.f32.mrb[0].mxu0
      %v1883 = vadd.f32 %v1791, %v1882
      %v1884 = vpop.f32.mrb[0].mxu0
      %1885 = vmatprep.mubr.bf16.mxu0 0
      %1886 = vmatmul.mubr.bf16.gmra.mrb[0].mxu0 %v1833
      %v1887 = vpop.f32.mrb[0].mxu0
      %v1888 = vadd.f32 %v1791, %v1887
      %v1889 = vpop.f32.mrb[0].mxu0
      %v1890 = vpop.f32.mrb[0].mxu0
      %v1891 = vadd.f32 %v1791, %v1890
      %v1892 = vpop.f32.mrb[0].mxu0
      %1893 = vmatprep.mubr.bf16.mxu0 0
      %1894 = vmatmul.mubr.bf16.gmra.mrb[0].mxu0 %v1835
      %v1895 = vpop.f32.mrb[0].mxu0
      %v1896 = vadd.f32 %v1791, %v1895
      %v1897 = vpop.f32.mrb[0].mxu0
      %v1898 = vpop.f32.mrb[0].mxu0
      %v1899 = vadd.f32 %v1791, %v1898
      %v1900 = vpop.f32.mrb[0].mxu0
      %1901 = vdwg.mxu0
      %v1902 = vmax.f32 %v1872, 0.0
      %v1903 = vmax.f32 %v1875, 0.0
      %v1904 = vmax.f32 %v1880, 0.0
      %v1905 = vmax.f32 %v1883, 0.0
      %v1906 = vmax.f32 %v1888, 0.0
      %v1907 = vmax.f32 %v1891, 0.0
      %v1908 = vmax.f32 %v1896, 0.0
      %v1909 = vmax.f32 %v1899, 0.0
      %v1910 = vpack.c.bf16 %v1902, %v1902
      %v1911 = vpack.c.bf16 %v1903, %v1903
      %v1912 = vpack.c.bf16 %v1904, %v1904
      %v1913 = vpack.c.bf16 %v1905, %v1905
      %v1914 = vpack.c.bf16 %v1906, %v1906
      %v1915 = vpack.c.bf16 %v1907, %v1907
      %v1916 = vpack.c.bf16 %v1908, %v1908
      %v1917 = vpack.c.bf16 %v1909, %v1909
      %s1918 = scalar_lea.vmem %s221, 4
      %1919 = vst.msk [vmem:[%s1918] sm:$0xf] %vm1225, %v1910
      %1920 = vst.msk [vmem:[%s1918 + $0x8] sm:$0xf] %vm1225, %v1911
      %1921 = vst.msk [vmem:[%s1918 + $0x10] sm:$0xf] %vm1225, %v1912
      %1922 = vst.msk [vmem:[%s1918 + $0x18] sm:$0xf] %vm1225, %v1913
      %1923 = vst.msk [vmem:[%s1918 + $0x20] sm:$0xf] %vm1225, %v1914
      %1924 = vst.msk [vmem:[%s1918 + $0x28] sm:$0xf] %vm1225, %v1915
      %1925 = vst.msk [vmem:[%s1918 + $0x30] sm:$0xf] %vm1225, %v1916
      %1926 = vst.msk [vmem:[%s1918 + $0x38] sm:$0xf] %vm1225, %v1917
      %s1927 = smul.u32 8, %s20
      %p1928 = scmp.lt.s32.totalorder %s19, 1
      %s1929 = scalar_select %p1928, %s19, 1
      %p1930 = scmp.lt.s32.totalorder %s1927, 7
      %s1931 = scalar_select %p1930, %s1927, 7
      %s1932 = smul.addr %s1931, 2
      %s1933 = smul.addr %s1929, 16
      %s1934 = sadd.s32 %s1932, %s1933
      %s1935 = smul.addr %s1934, 4
      %s1936 = scalar_lea.vmem %s4, %s1935
      // Predicated region
      $region37: #{a_call__.2} parent=35 // pred_check
        %p1937 = pneg %p136
      $region38: #{a_call__.2} parent=35 // pred_check_branch
        %1939 = sbr.rel (%p1937) target = $region40
      $region39: #{a_call__.2} parent=35 // pred_region
        %s1940 = smul.u32 8, %s20
      $region40: #{a_call__.2} parent=35 // pred_fallthru
        _
    $region36: #{a_call__.2} parent=5 // pred_fallthru
      _
    %p1941 = scmp.le.s32.totalorder 2, %s10
    // Predicated region
    $region41: #{a_call__.2} parent=5 // pred_check
      %p1942 = pneg %p1941
    $region42: #{a_call__.2} parent=5 // pred_check_branch
      %1944 = sbr.rel (%p1942) target = $region44
    $region43: #{a_call__.2} parent=5 // pred_region
      %s1945 = ssub.s32 %s10, 2
      // Predicated region
      $region45: #{a_call__.2} parent=43 // pred_check
        %p1946 = pneg %p142
      $region46: #{a_call__.2} parent=43 // pred_check_branch
        %1948 = sbr.rel (%p1946) target = $region48
      $region47: #{a_call__.2} parent=43 // pred_region
        %s1949 = smul.u32 8, %s22
        %p1950 = scmp.lt.s32.totalorder %s21, 1
        %s1951 = scalar_select %p1950, %s21, 1
        %p1952 = scmp.lt.s32.totalorder %s1949, 7
        %s1953 = scalar_select %p1952, %s1949, 7
        %s1954 = smul.addr %s1953, 2
        %s1955 = smul.addr %s1951, 16
        %s1956 = sadd.s32 %s1954, %s1955
        %s1957 = smul.addr %s1956, 4
        %s1958 = scalar_lea.vmem %s4, %s1957
      $region48: #{a_call__.2} parent=43 // pred_fallthru
        _
    $region44: #{a_call__.2} parent=5 // pred_fallthru
      _
  $region6: #{a_call__.2} parent=0 // loop_footer
    %s14 = sadd.s32 1, %s10
  $region7: #{a_call__.2} parent=0 // loop_footer_branch
    %9 = sbr.rel target = $region3
  $region8: #{a_call__.2} parent=0 // loop_exit
    _

// kernel: a_call__.3
$region0: #{a_call__.3}
  #allocation0 [shape = 'u32[]', space=smem, size = 0x4, offset = 0x4, fixed_abs, tag = 'smem constant byte address 0x4 - core index']
  #allocation1 [shape = 'u32[144,128]{1,0:T(1,128)}', space=vmem, size = 0x12000, scoped, tag = 'internal scratch']
  %s0 = inlined_call_operand.vmem [shape: bf16[2,18,18,16], index: 0, kind: input, shape index: {}]
  %s1 = inlined_call_operand.vmem [shape: bf16[144,8], index: 1, kind: input, shape index: {}]
  %s2 = inlined_call_operand.vmem [shape: f32[1,8], index: 2, kind: input, shape index: {}]
  %s3 = inlined_call_operand.vmem [shape: bf16[2,16,16,8], index: 3, kind: output, shape index: {}]
  %s4 = sld [smem:[#allocation0]]
  $region45: #{a_call__.3} parent=0
    _
  %s6 = ssub.s32 1, %s4
  %s7 = scalar_select 0, %s6, %s4
  loop: start=0, step=1, limit=4
  $region2: #{a_call__.3} parent=0 // loop_pre_header
    _
  $region3: #{a_call__.3} parent=0 // loop_header
    %s9 = sphi 0, %s13
    %p10 = scmp.ge.s32.totalorder %s9, 4
    %s16 = sphi 0, %s28
    %s17 = sphi 0, %s24
    %s18 = sphi 0, %s16
    %s19 = sphi 0, %s17
    %s20 = sphi 0, %s18
    %s21 = sphi 0, %s19
    %s31 = sphi 0, %s33
    %s34 = sphi 0, %s31
    %s35 = sphi 0, %s34
    %s51 = sphi 0, %s35
    %s55 = sphi 0, %s55
    %s57 = sphi 0, %s55
    %s58 = sphi 0, %s57
    %s72 = sphi 0, %s58
    %s76 = sphi 0, %s76
    %s78 = sphi 0, %s76
    %s79 = sphi 0, %s78
    %s93 = sphi 0, %s79
    %s101 = sphi 0, %s103
    %s104 = sphi 0, %s101
    %s105 = sphi 0, %s104
    %s121 = sphi 0, %s105
  $region4: #{a_call__.3} parent=0 // loop_header_branch
    %12 = sbr.rel (%p10) target = $region8
  $region5: #{a_call__.3} parent=0 // loop_body
    %s14 = ssub.s32 %s9, 1
    %s15 = ssub.s32 %s9, 2
    %s22 = sadd.s32 1, %s17
    %p23 = scmp.ge.s32.totalorder %s22, 1
    %s24 = scalar_select %p23, 0, %s22
    %s25 = sadd.s32 1, %s16
    %s26 = scalar_select %p23, %s25, %s16
    %p27 = scmp.ge.s32.totalorder %s26, 2
    %s28 = scalar_select %p27, 0, %s26
    %s29 = ssub.s32 %s16, %s28
    %p30 = scmp.eq.s32.totalorder %s29, 0
    %s32 = sadd.s32 %s31, 1
    %s33 = scalar_select %p30, %s31, %s32
    %p36 = pneg %p30
    %p37 = scmp.eq.s32.totalorder %s9, 1
    %p38 = por %p36, %p37
    %p39 = scmp.ne.s32.totalorder %s31, %s34
    %p40 = scmp.eq.s32.totalorder %s9, 0
    %p41 = por %p39, %p40
    %p42 = scmp.ne.s32.totalorder %s31, %s34
    %p43 = scmp.eq.s32.totalorder %s14, 1
    %p44 = por %p42, %p43
    %p45 = scmp.ne.s32.totalorder %s34, %s35
    %p46 = scmp.eq.s32.totalorder %s14, 0
    %p47 = por %p45, %p46
    %p48 = scmp.ne.s32.totalorder %s34, %s35
    %p49 = scmp.eq.s32.totalorder %s15, 1
    %p50 = por %p48, %p49
    %p52 = scmp.ne.s32.totalorder %s35, %s51
    %p53 = scmp.eq.s32.totalorder %s15, 0
    %p54 = por %p52, %p53
    %s56 = sadd.s32 %s55, 1
    %p59 = scmp.eq.s32.totalorder %s9, 1
    %p60 = scmp.ne.s32.totalorder %s55, %s57
    %p61 = scmp.eq.s32.totalorder %s9, 0
    %p62 = por %p60, %p61
    %p63 = scmp.ne.s32.totalorder %s55, %s57
    %p64 = scmp.eq.s32.totalorder %s14, 1
    %p65 = por %p63, %p64
    %p66 = scmp.ne.s32.totalorder %s57, %s58
    %p67 = scmp.eq.s32.totalorder %s14, 0
    %p68 = por %p66, %p67
    %p69 = scmp.ne.s32.totalorder %s57, %s58
    %p70 = scmp.eq.s32.totalorder %s15, 1
    %p71 = por %p69, %p70
    %p73 = scmp.ne.s32.totalorder %s58, %s72
    %p74 = scmp.eq.s32.totalorder %s15, 0
    %p75 = por %p73, %p74
    %s77 = sadd.s32 %s76, 1
    %p80 = scmp.eq.s32.totalorder %s9, 1
    %p81 = scmp.ne.s32.totalorder %s76, %s78
    %p82 = scmp.eq.s32.totalorder %s9, 0
    %p83 = por %p81, %p82
    %p84 = scmp.ne.s32.totalorder %s76, %s78
    %p85 = scmp.eq.s32.totalorder %s14, 1
    %p86 = por %p84, %p85
    %p87 = scmp.ne.s32.totalorder %s78, %s79
    %p88 = scmp.eq.s32.totalorder %s14, 0
    %p89 = por %p87, %p88
    %p90 = scmp.ne.s32.totalorder %s78, %s79
    %p91 = scmp.eq.s32.totalorder %s15, 1
    %p92 = por %p90, %p91
    %p94 = scmp.ne.s32.totalorder %s79, %s93
    %p95 = scmp.eq.s32.totalorder %s15, 0
    %p96 = por %p94, %p95
    %s97 = ssub.s32 %s16, %s28
    %s98 = ssub.s32 %s17, %s24
    %s99 = sor.u32 %s97, %s98
    %p100 = scmp.eq.s32.totalorder %s99, 0
    %s102 = sadd.s32 %s101, 1
    %s103 = scalar_select %p100, %s101, %s102
    %p106 = pneg %p100
    %p107 = scmp.eq.s32.totalorder %s9, 1
    %p108 = por %p106, %p107
    %p109 = scmp.ne.s32.totalorder %s101, %s104
    %p110 = scmp.eq.s32.totalorder %s9, 0
    %p111 = por %p109, %p110
    %p112 = scmp.ne.s32.totalorder %s101, %s104
    %p113 = scmp.eq.s32.totalorder %s14, 1
    %p114 = por %p112, %p113
    %p115 = scmp.ne.s32.totalorder %s104, %s105
    %p116 = scmp.eq.s32.totalorder %s14, 0
    %p117 = por %p115, %p116
    %p118 = scmp.ne.s32.totalorder %s104, %s105
    %p119 = scmp.eq.s32.totalorder %s15, 1
    %p120 = por %p118, %p119
    %p122 = scmp.ne.s32.totalorder %s105, %s121
    %p123 = scmp.eq.s32.totalorder %s15, 0
    %p124 = por %p122, %p123
    %p125 = scmp.le.s32.totalorder 1, %s9
    %p126 = scmp.lt.s32.totalorder %s9, 3
    %p127 = pnand %p125, %p126
    %p128 = pneg %p127
    // Predicated region
    $region9: #{a_call__.3} parent=5 // pred_check
      _
    $region10: #{a_call__.3} parent=5 // pred_check_branch
      %130 = sbr.rel (%p127) target = $region12
    $region11: #{a_call__.3} parent=5 // pred_region
      %s131 = ssub.s32 %s9, 1
      // Predicated region
      $region13: #{a_call__.3} parent=11 // pred_check
        %p132 = pneg %p68
      $region14: #{a_call__.3} parent=11 // pred_check_branch
        %134 = sbr.rel (%p132) target = $region16
      $region15: #{a_call__.3} parent=11 // pred_region
        _
      $region16: #{a_call__.3} parent=11 // pred_fallthru
        _
      // Predicated region
      $region17: #{a_call__.3} parent=11 // pred_check
        %p135 = pneg %p89
      $region18: #{a_call__.3} parent=11 // pred_check_branch
        %137 = sbr.rel (%p135) target = $region20
      $region19: #{a_call__.3} parent=11 // pred_region
        _
      $region20: #{a_call__.3} parent=11 // pred_fallthru
        _
    $region12: #{a_call__.3} parent=5 // pred_fallthru
      _
    %p138 = scmp.lt.s32.totalorder %s9, 2
    // Predicated region
    $region21: #{a_call__.3} parent=5 // pred_check
      %p139 = pneg %p138
    $region22: #{a_call__.3} parent=5 // pred_check_branch
      %141 = sbr.rel (%p139) target = $region24
    $region23: #{a_call__.3} parent=5 // pred_region
      // Predicated region
      $region25: #{a_call__.3} parent=23 // pred_check
        %p142 = pneg %p41
      $region26: #{a_call__.3} parent=23 // pred_check_branch
        %144 = sbr.rel (%p142) target = $region28
      $region27: #{a_call__.3} parent=23 // pred_region
        %p145 = scmp.lt.s32.totalorder %s16, 1
        %s146 = scalar_select %p145, %s16, 1
        %s147 = smul.addr %s146, 54
        %s148 = smul.addr %s147, 4
        %s149 = scalar_lea.vmem %s0, %s148
      $region28: #{a_call__.3} parent=23 // pred_fallthru
        _
    $region24: #{a_call__.3} parent=5 // pred_fallthru
      _
    %p150 = scmp.le.s32.totalorder 1, %s9
    %p151 = scmp.lt.s32.totalorder %s9, 3
    %p152 = pnand %p150, %p151
    %p153 = pneg %p152
    // Predicated region
    $region29: #{a_call__.3} parent=5 // pred_check
      _
    $region30: #{a_call__.3} parent=5 // pred_check_branch
      %155 = sbr.rel (%p152) target = $region32
    $region31: #{a_call__.3} parent=5 // pred_region
      %s156 = ssub.s32 %s9, 1
      %p157 = scmp.lt.s32.totalorder %s18, 1
      %s158 = scalar_select %p157, %s18, 1
      %s159 = smul.addr %s158, 54
      %s160 = smul.addr %s159, 4
      %s161 = scalar_lea.vmem %s0, %s160
      %p162 = pneg %p47
      %p163 = pneg %p44
      %p164 = pneg %p68
      %p165 = pneg %p65
      %p166 = pneg %p89
      %p167 = pneg %p86
      %p168 = pneg %p117
      %p169 = pneg %p114
      %s170 = smul.u32 16, %s19
      %p171 = scmp.lt.s32.totalorder %s18, 1
      %s172 = scalar_select %p171, %s18, 1
      %p173 = scmp.lt.s32.totalorder %s170, 15
      %s174 = scalar_select %p173, %s170, 15
      %s175 = smul.addr %s174, 2
      %s176 = smul.addr %s172, 32
      %s177 = sadd.s32 %s175, %s176
      %s178 = smul.addr %s177, 4
      %s179 = scalar_lea.vmem %s3, %s178
      %p180 = scmp.lt.s32.totalorder %s18, 1
      %s181 = scalar_select %p180, %s18, 1
      %s182 = smul.addr %s181, 54
      %s183 = smul.addr %s182, 4
      %s184 = scalar_lea.vmem %s0, %s183
      %s185 = smul.u32 16, %s19
      %p186 = scmp.lt.s32.totalorder %s18, 1
      %s187 = scalar_select %p186, %s18, 1
      %p188 = scmp.lt.s32.totalorder %s185, 15
      %s189 = scalar_select %p188, %s185, 15
      %s190 = smul.addr %s189, 2
      %s191 = smul.addr %s187, 32
      %s192 = sadd.s32 %s190, %s191
      %s193 = smul.addr %s192, 4
      %s194 = scalar_lea.vmem %s3, %s193
      %s195 = smul.u32 16, %s19
      %s197 = smul.u32 %s19, 16
      %s198 = smul.u32 %s197, 3
      %s199 = smul.addr %s198, 4
      %s200 = scalar_lea.vmem %s184, %s199
      %v201 = vld [vmem:[%s200] sm:$0xf]
      %v202 = vld [vmem:[%s200 + $0x4] sm:$0xf]
      %v203 = vld [vmem:[%s200 + $0xc] sm:$0xf]
      %v204 = vld [vmem:[%s200 + $0x10] sm:$0xf]
      %v205 = vld [vmem:[%s200 + $0x18] sm:$0xf]
      %v206 = vld [vmem:[%s200 + $0x1c] sm:$0xf]
      %v207 = vld [vmem:[%s200 + $0x24] sm:$0xf]
      %v208 = vld [vmem:[%s200 + $0x28] sm:$0xf]
      %v209 = vld [vmem:[%s200 + $0x30] sm:$0xf]
      %v210 = vld [vmem:[%s200 + $0x34] sm:$0xf]
      %v211 = vld [vmem:[%s200 + $0x3c] sm:$0xf]
      %v212 = vld [vmem:[%s200 + $0x40] sm:$0xf]
      %v213 = vld [vmem:[%s200 + $0x48] sm:$0xf]
      %v214 = vld [vmem:[%s200 + $0x4c] sm:$0xf]
      %v215 = vld [vmem:[%s200 + $0x54] sm:$0xf]
      %v216 = vld [vmem:[%s200 + $0x58] sm:$0xf]
      %v217 = vld [vmem:[%s200 + $0x60] sm:$0xf]
      %v218 = vld [vmem:[%s200 + $0x64] sm:$0xf]
      %v219 = vld [vmem:[%s200 + $0x6c] sm:$0xf]
      %v220 = vld [vmem:[%s200 + $0x70] sm:$0xf]
      %v221 = vld [vmem:[%s200 + $0x78] sm:$0xf]
      %v222 = vld [vmem:[%s200 + $0x7c] sm:$0xf]
      %v223 = vld [vmem:[%s200 + $0x84] sm:$0xf]
      %v224 = vld [vmem:[%s200 + $0x88] sm:$0xf]
      %v225 = vld [vmem:[%s200 + $0x90] sm:$0xf]
      %v226 = vld [vmem:[%s200 + $0x94] sm:$0xf]
      %v227 = vld [vmem:[%s200 + $0x9c] sm:$0xf]
      %v228 = vld [vmem:[%s200 + $0xa0] sm:$0xf]
      %v229 = vld [vmem:[%s200 + $0xa8] sm:$0xf]
      %v230 = vld [vmem:[%s200 + $0xac] sm:$0xf]
      %v231 = vld [vmem:[%s200 + $0xb4] sm:$0xf]
      %v232 = vld [vmem:[%s200 + $0xb8] sm:$0xf]
      %v233 = vld [vmem:[%s200 + $0x8] sm:$0x1]
      %v234 = vld [vmem:[%s200 + $0x14] sm:$0x1]
      %v235 = vld [vmem:[%s200 + $0x20] sm:$0x1]
      %v236 = vld [vmem:[%s200 + $0x2c] sm:$0x1]
      %v237 = vld [vmem:[%s200 + $0x38] sm:$0x1]
      %v238 = vld [vmem:[%s200 + $0x44] sm:$0x1]
      %v239 = vld [vmem:[%s200 + $0x50] sm:$0x1]
      %v240 = vld [vmem:[%s200 + $0x5c] sm:$0x1]
      %v241 = vld [vmem:[%s200 + $0x68] sm:$0x1]
      %v242 = vld [vmem:[%s200 + $0x74] sm:$0x1]
      %v243 = vld [vmem:[%s200 + $0x80] sm:$0x1]
      %v244 = vld [vmem:[%s200 + $0x8c] sm:$0x1]
      %v245 = vld [vmem:[%s200 + $0x98] sm:$0x1]
      %v246 = vld [vmem:[%s200 + $0xa4] sm:$0x1]
      %v247 = vld [vmem:[%s200 + $0xb0] sm:$0x1]
      %v248 = vld [vmem:[%s200 + $0xbc] sm:$0x1]
      %vm249 = vsmask.f32 3328
      %vm250 = vsmask.f32 7440
      %vm251 = vmor %vm249, %vm250
      %v253 = vshrl.u32 %v201, 16
      %v255 = vrot.slane %v253, 4
      %v256 = vshll.u32 %v201, 16
      %v258 = vrot.slane %v256, 5
      %v259 = vor.u32 %v255, %v258
      %v260 = vrot.slane %v259, 4
      %v262 = vshll.u32 %v202, 16
      %v264 = vrot.slane %v262, 5
      %v265 = vsel %vm251, %v260, %v264
      %v266 = vshrl.u32 %v202, 16
      %v268 = vrot.slane %v266, 4
      %v269 = vor.u32 %v268, %v264
      %v270 = vrot.slane %v269, 4
      %v272 = vshll.u32 %v233, 16
      %v274 = vrot.slane %v272, 5
      %v275 = vsel %vm251, %v270, %v274
      %v277 = vshrl.u32 %v203, 16
      %v279 = vrot.slane %v277, 4
      %v280 = vshll.u32 %v203, 16
      %v282 = vrot.slane %v280, 5
      %v283 = vor.u32 %v279, %v282
      %v284 = vrot.slane %v283, 4
      %v286 = vshll.u32 %v204, 16
      %v288 = vrot.slane %v286, 5
      %v289 = vsel %vm251, %v284, %v288
      %v290 = vshrl.u32 %v204, 16
      %v292 = vrot.slane %v290, 4
      %v293 = vor.u32 %v292, %v288
      %v294 = vrot.slane %v293, 4
      %v296 = vshll.u32 %v234, 16
      %v298 = vrot.slane %v296, 5
      %v299 = vsel %vm251, %v294, %v298
      %v301 = vshrl.u32 %v205, 16
      %v303 = vrot.slane %v301, 4
      %v304 = vshll.u32 %v205, 16
      %v306 = vrot.slane %v304, 5
      %v307 = vor.u32 %v303, %v306
      %v308 = vrot.slane %v307, 4
      %v310 = vshll.u32 %v206, 16
      %v312 = vrot.slane %v310, 5
      %v313 = vsel %vm251, %v308, %v312
      %v314 = vshrl.u32 %v206, 16
      %v316 = vrot.slane %v314, 4
      %v317 = vor.u32 %v316, %v312
      %v318 = vrot.slane %v317, 4
      %v320 = vshll.u32 %v235, 16
      %v322 = vrot.slane %v320, 5
      %v323 = vsel %vm251, %v318, %v322
      %v325 = vshrl.u32 %v207, 16
      %v327 = vrot.slane %v325, 4
      %v328 = vshll.u32 %v207, 16
      %v330 = vrot.slane %v328, 5
      %v331 = vor.u32 %v327, %v330
      %v332 = vrot.slane %v331, 4
      %v334 = vshll.u32 %v208, 16
      %v336 = vrot.slane %v334, 5
      %v337 = vsel %vm251, %v332, %v336
      %v338 = vshrl.u32 %v208, 16
      %v340 = vrot.slane %v338, 4
      %v341 = vor.u32 %v340, %v336
      %v342 = vrot.slane %v341, 4
      %v344 = vshll.u32 %v236, 16
      %v346 = vrot.slane %v344, 5
      %v347 = vsel %vm251, %v342, %v346
      %v349 = vshrl.u32 %v209, 16
      %v351 = vrot.slane %v349, 4
      %v352 = vshll.u32 %v209, 16
      %v354 = vrot.slane %v352, 5
      %v355 = vor.u32 %v351, %v354
      %v356 = vrot.slane %v355, 4
      %v358 = vshll.u32 %v210, 16
      %v360 = vrot.slane %v358, 5
      %v361 = vsel %vm251, %v356, %v360
      %v362 = vshrl.u32 %v210, 16
      %v364 = vrot.slane %v362, 4
      %v365 = vor.u32 %v364, %v360
      %v366 = vrot.slane %v365, 4
      %v368 = vshll.u32 %v237, 16
      %v370 = vrot.slane %v368, 5
      %v371 = vsel %vm251, %v366, %v370
      %v373 = vshrl.u32 %v211, 16
      %v375 = vrot.slane %v373, 4
      %v376 = vshll.u32 %v211, 16
      %v378 = vrot.slane %v376, 5
      %v379 = vor.u32 %v375, %v378
      %v380 = vrot.slane %v379, 4
      %v382 = vshll.u32 %v212, 16
      %v384 = vrot.slane %v382, 5
      %v385 = vsel %vm251, %v380, %v384
      %v386 = vshrl.u32 %v212, 16
      %v388 = vrot.slane %v386, 4
      %v389 = vor.u32 %v388, %v384
      %v390 = vrot.slane %v389, 4
      %v392 = vshll.u32 %v238, 16
      %v394 = vrot.slane %v392, 5
      %v395 = vsel %vm251, %v390, %v394
      %v397 = vshrl.u32 %v213, 16
      %v399 = vrot.slane %v397, 4
      %v400 = vshll.u32 %v213, 16
      %v402 = vrot.slane %v400, 5
      %v403 = vor.u32 %v399, %v402
      %v404 = vrot.slane %v403, 4
      %v406 = vshll.u32 %v214, 16
      %v408 = vrot.slane %v406, 5
      %v409 = vsel %vm251, %v404, %v408
      %v410 = vshrl.u32 %v214, 16
      %v412 = vrot.slane %v410, 4
      %v413 = vor.u32 %v412, %v408
      %v414 = vrot.slane %v413, 4
      %v416 = vshll.u32 %v239, 16
      %v418 = vrot.slane %v416, 5
      %v419 = vsel %vm251, %v414, %v418
      %v421 = vshrl.u32 %v215, 16
      %v423 = vrot.slane %v421, 4
      %v424 = vshll.u32 %v215, 16
      %v426 = vrot.slane %v424, 5
      %v427 = vor.u32 %v423, %v426
      %v428 = vrot.slane %v427, 4
      %v430 = vshll.u32 %v216, 16
      %v432 = vrot.slane %v430, 5
      %v433 = vsel %vm251, %v428, %v432
      %v434 = vshrl.u32 %v216, 16
      %v436 = vrot.slane %v434, 4
      %v437 = vor.u32 %v436, %v432
      %v438 = vrot.slane %v437, 4
      %v440 = vshll.u32 %v240, 16
      %v442 = vrot.slane %v440, 5
      %v443 = vsel %vm251, %v438, %v442
      %v445 = vshrl.u32 %v217, 16
      %v447 = vrot.slane %v445, 4
      %v448 = vshll.u32 %v217, 16
      %v450 = vrot.slane %v448, 5
      %v451 = vor.u32 %v447, %v450
      %v452 = vrot.slane %v451, 4
      %v454 = vshll.u32 %v218, 16
      %v456 = vrot.slane %v454, 5
      %v457 = vsel %vm251, %v452, %v456
      %v458 = vshrl.u32 %v218, 16
      %v460 = vrot.slane %v458, 4
      %v461 = vor.u32 %v460, %v456
      %v462 = vrot.slane %v461, 4
      %v464 = vshll.u32 %v241, 16
      %v466 = vrot.slane %v464, 5
      %v467 = vsel %vm251, %v462, %v466
      %v469 = vshrl.u32 %v219, 16
      %v471 = vrot.slane %v469, 4
      %v472 = vshll.u32 %v219, 16
      %v474 = vrot.slane %v472, 5
      %v475 = vor.u32 %v471, %v474
      %v476 = vrot.slane %v475, 4
      %v478 = vshll.u32 %v220, 16
      %v480 = vrot.slane %v478, 5
      %v481 = vsel %vm251, %v476, %v480
      %v482 = vshrl.u32 %v220, 16
      %v484 = vrot.slane %v482, 4
      %v485 = vor.u32 %v484, %v480
      %v486 = vrot.slane %v485, 4
      %v488 = vshll.u32 %v242, 16
      %v490 = vrot.slane %v488, 5
      %v491 = vsel %vm251, %v486, %v490
      %v493 = vshrl.u32 %v221, 16
      %v495 = vrot.slane %v493, 4
      %v496 = vshll.u32 %v221, 16
      %v498 = vrot.slane %v496, 5
      %v499 = vor.u32 %v495, %v498
      %v500 = vrot.slane %v499, 4
      %v502 = vshll.u32 %v222, 16
      %v504 = vrot.slane %v502, 5
      %v505 = vsel %vm251, %v500, %v504
      %v506 = vshrl.u32 %v222, 16
      %v508 = vrot.slane %v506, 4
      %v509 = vor.u32 %v508, %v504
      %v510 = vrot.slane %v509, 4
      %v512 = vshll.u32 %v243, 16
      %v514 = vrot.slane %v512, 5
      %v515 = vsel %vm251, %v510, %v514
      %v517 = vshrl.u32 %v223, 16
      %v519 = vrot.slane %v517, 4
      %v520 = vshll.u32 %v223, 16
      %v522 = vrot.slane %v520, 5
      %v523 = vor.u32 %v519, %v522
      %v524 = vrot.slane %v523, 4
      %v526 = vshll.u32 %v224, 16
      %v528 = vrot.slane %v526, 5
      %v529 = vsel %vm251, %v524, %v528
      %v530 = vshrl.u32 %v224, 16
      %v532 = vrot.slane %v530, 4
      %v533 = vor.u32 %v532, %v528
      %v534 = vrot.slane %v533, 4
      %v536 = vshll.u32 %v244, 16
      %v538 = vrot.slane %v536, 5
      %v539 = vsel %vm251, %v534, %v538
      %v541 = vshrl.u32 %v225, 16
      %v543 = vrot.slane %v541, 4
      %v544 = vshll.u32 %v225, 16
      %v546 = vrot.slane %v544, 5
      %v547 = vor.u32 %v543, %v546
      %v548 = vrot.slane %v547, 4
      %v550 = vshll.u32 %v226, 16
      %v552 = vrot.slane %v550, 5
      %v553 = vsel %vm251, %v548, %v552
      %v554 = vshrl.u32 %v226, 16
      %v556 = vrot.slane %v554, 4
      %v557 = vor.u32 %v556, %v552
      %v558 = vrot.slane %v557, 4
      %v560 = vshll.u32 %v245, 16
      %v562 = vrot.slane %v560, 5
      %v563 = vsel %vm251, %v558, %v562
      %v565 = vshrl.u32 %v227, 16
      %v567 = vrot.slane %v565, 4
      %v568 = vshll.u32 %v227, 16
      %v570 = vrot.slane %v568, 5
      %v571 = vor.u32 %v567, %v570
      %v572 = vrot.slane %v571, 4
      %v574 = vshll.u32 %v228, 16
      %v576 = vrot.slane %v574, 5
      %v577 = vsel %vm251, %v572, %v576
      %v578 = vshrl.u32 %v228, 16
      %v580 = vrot.slane %v578, 4
      %v581 = vor.u32 %v580, %v576
      %v582 = vrot.slane %v581, 4
      %v584 = vshll.u32 %v246, 16
      %v586 = vrot.slane %v584, 5
      %v587 = vsel %vm251, %v582, %v586
      %v589 = vshrl.u32 %v229, 16
      %v591 = vrot.slane %v589, 4
      %v592 = vshll.u32 %v229, 16
      %v594 = vrot.slane %v592, 5
      %v595 = vor.u32 %v591, %v594
      %v596 = vrot.slane %v595, 4
      %v598 = vshll.u32 %v230, 16
      %v600 = vrot.slane %v598, 5
      %v601 = vsel %vm251, %v596, %v600
      %v602 = vshrl.u32 %v230, 16
      %v604 = vrot.slane %v602, 4
      %v605 = vor.u32 %v604, %v600
      %v606 = vrot.slane %v605, 4
      %v608 = vshll.u32 %v247, 16
      %v610 = vrot.slane %v608, 5
      %v611 = vsel %vm251, %v606, %v610
      %v613 = vshrl.u32 %v231, 16
      %v615 = vrot.slane %v613, 4
      %v616 = vshll.u32 %v231, 16
      %v618 = vrot.slane %v616, 5
      %v619 = vor.u32 %v615, %v618
      %v620 = vrot.slane %v619, 4
      %v622 = vshll.u32 %v232, 16
      %v624 = vrot.slane %v622, 5
      %v625 = vsel %vm251, %v620, %v624
      %v626 = vshrl.u32 %v232, 16
      %v628 = vrot.slane %v626, 4
      %v629 = vor.u32 %v628, %v624
      %v630 = vrot.slane %v629, 4
      %v632 = vshll.u32 %v248, 16
      %v634 = vrot.slane %v632, 5
      %v635 = vsel %vm251, %v630, %v634
      %v636 = vld [vmem:[%s200] sm:$0xe]
      %v637 = vld [vmem:[%s200 + $0xc] sm:$0xe]
      %v638 = vld [vmem:[%s200 + $0x18] sm:$0xe]
      %v639 = vld [vmem:[%s200 + $0x24] sm:$0xe]
      %v640 = vld [vmem:[%s200 + $0x30] sm:$0xe]
      %v641 = vld [vmem:[%s200 + $0x3c] sm:$0xe]
      %v642 = vld [vmem:[%s200 + $0x48] sm:$0xe]
      %v643 = vld [vmem:[%s200 + $0x54] sm:$0xe]
      %v644 = vld [vmem:[%s200 + $0x60] sm:$0xe]
      %v645 = vld [vmem:[%s200 + $0x6c] sm:$0xe]
      %v646 = vld [vmem:[%s200 + $0x78] sm:$0xe]
      %v647 = vld [vmem:[%s200 + $0x84] sm:$0xe]
      %v648 = vld [vmem:[%s200 + $0x90] sm:$0xe]
      %v649 = vld [vmem:[%s200 + $0x9c] sm:$0xe]
      %v650 = vld [vmem:[%s200 + $0xa8] sm:$0xe]
      %v651 = vld [vmem:[%s200 + $0xb4] sm:$0xe]
      %vm700 = vcmask 1042432
      %vm701 = vcmask 1046532
      %vm702 = vmor %vm700, %vm701
      %v703 = vrot.slane %v636, 5
      %v704 = vrot.slane %v703, 4
      %v705 = vrot.slane %v202, 5
      %v706 = vsel %vm702, %v704, %v705
      %v707 = vrot.slane %v705, 4
      %v708 = vrot.slane %v233, 5
      %v709 = vsel %vm702, %v707, %v708
      %v710 = vrot.slane %v637, 5
      %v711 = vrot.slane %v710, 4
      %v712 = vrot.slane %v204, 5
      %v713 = vsel %vm702, %v711, %v712
      %v714 = vrot.slane %v712, 4
      %v715 = vrot.slane %v234, 5
      %v716 = vsel %vm702, %v714, %v715
      %v717 = vrot.slane %v638, 5
      %v718 = vrot.slane %v717, 4
      %v719 = vrot.slane %v206, 5
      %v720 = vsel %vm702, %v718, %v719
      %v721 = vrot.slane %v719, 4
      %v722 = vrot.slane %v235, 5
      %v723 = vsel %vm702, %v721, %v722
      %v724 = vrot.slane %v639, 5
      %v725 = vrot.slane %v724, 4
      %v726 = vrot.slane %v208, 5
      %v727 = vsel %vm702, %v725, %v726
      %v728 = vrot.slane %v726, 4
      %v729 = vrot.slane %v236, 5
      %v730 = vsel %vm702, %v728, %v729
      %v731 = vrot.slane %v640, 5
      %v732 = vrot.slane %v731, 4
      %v733 = vrot.slane %v210, 5
      %v734 = vsel %vm702, %v732, %v733
      %v735 = vrot.slane %v733, 4
      %v736 = vrot.slane %v237, 5
      %v737 = vsel %vm702, %v735, %v736
      %v738 = vrot.slane %v641, 5
      %v739 = vrot.slane %v738, 4
      %v740 = vrot.slane %v212, 5
      %v741 = vsel %vm702, %v739, %v740
      %v742 = vrot.slane %v740, 4
      %v743 = vrot.slane %v238, 5
      %v744 = vsel %vm702, %v742, %v743
      %v745 = vrot.slane %v642, 5
      %v746 = vrot.slane %v745, 4
      %v747 = vrot.slane %v214, 5
      %v748 = vsel %vm702, %v746, %v747
      %v749 = vrot.slane %v747, 4
      %v750 = vrot.slane %v239, 5
      %v751 = vsel %vm702, %v749, %v750
      %v752 = vrot.slane %v643, 5
      %v753 = vrot.slane %v752, 4
      %v754 = vrot.slane %v216, 5
      %v755 = vsel %vm702, %v753, %v754
      %v756 = vrot.slane %v754, 4
      %v757 = vrot.slane %v240, 5
      %v758 = vsel %vm702, %v756, %v757
      %v759 = vrot.slane %v644, 5
      %v760 = vrot.slane %v759, 4
      %v761 = vrot.slane %v218, 5
      %v762 = vsel %vm702, %v760, %v761
      %v763 = vrot.slane %v761, 4
      %v764 = vrot.slane %v241, 5
      %v765 = vsel %vm702, %v763, %v764
      %v766 = vrot.slane %v645, 5
      %v767 = vrot.slane %v766, 4
      %v768 = vrot.slane %v220, 5
      %v769 = vsel %vm702, %v767, %v768
      %v770 = vrot.slane %v768, 4
      %v771 = vrot.slane %v242, 5
      %v772 = vsel %vm702, %v770, %v771
      %v773 = vrot.slane %v646, 5
      %v774 = vrot.slane %v773, 4
      %v775 = vrot.slane %v222, 5
      %v776 = vsel %vm702, %v774, %v775
      %v777 = vrot.slane %v775, 4
      %v778 = vrot.slane %v243, 5
      %v779 = vsel %vm702, %v777, %v778
      %v780 = vrot.slane %v647, 5
      %v781 = vrot.slane %v780, 4
      %v782 = vrot.slane %v224, 5
      %v783 = vsel %vm702, %v781, %v782
      %v784 = vrot.slane %v782, 4
      %v785 = vrot.slane %v244, 5
      %v786 = vsel %vm702, %v784, %v785
      %v787 = vrot.slane %v648, 5
      %v788 = vrot.slane %v787, 4
      %v789 = vrot.slane %v226, 5
      %v790 = vsel %vm702, %v788, %v789
      %v791 = vrot.slane %v789, 4
      %v792 = vrot.slane %v245, 5
      %v793 = vsel %vm702, %v791, %v792
      %v794 = vrot.slane %v649, 5
      %v795 = vrot.slane %v794, 4
      %v796 = vrot.slane %v228, 5
      %v797 = vsel %vm702, %v795, %v796
      %v798 = vrot.slane %v796, 4
      %v799 = vrot.slane %v246, 5
      %v800 = vsel %vm702, %v798, %v799
      %v801 = vrot.slane %v650, 5
      %v802 = vrot.slane %v801, 4
      %v803 = vrot.slane %v230, 5
      %v804 = vsel %vm702, %v802, %v803
      %v805 = vrot.slane %v803, 4
      %v806 = vrot.slane %v247, 5
      %v807 = vsel %vm702, %v805, %v806
      %v808 = vrot.slane %v651, 5
      %v809 = vrot.slane %v808, 4
      %v810 = vrot.slane %v232, 5
      %v811 = vsel %vm702, %v809, %v810
      %v812 = vrot.slane %v810, 4
      %v813 = vrot.slane %v248, 5
      %v814 = vsel %vm702, %v812, %v813
      %s815 = sadd.s32 %s197, 1
      %s816 = smul.u32 %s815, 3
      %s817 = smul.addr %s816, 4
      %s818 = scalar_lea.vmem %s184, %s817
      %v819 = vld [vmem:[%s818] sm:$0xf]
      %v820 = vld [vmem:[%s818 + $0x4] sm:$0xf]
      %v821 = vld [vmem:[%s818 + $0xc] sm:$0xf]
      %v822 = vld [vmem:[%s818 + $0x10] sm:$0xf]
      %v823 = vld [vmem:[%s818 + $0x18] sm:$0xf]
      %v824 = vld [vmem:[%s818 + $0x1c] sm:$0xf]
      %v825 = vld [vmem:[%s818 + $0x24] sm:$0xf]
      %v826 = vld [vmem:[%s818 + $0x28] sm:$0xf]
      %v827 = vld [vmem:[%s818 + $0x30] sm:$0xf]
      %v828 = vld [vmem:[%s818 + $0x34] sm:$0xf]
      %v829 = vld [vmem:[%s818 + $0x3c] sm:$0xf]
      %v830 = vld [vmem:[%s818 + $0x40] sm:$0xf]
      %v831 = vld [vmem:[%s818 + $0x48] sm:$0xf]
      %v832 = vld [vmem:[%s818 + $0x4c] sm:$0xf]
      %v833 = vld [vmem:[%s818 + $0x54] sm:$0xf]
      %v834 = vld [vmem:[%s818 + $0x58] sm:$0xf]
      %v835 = vld [vmem:[%s818 + $0x60] sm:$0xf]
      %v836 = vld [vmem:[%s818 + $0x64] sm:$0xf]
      %v837 = vld [vmem:[%s818 + $0x6c] sm:$0xf]
      %v838 = vld [vmem:[%s818 + $0x70] sm:$0xf]
      %v839 = vld [vmem:[%s818 + $0x78] sm:$0xf]
      %v840 = vld [vmem:[%s818 + $0x7c] sm:$0xf]
      %v841 = vld [vmem:[%s818 + $0x84] sm:$0xf]
      %v842 = vld [vmem:[%s818 + $0x88] sm:$0xf]
      %v843 = vld [vmem:[%s818 + $0x90] sm:$0xf]
      %v844 = vld [vmem:[%s818 + $0x94] sm:$0xf]
      %v845 = vld [vmem:[%s818 + $0x9c] sm:$0xf]
      %v846 = vld [vmem:[%s818 + $0xa0] sm:$0xf]
      %v847 = vld [vmem:[%s818 + $0xa8] sm:$0xf]
      %v848 = vld [vmem:[%s818 + $0xac] sm:$0xf]
      %v849 = vld [vmem:[%s818 + $0xb4] sm:$0xf]
      %v850 = vld [vmem:[%s818 + $0xb8] sm:$0xf]
      %v851 = vld [vmem:[%s818 + $0x8] sm:$0x1]
      %v852 = vld [vmem:[%s818 + $0x14] sm:$0x1]
      %v853 = vld [vmem:[%s818 + $0x20] sm:$0x1]
      %v854 = vld [vmem:[%s818 + $0x2c] sm:$0x1]
      %v855 = vld [vmem:[%s818 + $0x38] sm:$0x1]
      %v856 = vld [vmem:[%s818 + $0x44] sm:$0x1]
      %v857 = vld [vmem:[%s818 + $0x50] sm:$0x1]
      %v858 = vld [vmem:[%s818 + $0x5c] sm:$0x1]
      %v859 = vld [vmem:[%s818 + $0x68] sm:$0x1]
      %v860 = vld [vmem:[%s818 + $0x74] sm:$0x1]
      %v861 = vld [vmem:[%s818 + $0x80] sm:$0x1]
      %v862 = vld [vmem:[%s818 + $0x8c] sm:$0x1]
      %v863 = vld [vmem:[%s818 + $0x98] sm:$0x1]
      %v864 = vld [vmem:[%s818 + $0xa4] sm:$0x1]
      %v865 = vld [vmem:[%s818 + $0xb0] sm:$0x1]
      %v866 = vld [vmem:[%s818 + $0xbc] sm:$0x1]
      %v868 = vshrl.u32 %v819, 16
      %v870 = vrot.slane %v868, 4
      %v871 = vshll.u32 %v819, 16
      %v873 = vrot.slane %v871, 5
      %v874 = vor.u32 %v870, %v873
      %v875 = vrot.slane %v874, 4
      %v877 = vshll.u32 %v820, 16
      %v879 = vrot.slane %v877, 5
      %v880 = vsel %vm251, %v875, %v879
      %v881 = vshrl.u32 %v820, 16
      %v883 = vrot.slane %v881, 4
      %v884 = vor.u32 %v883, %v879
      %v885 = vrot.slane %v884, 4
      %v887 = vshll.u32 %v851, 16
      %v889 = vrot.slane %v887, 5
      %v890 = vsel %vm251, %v885, %v889
      %v892 = vshrl.u32 %v821, 16
      %v894 = vrot.slane %v892, 4
      %v895 = vshll.u32 %v821, 16
      %v897 = vrot.slane %v895, 5
      %v898 = vor.u32 %v894, %v897
      %v899 = vrot.slane %v898, 4
      %v901 = vshll.u32 %v822, 16
      %v903 = vrot.slane %v901, 5
      %v904 = vsel %vm251, %v899, %v903
      %v905 = vshrl.u32 %v822, 16
      %v907 = vrot.slane %v905, 4
      %v908 = vor.u32 %v907, %v903
      %v909 = vrot.slane %v908, 4
      %v911 = vshll.u32 %v852, 16
      %v913 = vrot.slane %v911, 5
      %v914 = vsel %vm251, %v909, %v913
      %v916 = vshrl.u32 %v823, 16
      %v918 = vrot.slane %v916, 4
      %v919 = vshll.u32 %v823, 16
      %v921 = vrot.slane %v919, 5
      %v922 = vor.u32 %v918, %v921
      %v923 = vrot.slane %v922, 4
      %v925 = vshll.u32 %v824, 16
      %v927 = vrot.slane %v925, 5
      %v928 = vsel %vm251, %v923, %v927
      %v929 = vshrl.u32 %v824, 16
      %v931 = vrot.slane %v929, 4
      %v932 = vor.u32 %v931, %v927
      %v933 = vrot.slane %v932, 4
      %v935 = vshll.u32 %v853, 16
      %v937 = vrot.slane %v935, 5
      %v938 = vsel %vm251, %v933, %v937
      %v940 = vshrl.u32 %v825, 16
      %v942 = vrot.slane %v940, 4
      %v943 = vshll.u32 %v825, 16
      %v945 = vrot.slane %v943, 5
      %v946 = vor.u32 %v942, %v945
      %v947 = vrot.slane %v946, 4
      %v949 = vshll.u32 %v826, 16
      %v951 = vrot.slane %v949, 5
      %v952 = vsel %vm251, %v947, %v951
      %v953 = vshrl.u32 %v826, 16
      %v955 = vrot.slane %v953, 4
      %v956 = vor.u32 %v955, %v951
      %v957 = vrot.slane %v956, 4
      %v959 = vshll.u32 %v854, 16
      %v961 = vrot.slane %v959, 5
      %v962 = vsel %vm251, %v957, %v961
      %v964 = vshrl.u32 %v827, 16
      %v966 = vrot.slane %v964, 4
      %v967 = vshll.u32 %v827, 16
      %v969 = vrot.slane %v967, 5
      %v970 = vor.u32 %v966, %v969
      %v971 = vrot.slane %v970, 4
      %v973 = vshll.u32 %v828, 16
      %v975 = vrot.slane %v973, 5
      %v976 = vsel %vm251, %v971, %v975
      %v977 = vshrl.u32 %v828, 16
      %v979 = vrot.slane %v977, 4
      %v980 = vor.u32 %v979, %v975
      %v981 = vrot.slane %v980, 4
      %v983 = vshll.u32 %v855, 16
      %v985 = vrot.slane %v983, 5
      %v986 = vsel %vm251, %v981, %v985
      %v988 = vshrl.u32 %v829, 16
      %v990 = vrot.slane %v988, 4
      %v991 = vshll.u32 %v829, 16
      %v993 = vrot.slane %v991, 5
      %v994 = vor.u32 %v990, %v993
      %v995 = vrot.slane %v994, 4
      %v997 = vshll.u32 %v830, 16
      %v999 = vrot.slane %v997, 5
      %v1000 = vsel %vm251, %v995, %v999
      %v1001 = vshrl.u32 %v830, 16
      %v1003 = vrot.slane %v1001, 4
      %v1004 = vor.u32 %v1003, %v999
      %v1005 = vrot.slane %v1004, 4
      %v1007 = vshll.u32 %v856, 16
      %v1009 = vrot.slane %v1007, 5
      %v1010 = vsel %vm251, %v1005, %v1009
      %v1012 = vshrl.u32 %v831, 16
      %v1014 = vrot.slane %v1012, 4
      %v1015 = vshll.u32 %v831, 16
      %v1017 = vrot.slane %v1015, 5
      %v1018 = vor.u32 %v1014, %v1017
      %v1019 = vrot.slane %v1018, 4
      %v1021 = vshll.u32 %v832, 16
      %v1023 = vrot.slane %v1021, 5
      %v1024 = vsel %vm251, %v1019, %v1023
      %v1025 = vshrl.u32 %v832, 16
      %v1027 = vrot.slane %v1025, 4
      %v1028 = vor.u32 %v1027, %v1023
      %v1029 = vrot.slane %v1028, 4
      %v1031 = vshll.u32 %v857, 16
      %v1033 = vrot.slane %v1031, 5
      %v1034 = vsel %vm251, %v1029, %v1033
      %v1036 = vshrl.u32 %v833, 16
      %v1038 = vrot.slane %v1036, 4
      %v1039 = vshll.u32 %v833, 16
      %v1041 = vrot.slane %v1039, 5
      %v1042 = vor.u32 %v1038, %v1041
      %v1043 = vrot.slane %v1042, 4
      %v1045 = vshll.u32 %v834, 16
      %v1047 = vrot.slane %v1045, 5
      %v1048 = vsel %vm251, %v1043, %v1047
      %v1049 = vshrl.u32 %v834, 16
      %v1051 = vrot.slane %v1049, 4
      %v1052 = vor.u32 %v1051, %v1047
      %v1053 = vrot.slane %v1052, 4
      %v1055 = vshll.u32 %v858, 16
      %v1057 = vrot.slane %v1055, 5
      %v1058 = vsel %vm251, %v1053, %v1057
      %v1060 = vshrl.u32 %v835, 16
      %v1062 = vrot.slane %v1060, 4
      %v1063 = vshll.u32 %v835, 16
      %v1065 = vrot.slane %v1063, 5
      %v1066 = vor.u32 %v1062, %v1065
      %v1067 = vrot.slane %v1066, 4
      %v1069 = vshll.u32 %v836, 16
      %v1071 = vrot.slane %v1069, 5
      %v1072 = vsel %vm251, %v1067, %v1071
      %v1073 = vshrl.u32 %v836, 16
      %v1075 = vrot.slane %v1073, 4
      %v1076 = vor.u32 %v1075, %v1071
      %v1077 = vrot.slane %v1076, 4
      %v1079 = vshll.u32 %v859, 16
      %v1081 = vrot.slane %v1079, 5
      %v1082 = vsel %vm251, %v1077, %v1081
      %v1084 = vshrl.u32 %v837, 16
      %v1086 = vrot.slane %v1084, 4
      %v1087 = vshll.u32 %v837, 16
      %v1089 = vrot.slane %v1087, 5
      %v1090 = vor.u32 %v1086, %v1089
      %v1091 = vrot.slane %v1090, 4
      %v1093 = vshll.u32 %v838, 16
      %v1095 = vrot.slane %v1093, 5
      %v1096 = vsel %vm251, %v1091, %v1095
      %v1097 = vshrl.u32 %v838, 16
      %v1099 = vrot.slane %v1097, 4
      %v1100 = vor.u32 %v1099, %v1095
      %v1101 = vrot.slane %v1100, 4
      %v1103 = vshll.u32 %v860, 16
      %v1105 = vrot.slane %v1103, 5
      %v1106 = vsel %vm251, %v1101, %v1105
      %v1108 = vshrl.u32 %v839, 16
      %v1110 = vrot.slane %v1108, 4
      %v1111 = vshll.u32 %v839, 16
      %v1113 = vrot.slane %v1111, 5
      %v1114 = vor.u32 %v1110, %v1113
      %v1115 = vrot.slane %v1114, 4
      %v1117 = vshll.u32 %v840, 16
      %v1119 = vrot.slane %v1117, 5
      %v1120 = vsel %vm251, %v1115, %v1119
      %v1121 = vshrl.u32 %v840, 16
      %v1123 = vrot.slane %v1121, 4
      %v1124 = vor.u32 %v1123, %v1119
      %v1125 = vrot.slane %v1124, 4
      %v1127 = vshll.u32 %v861, 16
      %v1129 = vrot.slane %v1127, 5
      %v1130 = vsel %vm251, %v1125, %v1129
      %v1132 = vshrl.u32 %v841, 16
      %v1134 = vrot.slane %v1132, 4
      %v1135 = vshll.u32 %v841, 16
      %v1137 = vrot.slane %v1135, 5
      %v1138 = vor.u32 %v1134, %v1137
      %v1139 = vrot.slane %v1138, 4
      %v1141 = vshll.u32 %v842, 16
      %v1143 = vrot.slane %v1141, 5
      %v1144 = vsel %vm251, %v1139, %v1143
      %v1145 = vshrl.u32 %v842, 16
      %v1147 = vrot.slane %v1145, 4
      %v1148 = vor.u32 %v1147, %v1143
      %v1149 = vrot.slane %v1148, 4
      %v1151 = vshll.u32 %v862, 16
      %v1153 = vrot.slane %v1151, 5
      %v1154 = vsel %vm251, %v1149, %v1153
      %v1156 = vshrl.u32 %v843, 16
      %v1158 = vrot.slane %v1156, 4
      %v1159 = vshll.u32 %v843, 16
      %v1161 = vrot.slane %v1159, 5
      %v1162 = vor.u32 %v1158, %v1161
      %v1163 = vrot.slane %v1162, 4
      %v1165 = vshll.u32 %v844, 16
      %v1167 = vrot.slane %v1165, 5
      %v1168 = vsel %vm251, %v1163, %v1167
      %v1169 = vshrl.u32 %v844, 16
      %v1171 = vrot.slane %v1169, 4
      %v1172 = vor.u32 %v1171, %v1167
      %v1173 = vrot.slane %v1172, 4
      %v1175 = vshll.u32 %v863, 16
      %v1177 = vrot.slane %v1175, 5
      %v1178 = vsel %vm251, %v1173, %v1177
      %v1180 = vshrl.u32 %v845, 16
      %v1182 = vrot.slane %v1180, 4
      %v1183 = vshll.u32 %v845, 16
      %v1185 = vrot.slane %v1183, 5
      %v1186 = vor.u32 %v1182, %v1185
      %v1187 = vrot.slane %v1186, 4
      %v1189 = vshll.u32 %v846, 16
      %v1191 = vrot.slane %v1189, 5
      %v1192 = vsel %vm251, %v1187, %v1191
      %v1193 = vshrl.u32 %v846, 16
      %v1195 = vrot.slane %v1193, 4
      %v1196 = vor.u32 %v1195, %v1191
      %v1197 = vrot.slane %v1196, 4
      %v1199 = vshll.u32 %v864, 16
      %v1201 = vrot.slane %v1199, 5
      %v1202 = vsel %vm251, %v1197, %v1201
      %v1204 = vshrl.u32 %v847, 16
      %v1206 = vrot.slane %v1204, 4
      %v1207 = vshll.u32 %v847, 16
      %v1209 = vrot.slane %v1207, 5
      %v1210 = vor.u32 %v1206, %v1209
      %v1211 = vrot.slane %v1210, 4
      %v1213 = vshll.u32 %v848, 16
      %v1215 = vrot.slane %v1213, 5
      %v1216 = vsel %vm251, %v1211, %v1215
      %v1217 = vshrl.u32 %v848, 16
      %v1219 = vrot.slane %v1217, 4
      %v1220 = vor.u32 %v1219, %v1215
      %v1221 = vrot.slane %v1220, 4
      %v1223 = vshll.u32 %v865, 16
      %v1225 = vrot.slane %v1223, 5
      %v1226 = vsel %vm251, %v1221, %v1225
      %v1228 = vshrl.u32 %v849, 16
      %v1230 = vrot.slane %v1228, 4
      %v1231 = vshll.u32 %v849, 16
      %v1233 = vrot.slane %v1231, 5
      %v1234 = vor.u32 %v1230, %v1233
      %v1235 = vrot.slane %v1234, 4
      %v1237 = vshll.u32 %v850, 16
      %v1239 = vrot.slane %v1237, 5
      %v1240 = vsel %vm251, %v1235, %v1239
      %v1241 = vshrl.u32 %v850, 16
      %v1243 = vrot.slane %v1241, 4
      %v1244 = vor.u32 %v1243, %v1239
      %v1245 = vrot.slane %v1244, 4
      %v1247 = vshll.u32 %v866, 16
      %v1249 = vrot.slane %v1247, 5
      %v1250 = vsel %vm251, %v1245, %v1249
      %v1251 = vld [vmem:[%s818] sm:$0xe]
      %v1252 = vld [vmem:[%s818 + $0xc] sm:$0xe]
      %v1253 = vld [vmem:[%s818 + $0x18] sm:$0xe]
      %v1254 = vld [vmem:[%s818 + $0x24] sm:$0xe]
      %v1255 = vld [vmem:[%s818 + $0x30] sm:$0xe]
      %v1256 = vld [vmem:[%s818 + $0x3c] sm:$0xe]
      %v1257 = vld [vmem:[%s818 + $0x48] sm:$0xe]
      %v1258 = vld [vmem:[%s818 + $0x54] sm:$0xe]
      %v1259 = vld [vmem:[%s818 + $0x60] sm:$0xe]
      %v1260 = vld [vmem:[%s818 + $0x6c] sm:$0xe]
      %v1261 = vld [vmem:[%s818 + $0x78] sm:$0xe]
      %v1262 = vld [vmem:[%s818 + $0x84] sm:$0xe]
      %v1263 = vld [vmem:[%s818 + $0x90] sm:$0xe]
      %v1264 = vld [vmem:[%s818 + $0x9c] sm:$0xe]
      %v1265 = vld [vmem:[%s818 + $0xa8] sm:$0xe]
      %v1266 = vld [vmem:[%s818 + $0xb4] sm:$0xe]
      %v1315 = vrot.slane %v1251, 5
      %v1316 = vrot.slane %v1315, 4
      %v1317 = vrot.slane %v820, 5
      %v1318 = vsel %vm702, %v1316, %v1317
      %v1319 = vrot.slane %v1317, 4
      %v1320 = vrot.slane %v851, 5
      %v1321 = vsel %vm702, %v1319, %v1320
      %v1322 = vrot.slane %v1252, 5
      %v1323 = vrot.slane %v1322, 4
      %v1324 = vrot.slane %v822, 5
      %v1325 = vsel %vm702, %v1323, %v1324
      %v1326 = vrot.slane %v1324, 4
      %v1327 = vrot.slane %v852, 5
      %v1328 = vsel %vm702, %v1326, %v1327
      %v1329 = vrot.slane %v1253, 5
      %v1330 = vrot.slane %v1329, 4
      %v1331 = vrot.slane %v824, 5
      %v1332 = vsel %vm702, %v1330, %v1331
      %v1333 = vrot.slane %v1331, 4
      %v1334 = vrot.slane %v853, 5
      %v1335 = vsel %vm702, %v1333, %v1334
      %v1336 = vrot.slane %v1254, 5
      %v1337 = vrot.slane %v1336, 4
      %v1338 = vrot.slane %v826, 5
      %v1339 = vsel %vm702, %v1337, %v1338
      %v1340 = vrot.slane %v1338, 4
      %v1341 = vrot.slane %v854, 5
      %v1342 = vsel %vm702, %v1340, %v1341
      %v1343 = vrot.slane %v1255, 5
      %v1344 = vrot.slane %v1343, 4
      %v1345 = vrot.slane %v828, 5
      %v1346 = vsel %vm702, %v1344, %v1345
      %v1347 = vrot.slane %v1345, 4
      %v1348 = vrot.slane %v855, 5
      %v1349 = vsel %vm702, %v1347, %v1348
      %v1350 = vrot.slane %v1256, 5
      %v1351 = vrot.slane %v1350, 4
      %v1352 = vrot.slane %v830, 5
      %v1353 = vsel %vm702, %v1351, %v1352
      %v1354 = vrot.slane %v1352, 4
      %v1355 = vrot.slane %v856, 5
      %v1356 = vsel %vm702, %v1354, %v1355
      %v1357 = vrot.slane %v1257, 5
      %v1358 = vrot.slane %v1357, 4
      %v1359 = vrot.slane %v832, 5
      %v1360 = vsel %vm702, %v1358, %v1359
      %v1361 = vrot.slane %v1359, 4
      %v1362 = vrot.slane %v857, 5
      %v1363 = vsel %vm702, %v1361, %v1362
      %v1364 = vrot.slane %v1258, 5
      %v1365 = vrot.slane %v1364, 4
      %v1366 = vrot.slane %v834, 5
      %v1367 = vsel %vm702, %v1365, %v1366
      %v1368 = vrot.slane %v1366, 4
      %v1369 = vrot.slane %v858, 5
      %v1370 = vsel %vm702, %v1368, %v1369
      %v1371 = vrot.slane %v1259, 5
      %v1372 = vrot.slane %v1371, 4
      %v1373 = vrot.slane %v836, 5
      %v1374 = vsel %vm702, %v1372, %v1373
      %v1375 = vrot.slane %v1373, 4
      %v1376 = vrot.slane %v859, 5
      %v1377 = vsel %vm702, %v1375, %v1376
      %v1378 = vrot.slane %v1260, 5
      %v1379 = vrot.slane %v1378, 4
      %v1380 = vrot.slane %v838, 5
      %v1381 = vsel %vm702, %v1379, %v1380
      %v1382 = vrot.slane %v1380, 4
      %v1383 = vrot.slane %v860, 5
      %v1384 = vsel %vm702, %v1382, %v1383
      %v1385 = vrot.slane %v1261, 5
      %v1386 = vrot.slane %v1385, 4
      %v1387 = vrot.slane %v840, 5
      %v1388 = vsel %vm702, %v1386, %v1387
      %v1389 = vrot.slane %v1387, 4
      %v1390 = vrot.slane %v861, 5
      %v1391 = vsel %vm702, %v1389, %v1390
      %v1392 = vrot.slane %v1262, 5
      %v1393 = vrot.slane %v1392, 4
      %v1394 = vrot.slane %v842, 5
      %v1395 = vsel %vm702, %v1393, %v1394
      %v1396 = vrot.slane %v1394, 4
      %v1397 = vrot.slane %v862, 5
      %v1398 = vsel %vm702, %v1396, %v1397
      %v1399 = vrot.slane %v1263, 5
      %v1400 = vrot.slane %v1399, 4
      %v1401 = vrot.slane %v844, 5
      %v1402 = vsel %vm702, %v1400, %v1401
      %v1403 = vrot.slane %v1401, 4
      %v1404 = vrot.slane %v863, 5
      %v1405 = vsel %vm702, %v1403, %v1404
      %v1406 = vrot.slane %v1264, 5
      %v1407 = vrot.slane %v1406, 4
      %v1408 = vrot.slane %v846, 5
      %v1409 = vsel %vm702, %v1407, %v1408
      %v1410 = vrot.slane %v1408, 4
      %v1411 = vrot.slane %v864, 5
      %v1412 = vsel %vm702, %v1410, %v1411
      %v1413 = vrot.slane %v1265, 5
      %v1414 = vrot.slane %v1413, 4
      %v1415 = vrot.slane %v848, 5
      %v1416 = vsel %vm702, %v1414, %v1415
      %v1417 = vrot.slane %v1415, 4
      %v1418 = vrot.slane %v865, 5
      %v1419 = vsel %vm702, %v1417, %v1418
      %v1420 = vrot.slane %v1266, 5
      %v1421 = vrot.slane %v1420, 4
      %v1422 = vrot.slane %v850, 5
      %v1423 = vsel %vm702, %v1421, %v1422
      %v1424 = vrot.slane %v1422, 4
      %v1425 = vrot.slane %v866, 5
      %v1426 = vsel %vm702, %v1424, %v1425
      %s1427 = sadd.s32 %s197, 2
      %s1428 = smul.u32 %s1427, 3
      %s1429 = smul.addr %s1428, 4
      %s1430 = scalar_lea.vmem %s184, %s1429
      %v1431 = vld [vmem:[%s1430] sm:$0xf]
      %v1432 = vld [vmem:[%s1430 + $0x4] sm:$0xf]
      %v1433 = vld [vmem:[%s1430 + $0xc] sm:$0xf]
      %v1434 = vld [vmem:[%s1430 + $0x10] sm:$0xf]
      %v1435 = vld [vmem:[%s1430 + $0x18] sm:$0xf]
      %v1436 = vld [vmem:[%s1430 + $0x1c] sm:$0xf]
      %v1437 = vld [vmem:[%s1430 + $0x24] sm:$0xf]
      %v1438 = vld [vmem:[%s1430 + $0x28] sm:$0xf]
      %v1439 = vld [vmem:[%s1430 + $0x30] sm:$0xf]
      %v1440 = vld [vmem:[%s1430 + $0x34] sm:$0xf]
      %v1441 = vld [vmem:[%s1430 + $0x3c] sm:$0xf]
      %v1442 = vld [vmem:[%s1430 + $0x40] sm:$0xf]
      %v1443 = vld [vmem:[%s1430 + $0x48] sm:$0xf]
      %v1444 = vld [vmem:[%s1430 + $0x4c] sm:$0xf]
      %v1445 = vld [vmem:[%s1430 + $0x54] sm:$0xf]
      %v1446 = vld [vmem:[%s1430 + $0x58] sm:$0xf]
      %v1447 = vld [vmem:[%s1430 + $0x60] sm:$0xf]
      %v1448 = vld [vmem:[%s1430 + $0x64] sm:$0xf]
      %v1449 = vld [vmem:[%s1430 + $0x6c] sm:$0xf]
      %v1450 = vld [vmem:[%s1430 + $0x70] sm:$0xf]
      %v1451 = vld [vmem:[%s1430 + $0x78] sm:$0xf]
      %v1452 = vld [vmem:[%s1430 + $0x7c] sm:$0xf]
      %v1453 = vld [vmem:[%s1430 + $0x84] sm:$0xf]
      %v1454 = vld [vmem:[%s1430 + $0x88] sm:$0xf]
      %v1455 = vld [vmem:[%s1430 + $0x90] sm:$0xf]
      %v1456 = vld [vmem:[%s1430 + $0x94] sm:$0xf]
      %v1457 = vld [vmem:[%s1430 + $0x9c] sm:$0xf]
      %v1458 = vld [vmem:[%s1430 + $0xa0] sm:$0xf]
      %v1459 = vld [vmem:[%s1430 + $0xa8] sm:$0xf]
      %v1460 = vld [vmem:[%s1430 + $0xac] sm:$0xf]
      %v1461 = vld [vmem:[%s1430 + $0xb4] sm:$0xf]
      %v1462 = vld [vmem:[%s1430 + $0xb8] sm:$0xf]
      %v1463 = vld [vmem:[%s1430 + $0x8] sm:$0x1]
      %v1464 = vld [vmem:[%s1430 + $0x14] sm:$0x1]
      %v1465 = vld [vmem:[%s1430 + $0x20] sm:$0x1]
      %v1466 = vld [vmem:[%s1430 + $0x2c] sm:$0x1]
      %v1467 = vld [vmem:[%s1430 + $0x38] sm:$0x1]
      %v1468 = vld [vmem:[%s1430 + $0x44] sm:$0x1]
      %v1469 = vld [vmem:[%s1430 + $0x50] sm:$0x1]
      %v1470 = vld [vmem:[%s1430 + $0x5c] sm:$0x1]
      %v1471 = vld [vmem:[%s1430 + $0x68] sm:$0x1]
      %v1472 = vld [vmem:[%s1430 + $0x74] sm:$0x1]
      %v1473 = vld [vmem:[%s1430 + $0x80] sm:$0x1]
      %v1474 = vld [vmem:[%s1430 + $0x8c] sm:$0x1]
      %v1475 = vld [vmem:[%s1430 + $0x98] sm:$0x1]
      %v1476 = vld [vmem:[%s1430 + $0xa4] sm:$0x1]
      %v1477 = vld [vmem:[%s1430 + $0xb0] sm:$0x1]
      %v1478 = vld [vmem:[%s1430 + $0xbc] sm:$0x1]
      %v1480 = vshrl.u32 %v1431, 16
      %v1482 = vrot.slane %v1480, 4
      %v1483 = vshll.u32 %v1431, 16
      %v1485 = vrot.slane %v1483, 5
      %v1486 = vor.u32 %v1482, %v1485
      %v1487 = vrot.slane %v1486, 4
      %v1489 = vshll.u32 %v1432, 16
      %v1491 = vrot.slane %v1489, 5
      %v1492 = vsel %vm251, %v1487, %v1491
      %v1493 = vshrl.u32 %v1432, 16
      %v1495 = vrot.slane %v1493, 4
      %v1496 = vor.u32 %v1495, %v1491
      %v1497 = vrot.slane %v1496, 4
      %v1499 = vshll.u32 %v1463, 16
      %v1501 = vrot.slane %v1499, 5
      %v1502 = vsel %vm251, %v1497, %v1501
      %v1504 = vshrl.u32 %v1433, 16
      %v1506 = vrot.slane %v1504, 4
      %v1507 = vshll.u32 %v1433, 16
      %v1509 = vrot.slane %v1507, 5
      %v1510 = vor.u32 %v1506, %v1509
      %v1511 = vrot.slane %v1510, 4
      %v1513 = vshll.u32 %v1434, 16
      %v1515 = vrot.slane %v1513, 5
      %v1516 = vsel %vm251, %v1511, %v1515
      %v1517 = vshrl.u32 %v1434, 16
      %v1519 = vrot.slane %v1517, 4
      %v1520 = vor.u32 %v1519, %v1515
      %v1521 = vrot.slane %v1520, 4
      %v1523 = vshll.u32 %v1464, 16
      %v1525 = vrot.slane %v1523, 5
      %v1526 = vsel %vm251, %v1521, %v1525
      %v1528 = vshrl.u32 %v1435, 16
      %v1530 = vrot.slane %v1528, 4
      %v1531 = vshll.u32 %v1435, 16
      %v1533 = vrot.slane %v1531, 5
      %v1534 = vor.u32 %v1530, %v1533
      %v1535 = vrot.slane %v1534, 4
      %v1537 = vshll.u32 %v1436, 16
      %v1539 = vrot.slane %v1537, 5
      %v1540 = vsel %vm251, %v1535, %v1539
      %v1541 = vshrl.u32 %v1436, 16
      %v1543 = vrot.slane %v1541, 4
      %v1544 = vor.u32 %v1543, %v1539
      %v1545 = vrot.slane %v1544, 4
      %v1547 = vshll.u32 %v1465, 16
      %v1549 = vrot.slane %v1547, 5
      %v1550 = vsel %vm251, %v1545, %v1549
      %v1552 = vshrl.u32 %v1437, 16
      %v1554 = vrot.slane %v1552, 4
      %v1555 = vshll.u32 %v1437, 16
      %v1557 = vrot.slane %v1555, 5
      %v1558 = vor.u32 %v1554, %v1557
      %v1559 = vrot.slane %v1558, 4
      %v1561 = vshll.u32 %v1438, 16
      %v1563 = vrot.slane %v1561, 5
      %v1564 = vsel %vm251, %v1559, %v1563
      %v1565 = vshrl.u32 %v1438, 16
      %v1567 = vrot.slane %v1565, 4
      %v1568 = vor.u32 %v1567, %v1563
      %v1569 = vrot.slane %v1568, 4
      %v1571 = vshll.u32 %v1466, 16
      %v1573 = vrot.slane %v1571, 5
      %v1574 = vsel %vm251, %v1569, %v1573
      %v1576 = vshrl.u32 %v1439, 16
      %v1578 = vrot.slane %v1576, 4
      %v1579 = vshll.u32 %v1439, 16
      %v1581 = vrot.slane %v1579, 5
      %v1582 = vor.u32 %v1578, %v1581
      %v1583 = vrot.slane %v1582, 4
      %v1585 = vshll.u32 %v1440, 16
      %v1587 = vrot.slane %v1585, 5
      %v1588 = vsel %vm251, %v1583, %v1587
      %v1589 = vshrl.u32 %v1440, 16
      %v1591 = vrot.slane %v1589, 4
      %v1592 = vor.u32 %v1591, %v1587
      %v1593 = vrot.slane %v1592, 4
      %v1595 = vshll.u32 %v1467, 16
      %v1597 = vrot.slane %v1595, 5
      %v1598 = vsel %vm251, %v1593, %v1597
      %v1600 = vshrl.u32 %v1441, 16
      %v1602 = vrot.slane %v1600, 4
      %v1603 = vshll.u32 %v1441, 16
      %v1605 = vrot.slane %v1603, 5
      %v1606 = vor.u32 %v1602, %v1605
      %v1607 = vrot.slane %v1606, 4
      %v1609 = vshll.u32 %v1442, 16
      %v1611 = vrot.slane %v1609, 5
      %v1612 = vsel %vm251, %v1607, %v1611
      %v1613 = vshrl.u32 %v1442, 16
      %v1615 = vrot.slane %v1613, 4
      %v1616 = vor.u32 %v1615, %v1611
      %v1617 = vrot.slane %v1616, 4
      %v1619 = vshll.u32 %v1468, 16
      %v1621 = vrot.slane %v1619, 5
      %v1622 = vsel %vm251, %v1617, %v1621
      %v1624 = vshrl.u32 %v1443, 16
      %v1626 = vrot.slane %v1624, 4
      %v1627 = vshll.u32 %v1443, 16
      %v1629 = vrot.slane %v1627, 5
      %v1630 = vor.u32 %v1626, %v1629
      %v1631 = vrot.slane %v1630, 4
      %v1633 = vshll.u32 %v1444, 16
      %v1635 = vrot.slane %v1633, 5
      %v1636 = vsel %vm251, %v1631, %v1635
      %v1637 = vshrl.u32 %v1444, 16
      %v1639 = vrot.slane %v1637, 4
      %v1640 = vor.u32 %v1639, %v1635
      %v1641 = vrot.slane %v1640, 4
      %v1643 = vshll.u32 %v1469, 16
      %v1645 = vrot.slane %v1643, 5
      %v1646 = vsel %vm251, %v1641, %v1645
      %v1648 = vshrl.u32 %v1445, 16
      %v1650 = vrot.slane %v1648, 4
      %v1651 = vshll.u32 %v1445, 16
      %v1653 = vrot.slane %v1651, 5
      %v1654 = vor.u32 %v1650, %v1653
      %v1655 = vrot.slane %v1654, 4
      %v1657 = vshll.u32 %v1446, 16
      %v1659 = vrot.slane %v1657, 5
      %v1660 = vsel %vm251, %v1655, %v1659
      %v1661 = vshrl.u32 %v1446, 16
      %v1663 = vrot.slane %v1661, 4
      %v1664 = vor.u32 %v1663, %v1659
      %v1665 = vrot.slane %v1664, 4
      %v1667 = vshll.u32 %v1470, 16
      %v1669 = vrot.slane %v1667, 5
      %v1670 = vsel %vm251, %v1665, %v1669
      %v1672 = vshrl.u32 %v1447, 16
      %v1674 = vrot.slane %v1672, 4
      %v1675 = vshll.u32 %v1447, 16
      %v1677 = vrot.slane %v1675, 5
      %v1678 = vor.u32 %v1674, %v1677
      %v1679 = vrot.slane %v1678, 4
      %v1681 = vshll.u32 %v1448, 16
      %v1683 = vrot.slane %v1681, 5
      %v1684 = vsel %vm251, %v1679, %v1683
      %v1685 = vshrl.u32 %v1448, 16
      %v1687 = vrot.slane %v1685, 4
      %v1688 = vor.u32 %v1687, %v1683
      %v1689 = vrot.slane %v1688, 4
      %v1691 = vshll.u32 %v1471, 16
      %v1693 = vrot.slane %v1691, 5
      %v1694 = vsel %vm251, %v1689, %v1693
      %v1696 = vshrl.u32 %v1449, 16
      %v1698 = vrot.slane %v1696, 4
      %v1699 = vshll.u32 %v1449, 16
      %v1701 = vrot.slane %v1699, 5
      %v1702 = vor.u32 %v1698, %v1701
      %v1703 = vrot.slane %v1702, 4
      %v1705 = vshll.u32 %v1450, 16
      %v1707 = vrot.slane %v1705, 5
      %v1708 = vsel %vm251, %v1703, %v1707
      %v1709 = vshrl.u32 %v1450, 16
      %v1711 = vrot.slane %v1709, 4
      %v1712 = vor.u32 %v1711, %v1707
      %v1713 = vrot.slane %v1712, 4
      %v1715 = vshll.u32 %v1472, 16
      %v1717 = vrot.slane %v1715, 5
      %v1718 = vsel %vm251, %v1713, %v1717
      %v1720 = vshrl.u32 %v1451, 16
      %v1722 = vrot.slane %v1720, 4
      %v1723 = vshll.u32 %v1451, 16
      %v1725 = vrot.slane %v1723, 5
      %v1726 = vor.u32 %v1722, %v1725
      %v1727 = vrot.slane %v1726, 4
      %v1729 = vshll.u32 %v1452, 16
      %v1731 = vrot.slane %v1729, 5
      %v1732 = vsel %vm251, %v1727, %v1731
      %v1733 = vshrl.u32 %v1452, 16
      %v1735 = vrot.slane %v1733, 4
      %v1736 = vor.u32 %v1735, %v1731
      %v1737 = vrot.slane %v1736, 4
      %v1739 = vshll.u32 %v1473, 16
      %v1741 = vrot.slane %v1739, 5
      %v1742 = vsel %vm251, %v1737, %v1741
      %v1744 = vshrl.u32 %v1453, 16
      %v1746 = vrot.slane %v1744, 4
      %v1747 = vshll.u32 %v1453, 16
      %v1749 = vrot.slane %v1747, 5
      %v1750 = vor.u32 %v1746, %v1749
      %v1751 = vrot.slane %v1750, 4
      %v1753 = vshll.u32 %v1454, 16
      %v1755 = vrot.slane %v1753, 5
      %v1756 = vsel %vm251, %v1751, %v1755
      %v1757 = vshrl.u32 %v1454, 16
      %v1759 = vrot.slane %v1757, 4
      %v1760 = vor.u32 %v1759, %v1755
      %v1761 = vrot.slane %v1760, 4
      %v1763 = vshll.u32 %v1474, 16
      %v1765 = vrot.slane %v1763, 5
      %v1766 = vsel %vm251, %v1761, %v1765
      %v1768 = vshrl.u32 %v1455, 16
      %v1770 = vrot.slane %v1768, 4
      %v1771 = vshll.u32 %v1455, 16
      %v1773 = vrot.slane %v1771, 5
      %v1774 = vor.u32 %v1770, %v1773
      %v1775 = vrot.slane %v1774, 4
      %v1777 = vshll.u32 %v1456, 16
      %v1779 = vrot.slane %v1777, 5
      %v1780 = vsel %vm251, %v1775, %v1779
      %v1781 = vshrl.u32 %v1456, 16
      %v1783 = vrot.slane %v1781, 4
      %v1784 = vor.u32 %v1783, %v1779
      %v1785 = vrot.slane %v1784, 4
      %v1787 = vshll.u32 %v1475, 16
      %v1789 = vrot.slane %v1787, 5
      %v1790 = vsel %vm251, %v1785, %v1789
      %v1792 = vshrl.u32 %v1457, 16
      %v1794 = vrot.slane %v1792, 4
      %v1795 = vshll.u32 %v1457, 16
      %v1797 = vrot.slane %v1795, 5
      %v1798 = vor.u32 %v1794, %v1797
      %v1799 = vrot.slane %v1798, 4
      %v1801 = vshll.u32 %v1458, 16
      %v1803 = vrot.slane %v1801, 5
      %v1804 = vsel %vm251, %v1799, %v1803
      %v1805 = vshrl.u32 %v1458, 16
      %v1807 = vrot.slane %v1805, 4
      %v1808 = vor.u32 %v1807, %v1803
      %v1809 = vrot.slane %v1808, 4
      %v1811 = vshll.u32 %v1476, 16
      %v1813 = vrot.slane %v1811, 5
      %v1814 = vsel %vm251, %v1809, %v1813
      %v1816 = vshrl.u32 %v1459, 16
      %v1818 = vrot.slane %v1816, 4
      %v1819 = vshll.u32 %v1459, 16
      %v1821 = vrot.slane %v1819, 5
      %v1822 = vor.u32 %v1818, %v1821
      %v1823 = vrot.slane %v1822, 4
      %v1825 = vshll.u32 %v1460, 16
      %v1827 = vrot.slane %v1825, 5
      %v1828 = vsel %vm251, %v1823, %v1827
      %v1829 = vshrl.u32 %v1460, 16
      %v1831 = vrot.slane %v1829, 4
      %v1832 = vor.u32 %v1831, %v1827
      %v1833 = vrot.slane %v1832, 4
      %v1835 = vshll.u32 %v1477, 16
      %v1837 = vrot.slane %v1835, 5
      %v1838 = vsel %vm251, %v1833, %v1837
      %v1840 = vshrl.u32 %v1461, 16
      %v1842 = vrot.slane %v1840, 4
      %v1843 = vshll.u32 %v1461, 16
      %v1845 = vrot.slane %v1843, 5
      %v1846 = vor.u32 %v1842, %v1845
      %v1847 = vrot.slane %v1846, 4
      %v1849 = vshll.u32 %v1462, 16
      %v1851 = vrot.slane %v1849, 5
      %v1852 = vsel %vm251, %v1847, %v1851
      %v1853 = vshrl.u32 %v1462, 16
      %v1855 = vrot.slane %v1853, 4
      %v1856 = vor.u32 %v1855, %v1851
      %v1857 = vrot.slane %v1856, 4
      %v1859 = vshll.u32 %v1478, 16
      %v1861 = vrot.slane %v1859, 5
      %v1862 = vsel %vm251, %v1857, %v1861
      %v1863 = vld [vmem:[%s1430] sm:$0xe]
      %v1864 = vld [vmem:[%s1430 + $0xc] sm:$0xe]
      %v1865 = vld [vmem:[%s1430 + $0x18] sm:$0xe]
      %v1866 = vld [vmem:[%s1430 + $0x24] sm:$0xe]
      %v1867 = vld [vmem:[%s1430 + $0x30] sm:$0xe]
      %v1868 = vld [vmem:[%s1430 + $0x3c] sm:$0xe]
      %v1869 = vld [vmem:[%s1430 + $0x48] sm:$0xe]
      %v1870 = vld [vmem:[%s1430 + $0x54] sm:$0xe]
      %v1871 = vld [vmem:[%s1430 + $0x60] sm:$0xe]
      %v1872 = vld [vmem:[%s1430 + $0x6c] sm:$0xe]
      %v1873 = vld [vmem:[%s1430 + $0x78] sm:$0xe]
      %v1874 = vld [vmem:[%s1430 + $0x84] sm:$0xe]
      %v1875 = vld [vmem:[%s1430 + $0x90] sm:$0xe]
      %v1876 = vld [vmem:[%s1430 + $0x9c] sm:$0xe]
      %v1877 = vld [vmem:[%s1430 + $0xa8] sm:$0xe]
      %v1878 = vld [vmem:[%s1430 + $0xb4] sm:$0xe]
      %v1927 = vrot.slane %v1863, 5
      %v1928 = vrot.slane %v1927, 4
      %v1929 = vrot.slane %v1432, 5
      %v1930 = vsel %vm702, %v1928, %v1929
      %v1931 = vrot.slane %v1929, 4
      %v1932 = vrot.slane %v1463, 5
      %v1933 = vsel %vm702, %v1931, %v1932
      %v1934 = vrot.slane %v1864, 5
      %v1935 = vrot.slane %v1934, 4
      %v1936 = vrot.slane %v1434, 5
      %v1937 = vsel %vm702, %v1935, %v1936
      %v1938 = vrot.slane %v1936, 4
      %v1939 = vrot.slane %v1464, 5
      %v1940 = vsel %vm702, %v1938, %v1939
      %v1941 = vrot.slane %v1865, 5
      %v1942 = vrot.slane %v1941, 4
      %v1943 = vrot.slane %v1436, 5
      %v1944 = vsel %vm702, %v1942, %v1943
      %v1945 = vrot.slane %v1943, 4
      %v1946 = vrot.slane %v1465, 5
      %v1947 = vsel %vm702, %v1945, %v1946
      %v1948 = vrot.slane %v1866, 5
      %v1949 = vrot.slane %v1948, 4
      %v1950 = vrot.slane %v1438, 5
      %v1951 = vsel %vm702, %v1949, %v1950
      %v1952 = vrot.slane %v1950, 4
      %v1953 = vrot.slane %v1466, 5
      %v1954 = vsel %vm702, %v1952, %v1953
      %v1955 = vrot.slane %v1867, 5
      %v1956 = vrot.slane %v1955, 4
      %v1957 = vrot.slane %v1440, 5
      %v1958 = vsel %vm702, %v1956, %v1957
      %v1959 = vrot.slane %v1957, 4
      %v1960 = vrot.slane %v1467, 5
      %v1961 = vsel %vm702, %v1959, %v1960
      %v1962 = vrot.slane %v1868, 5
      %v1963 = vrot.slane %v1962, 4
      %v1964 = vrot.slane %v1442, 5
      %v1965 = vsel %vm702, %v1963, %v1964
      %v1966 = vrot.slane %v1964, 4
      %v1967 = vrot.slane %v1468, 5
      %v1968 = vsel %vm702, %v1966, %v1967
      %v1969 = vrot.slane %v1869, 5
      %v1970 = vrot.slane %v1969, 4
      %v1971 = vrot.slane %v1444, 5
      %v1972 = vsel %vm702, %v1970, %v1971
      %v1973 = vrot.slane %v1971, 4
      %v1974 = vrot.slane %v1469, 5
      %v1975 = vsel %vm702, %v1973, %v1974
      %v1976 = vrot.slane %v1870, 5
      %v1977 = vrot.slane %v1976, 4
      %v1978 = vrot.slane %v1446, 5
      %v1979 = vsel %vm702, %v1977, %v1978
      %v1980 = vrot.slane %v1978, 4
      %v1981 = vrot.slane %v1470, 5
      %v1982 = vsel %vm702, %v1980, %v1981
      %v1983 = vrot.slane %v1871, 5
      %v1984 = vrot.slane %v1983, 4
      %v1985 = vrot.slane %v1448, 5
      %v1986 = vsel %vm702, %v1984, %v1985
      %v1987 = vrot.slane %v1985, 4
      %v1988 = vrot.slane %v1471, 5
      %v1989 = vsel %vm702, %v1987, %v1988
      %v1990 = vrot.slane %v1872, 5
      %v1991 = vrot.slane %v1990, 4
      %v1992 = vrot.slane %v1450, 5
      %v1993 = vsel %vm702, %v1991, %v1992
      %v1994 = vrot.slane %v1992, 4
      %v1995 = vrot.slane %v1472, 5
      %v1996 = vsel %vm702, %v1994, %v1995
      %v1997 = vrot.slane %v1873, 5
      %v1998 = vrot.slane %v1997, 4
      %v1999 = vrot.slane %v1452, 5
      %v2000 = vsel %vm702, %v1998, %v1999
      %v2001 = vrot.slane %v1999, 4
      %v2002 = vrot.slane %v1473, 5
      %v2003 = vsel %vm702, %v2001, %v2002
      %v2004 = vrot.slane %v1874, 5
      %v2005 = vrot.slane %v2004, 4
      %v2006 = vrot.slane %v1454, 5
      %v2007 = vsel %vm702, %v2005, %v2006
      %v2008 = vrot.slane %v2006, 4
      %v2009 = vrot.slane %v1474, 5
      %v2010 = vsel %vm702, %v2008, %v2009
      %v2011 = vrot.slane %v1875, 5
      %v2012 = vrot.slane %v2011, 4
      %v2013 = vrot.slane %v1456, 5
      %v2014 = vsel %vm702, %v2012, %v2013
      %v2015 = vrot.slane %v2013, 4
      %v2016 = vrot.slane %v1475, 5
      %v2017 = vsel %vm702, %v2015, %v2016
      %v2018 = vrot.slane %v1876, 5
      %v2019 = vrot.slane %v2018, 4
      %v2020 = vrot.slane %v1458, 5
      %v2021 = vsel %vm702, %v2019, %v2020
      %v2022 = vrot.slane %v2020, 4
      %v2023 = vrot.slane %v1476, 5
      %v2024 = vsel %vm702, %v2022, %v2023
      %v2025 = vrot.slane %v1877, 5
      %v2026 = vrot.slane %v2025, 4
      %v2027 = vrot.slane %v1460, 5
      %v2028 = vsel %vm702, %v2026, %v2027
      %v2029 = vrot.slane %v2027, 4
      %v2030 = vrot.slane %v1477, 5
      %v2031 = vsel %vm702, %v2029, %v2030
      %v2032 = vrot.slane %v1878, 5
      %v2033 = vrot.slane %v2032, 4
      %v2034 = vrot.slane %v1462, 5
      %v2035 = vsel %vm702, %v2033, %v2034
      %v2036 = vrot.slane %v2034, 4
      %v2037 = vrot.slane %v1478, 5
      %v2038 = vsel %vm702, %v2036, %v2037
      %v2055 = vunpack.c.l.b16 %v201
      %v2056 = vunpack.c.l.b16 %v202
      %v2057 = vunpack.c.l.b16 %v203
      %v2058 = vunpack.c.l.b16 %v204
      %v2059 = vunpack.c.l.b16 %v205
      %v2060 = vunpack.c.l.b16 %v206
      %v2061 = vunpack.c.l.b16 %v207
      %v2062 = vunpack.c.l.b16 %v208
      %v2063 = vunpack.c.l.b16 %v209
      %v2064 = vunpack.c.l.b16 %v210
      %v2065 = vunpack.c.l.b16 %v211
      %v2066 = vunpack.c.l.b16 %v212
      %v2067 = vunpack.c.l.b16 %v213
      %v2068 = vunpack.c.l.b16 %v214
      %v2069 = vunpack.c.l.b16 %v215
      %v2070 = vunpack.c.l.b16 %v216
      %v2071 = vunpack.c.l.b16 %v217
      %v2072 = vunpack.c.l.b16 %v218
      %v2073 = vunpack.c.l.b16 %v219
      %v2074 = vunpack.c.l.b16 %v220
      %v2075 = vunpack.c.l.b16 %v221
      %v2076 = vunpack.c.l.b16 %v222
      %v2077 = vunpack.c.l.b16 %v223
      %v2078 = vunpack.c.l.b16 %v224
      %v2079 = vunpack.c.l.b16 %v225
      %v2080 = vunpack.c.l.b16 %v226
      %v2081 = vunpack.c.l.b16 %v227
      %v2082 = vunpack.c.l.b16 %v228
      %v2083 = vunpack.c.l.b16 %v229
      %v2084 = vunpack.c.l.b16 %v230
      %v2085 = vunpack.c.l.b16 %v231
      %v2086 = vunpack.c.l.b16 %v232
      %v2087 = vpack.c.b16 %v2056, %v2055
      %v2088 = vpack.c.b16 %v2058, %v2057
      %v2089 = vpack.c.b16 %v2060, %v2059
      %v2090 = vpack.c.b16 %v2062, %v2061
      %v2091 = vpack.c.b16 %v2064, %v2063
      %v2092 = vpack.c.b16 %v2066, %v2065
      %v2093 = vpack.c.b16 %v2068, %v2067
      %v2094 = vpack.c.b16 %v2070, %v2069
      %v2095 = vpack.c.b16 %v2072, %v2071
      %v2096 = vpack.c.b16 %v2074, %v2073
      %v2097 = vpack.c.b16 %v2076, %v2075
      %v2098 = vpack.c.b16 %v2078, %v2077
      %v2099 = vpack.c.b16 %v2080, %v2079
      %v2100 = vpack.c.b16 %v2082, %v2081
      %v2101 = vpack.c.b16 %v2084, %v2083
      %v2102 = vpack.c.b16 %v2086, %v2085
      %v2103 = vunpack.c.l.b16 %v265
      %v2104 = vunpack.c.l.b16 %v275
      %v2105 = vunpack.c.l.b16 %v289
      %v2106 = vunpack.c.l.b16 %v299
      %v2107 = vunpack.c.l.b16 %v313
      %v2108 = vunpack.c.l.b16 %v323
      %v2109 = vunpack.c.l.b16 %v337
      %v2110 = vunpack.c.l.b16 %v347
      %v2111 = vunpack.c.l.b16 %v361
      %v2112 = vunpack.c.l.b16 %v371
      %v2113 = vunpack.c.l.b16 %v385
      %v2114 = vunpack.c.l.b16 %v395
      %v2115 = vunpack.c.l.b16 %v409
      %v2116 = vunpack.c.l.b16 %v419
      %v2117 = vunpack.c.l.b16 %v433
      %v2118 = vunpack.c.l.b16 %v443
      %v2119 = vunpack.c.l.b16 %v457
      %v2120 = vunpack.c.l.b16 %v467
      %v2121 = vunpack.c.l.b16 %v481
      %v2122 = vunpack.c.l.b16 %v491
      %v2123 = vunpack.c.l.b16 %v505
      %v2124 = vunpack.c.l.b16 %v515
      %v2125 = vunpack.c.l.b16 %v529
      %v2126 = vunpack.c.l.b16 %v539
      %v2127 = vunpack.c.l.b16 %v553
      %v2128 = vunpack.c.l.b16 %v563
      %v2129 = vunpack.c.l.b16 %v577
      %v2130 = vunpack.c.l.b16 %v587
      %v2131 = vunpack.c.l.b16 %v601
      %v2132 = vunpack.c.l.b16 %v611
      %v2133 = vunpack.c.l.b16 %v625
      %v2134 = vunpack.c.l.b16 %v635
      %v2135 = vpack.c.b16 %v2104, %v2103
      %v2136 = vpack.c.b16 %v2106, %v2105
      %v2137 = vpack.c.b16 %v2108, %v2107
      %v2138 = vpack.c.b16 %v2110, %v2109
      %v2139 = vpack.c.b16 %v2112, %v2111
      %v2140 = vpack.c.b16 %v2114, %v2113
      %v2141 = vpack.c.b16 %v2116, %v2115
      %v2142 = vpack.c.b16 %v2118, %v2117
      %v2143 = vpack.c.b16 %v2120, %v2119
      %v2144 = vpack.c.b16 %v2122, %v2121
      %v2145 = vpack.c.b16 %v2124, %v2123
      %v2146 = vpack.c.b16 %v2126, %v2125
      %v2147 = vpack.c.b16 %v2128, %v2127
      %v2148 = vpack.c.b16 %v2130, %v2129
      %v2149 = vpack.c.b16 %v2132, %v2131
      %v2150 = vpack.c.b16 %v2134, %v2133
      %2151 = vrot.lane.b32.xlu0 %v2135, 16
      %v2152 = vpop.permute.xlu0 %2151
      %2153 = vrot.lane.b32.xlu0 %v2136, 16
      %v2154 = vpop.permute.xlu0 %2153
      %2155 = vrot.lane.b32.xlu0 %v2137, 16
      %v2156 = vpop.permute.xlu0 %2155
      %2157 = vrot.lane.b32.xlu0 %v2138, 16
      %v2158 = vpop.permute.xlu0 %2157
      %2159 = vrot.lane.b32.xlu0 %v2139, 16
      %v2160 = vpop.permute.xlu0 %2159
      %2161 = vrot.lane.b32.xlu0 %v2140, 16
      %v2162 = vpop.permute.xlu0 %2161
      %2163 = vrot.lane.b32.xlu0 %v2141, 16
      %v2164 = vpop.permute.xlu0 %2163
      %2165 = vrot.lane.b32.xlu0 %v2142, 16
      %v2166 = vpop.permute.xlu0 %2165
      %2167 = vrot.lane.b32.xlu0 %v2143, 16
      %v2168 = vpop.permute.xlu0 %2167
      %2169 = vrot.lane.b32.xlu0 %v2144, 16
      %v2170 = vpop.permute.xlu0 %2169
      %2171 = vrot.lane.b32.xlu0 %v2145, 16
      %v2172 = vpop.permute.xlu0 %2171
      %2173 = vrot.lane.b32.xlu0 %v2146, 16
      %v2174 = vpop.permute.xlu0 %2173
      %2175 = vrot.lane.b32.xlu0 %v2147, 16
      %v2176 = vpop.permute.xlu0 %2175
      %2177 = vrot.lane.b32.xlu0 %v2148, 16
      %v2178 = vpop.permute.xlu0 %2177
      %2179 = vrot.lane.b32.xlu0 %v2149, 16
      %v2180 = vpop.permute.xlu0 %2179
      %2181 = vrot.lane.b32.xlu0 %v2150, 16
      %v2182 = vpop.permute.xlu0 %2181
      %v2183 = vunpack.c.l.b16 %v706
      %v2184 = vunpack.c.l.b16 %v709
      %v2185 = vunpack.c.l.b16 %v713
      %v2186 = vunpack.c.l.b16 %v716
      %v2187 = vunpack.c.l.b16 %v720
      %v2188 = vunpack.c.l.b16 %v723
      %v2189 = vunpack.c.l.b16 %v727
      %v2190 = vunpack.c.l.b16 %v730
      %v2191 = vunpack.c.l.b16 %v734
      %v2192 = vunpack.c.l.b16 %v737
      %v2193 = vunpack.c.l.b16 %v741
      %v2194 = vunpack.c.l.b16 %v744
      %v2195 = vunpack.c.l.b16 %v748
      %v2196 = vunpack.c.l.b16 %v751
      %v2197 = vunpack.c.l.b16 %v755
      %v2198 = vunpack.c.l.b16 %v758
      %v2199 = vunpack.c.l.b16 %v762
      %v2200 = vunpack.c.l.b16 %v765
      %v2201 = vunpack.c.l.b16 %v769
      %v2202 = vunpack.c.l.b16 %v772
      %v2203 = vunpack.c.l.b16 %v776
      %v2204 = vunpack.c.l.b16 %v779
      %v2205 = vunpack.c.l.b16 %v783
      %v2206 = vunpack.c.l.b16 %v786
      %v2207 = vunpack.c.l.b16 %v790
      %v2208 = vunpack.c.l.b16 %v793
      %v2209 = vunpack.c.l.b16 %v797
      %v2210 = vunpack.c.l.b16 %v800
      %v2211 = vunpack.c.l.b16 %v804
      %v2212 = vunpack.c.l.b16 %v807
      %v2213 = vunpack.c.l.b16 %v811
      %v2214 = vunpack.c.l.b16 %v814
      %v2215 = vpack.c.b16 %v2184, %v2183
      %v2216 = vpack.c.b16 %v2186, %v2185
      %v2217 = vpack.c.b16 %v2188, %v2187
      %v2218 = vpack.c.b16 %v2190, %v2189
      %v2219 = vpack.c.b16 %v2192, %v2191
      %v2220 = vpack.c.b16 %v2194, %v2193
      %v2221 = vpack.c.b16 %v2196, %v2195
      %v2222 = vpack.c.b16 %v2198, %v2197
      %v2223 = vpack.c.b16 %v2200, %v2199
      %v2224 = vpack.c.b16 %v2202, %v2201
      %v2225 = vpack.c.b16 %v2204, %v2203
      %v2226 = vpack.c.b16 %v2206, %v2205
      %v2227 = vpack.c.b16 %v2208, %v2207
      %v2228 = vpack.c.b16 %v2210, %v2209
      %v2229 = vpack.c.b16 %v2212, %v2211
      %v2230 = vpack.c.b16 %v2214, %v2213
      %2231 = vrot.lane.b32.xlu0 %v2215, 32
      %v2232 = vpop.permute.xlu0 %2231
      %2233 = vrot.lane.b32.xlu0 %v2216, 32
      %v2234 = vpop.permute.xlu0 %2233
      %2235 = vrot.lane.b32.xlu0 %v2217, 32
      %v2236 = vpop.permute.xlu0 %2235
      %2237 = vrot.lane.b32.xlu0 %v2218, 32
      %v2238 = vpop.permute.xlu0 %2237
      %2239 = vrot.lane.b32.xlu0 %v2219, 32
      %v2240 = vpop.permute.xlu0 %2239
      %2241 = vrot.lane.b32.xlu0 %v2220, 32
      %v2242 = vpop.permute.xlu0 %2241
      %2243 = vrot.lane.b32.xlu0 %v2221, 32
      %v2244 = vpop.permute.xlu0 %2243
      %2245 = vrot.lane.b32.xlu0 %v2222, 32
      %v2246 = vpop.permute.xlu0 %2245
      %2247 = vrot.lane.b32.xlu0 %v2223, 32
      %v2248 = vpop.permute.xlu0 %2247
      %2249 = vrot.lane.b32.xlu0 %v2224, 32
      %v2250 = vpop.permute.xlu0 %2249
      %2251 = vrot.lane.b32.xlu0 %v2225, 32
      %v2252 = vpop.permute.xlu0 %2251
      %2253 = vrot.lane.b32.xlu0 %v2226, 32
      %v2254 = vpop.permute.xlu0 %2253
      %2255 = vrot.lane.b32.xlu0 %v2227, 32
      %v2256 = vpop.permute.xlu0 %2255
      %2257 = vrot.lane.b32.xlu0 %v2228, 32
      %v2258 = vpop.permute.xlu0 %2257
      %2259 = vrot.lane.b32.xlu0 %v2229, 32
      %v2260 = vpop.permute.xlu0 %2259
      %2261 = vrot.lane.b32.xlu0 %v2230, 32
      %v2262 = vpop.permute.xlu0 %2261
      %v2279 = vunpack.c.l.b16 %v819
      %v2280 = vunpack.c.l.b16 %v820
      %v2281 = vunpack.c.l.b16 %v821
      %v2282 = vunpack.c.l.b16 %v822
      %v2283 = vunpack.c.l.b16 %v823
      %v2284 = vunpack.c.l.b16 %v824
      %v2285 = vunpack.c.l.b16 %v825
      %v2286 = vunpack.c.l.b16 %v826
      %v2287 = vunpack.c.l.b16 %v827
      %v2288 = vunpack.c.l.b16 %v828
      %v2289 = vunpack.c.l.b16 %v829
      %v2290 = vunpack.c.l.b16 %v830
      %v2291 = vunpack.c.l.b16 %v831
      %v2292 = vunpack.c.l.b16 %v832
      %v2293 = vunpack.c.l.b16 %v833
      %v2294 = vunpack.c.l.b16 %v834
      %v2295 = vunpack.c.l.b16 %v835
      %v2296 = vunpack.c.l.b16 %v836
      %v2297 = vunpack.c.l.b16 %v837
      %v2298 = vunpack.c.l.b16 %v838
      %v2299 = vunpack.c.l.b16 %v839
      %v2300 = vunpack.c.l.b16 %v840
      %v2301 = vunpack.c.l.b16 %v841
      %v2302 = vunpack.c.l.b16 %v842
      %v2303 = vunpack.c.l.b16 %v843
      %v2304 = vunpack.c.l.b16 %v844
      %v2305 = vunpack.c.l.b16 %v845
      %v2306 = vunpack.c.l.b16 %v846
      %v2307 = vunpack.c.l.b16 %v847
      %v2308 = vunpack.c.l.b16 %v848
      %v2309 = vunpack.c.l.b16 %v849
      %v2310 = vunpack.c.l.b16 %v850
      %v2311 = vpack.c.b16 %v2280, %v2279
      %v2312 = vpack.c.b16 %v2282, %v2281
      %v2313 = vpack.c.b16 %v2284, %v2283
      %v2314 = vpack.c.b16 %v2286, %v2285
      %v2315 = vpack.c.b16 %v2288, %v2287
      %v2316 = vpack.c.b16 %v2290, %v2289
      %v2317 = vpack.c.b16 %v2292, %v2291
      %v2318 = vpack.c.b16 %v2294, %v2293
      %v2319 = vpack.c.b16 %v2296, %v2295
      %v2320 = vpack.c.b16 %v2298, %v2297
      %v2321 = vpack.c.b16 %v2300, %v2299
      %v2322 = vpack.c.b16 %v2302, %v2301
      %v2323 = vpack.c.b16 %v2304, %v2303
      %v2324 = vpack.c.b16 %v2306, %v2305
      %v2325 = vpack.c.b16 %v2308, %v2307
      %v2326 = vpack.c.b16 %v2310, %v2309
      %2327 = vrot.lane.b32.xlu0 %v2311, 48
      %v2328 = vpop.permute.xlu0 %2327
      %2329 = vrot.lane.b32.xlu0 %v2312, 48
      %v2330 = vpop.permute.xlu0 %2329
      %2331 = vrot.lane.b32.xlu0 %v2313, 48
      %v2332 = vpop.permute.xlu0 %2331
      %2333 = vrot.lane.b32.xlu0 %v2314, 48
      %v2334 = vpop.permute.xlu0 %2333
      %2335 = vrot.lane.b32.xlu0 %v2315, 48
      %v2336 = vpop.permute.xlu0 %2335
      %2337 = vrot.lane.b32.xlu0 %v2316, 48
      %v2338 = vpop.permute.xlu0 %2337
      %2339 = vrot.lane.b32.xlu0 %v2317, 48
      %v2340 = vpop.permute.xlu0 %2339
      %2341 = vrot.lane.b32.xlu0 %v2318, 48
      %v2342 = vpop.permute.xlu0 %2341
      %2343 = vrot.lane.b32.xlu0 %v2319, 48
      %v2344 = vpop.permute.xlu0 %2343
      %2345 = vrot.lane.b32.xlu0 %v2320, 48
      %v2346 = vpop.permute.xlu0 %2345
      %2347 = vrot.lane.b32.xlu0 %v2321, 48
      %v2348 = vpop.permute.xlu0 %2347
      %2349 = vrot.lane.b32.xlu0 %v2322, 48
      %v2350 = vpop.permute.xlu0 %2349
      %2351 = vrot.lane.b32.xlu0 %v2323, 48
      %v2352 = vpop.permute.xlu0 %2351
      %2353 = vrot.lane.b32.xlu0 %v2324, 48
      %v2354 = vpop.permute.xlu0 %2353
      %2355 = vrot.lane.b32.xlu0 %v2325, 48
      %v2356 = vpop.permute.xlu0 %2355
      %2357 = vrot.lane.b32.xlu0 %v2326, 48
      %v2358 = vpop.permute.xlu0 %2357
      %v2359 = vunpack.c.l.b16 %v880
      %v2360 = vunpack.c.l.b16 %v890
      %v2361 = vunpack.c.l.b16 %v904
      %v2362 = vunpack.c.l.b16 %v914
      %v2363 = vunpack.c.l.b16 %v928
      %v2364 = vunpack.c.l.b16 %v938
      %v2365 = vunpack.c.l.b16 %v952
      %v2366 = vunpack.c.l.b16 %v962
      %v2367 = vunpack.c.l.b16 %v976
      %v2368 = vunpack.c.l.b16 %v986
      %v2369 = vunpack.c.l.b16 %v1000
      %v2370 = vunpack.c.l.b16 %v1010
      %v2371 = vunpack.c.l.b16 %v1024
      %v2372 = vunpack.c.l.b16 %v1034
      %v2373 = vunpack.c.l.b16 %v1048
      %v2374 = vunpack.c.l.b16 %v1058
      %v2375 = vunpack.c.l.b16 %v1072
      %v2376 = vunpack.c.l.b16 %v1082
      %v2377 = vunpack.c.l.b16 %v1096
      %v2378 = vunpack.c.l.b16 %v1106
      %v2379 = vunpack.c.l.b16 %v1120
      %v2380 = vunpack.c.l.b16 %v1130
      %v2381 = vunpack.c.l.b16 %v1144
      %v2382 = vunpack.c.l.b16 %v1154
      %v2383 = vunpack.c.l.b16 %v1168
      %v2384 = vunpack.c.l.b16 %v1178
      %v2385 = vunpack.c.l.b16 %v1192
      %v2386 = vunpack.c.l.b16 %v1202
      %v2387 = vunpack.c.l.b16 %v1216
      %v2388 = vunpack.c.l.b16 %v1226
      %v2389 = vunpack.c.l.b16 %v1240
      %v2390 = vunpack.c.l.b16 %v1250
      %v2391 = vpack.c.b16 %v2360, %v2359
      %v2392 = vpack.c.b16 %v2362, %v2361
      %v2393 = vpack.c.b16 %v2364, %v2363
      %v2394 = vpack.c.b16 %v2366, %v2365
      %v2395 = vpack.c.b16 %v2368, %v2367
      %v2396 = vpack.c.b16 %v2370, %v2369
      %v2397 = vpack.c.b16 %v2372, %v2371
      %v2398 = vpack.c.b16 %v2374, %v2373
      %v2399 = vpack.c.b16 %v2376, %v2375
      %v2400 = vpack.c.b16 %v2378, %v2377
      %v2401 = vpack.c.b16 %v2380, %v2379
      %v2402 = vpack.c.b16 %v2382, %v2381
      %v2403 = vpack.c.b16 %v2384, %v2383
      %v2404 = vpack.c.b16 %v2386, %v2385
      %v2405 = vpack.c.b16 %v2388, %v2387
      %v2406 = vpack.c.b16 %v2390, %v2389
      %2407 = vrot.lane.b32.xlu0 %v2391, 64
      %v2408 = vpop.permute.xlu0 %2407
      %2409 = vrot.lane.b32.xlu0 %v2392, 64
      %v2410 = vpop.permute.xlu0 %2409
      %2411 = vrot.lane.b32.xlu0 %v2393, 64
      %v2412 = vpop.permute.xlu0 %2411
      %2413 = vrot.lane.b32.xlu0 %v2394, 64
      %v2414 = vpop.permute.xlu0 %2413
      %2415 = vrot.lane.b32.xlu0 %v2395, 64
      %v2416 = vpop.permute.xlu0 %2415
      %2417 = vrot.lane.b32.xlu0 %v2396, 64
      %v2418 = vpop.permute.xlu0 %2417
      %2419 = vrot.lane.b32.xlu0 %v2397, 64
      %v2420 = vpop.permute.xlu0 %2419
      %2421 = vrot.lane.b32.xlu0 %v2398, 64
      %v2422 = vpop.permute.xlu0 %2421
      %2423 = vrot.lane.b32.xlu0 %v2399, 64
      %v2424 = vpop.permute.xlu0 %2423
      %2425 = vrot.lane.b32.xlu0 %v2400, 64
      %v2426 = vpop.permute.xlu0 %2425
      %2427 = vrot.lane.b32.xlu0 %v2401, 64
      %v2428 = vpop.permute.xlu0 %2427
      %2429 = vrot.lane.b32.xlu0 %v2402, 64
      %v2430 = vpop.permute.xlu0 %2429
      %2431 = vrot.lane.b32.xlu0 %v2403, 64
      %v2432 = vpop.permute.xlu0 %2431
      %2433 = vrot.lane.b32.xlu0 %v2404, 64
      %v2434 = vpop.permute.xlu0 %2433
      %2435 = vrot.lane.b32.xlu0 %v2405, 64
      %v2436 = vpop.permute.xlu0 %2435
      %2437 = vrot.lane.b32.xlu0 %v2406, 64
      %v2438 = vpop.permute.xlu0 %2437
      %v2439 = vunpack.c.l.b16 %v1318
      %v2440 = vunpack.c.l.b16 %v1321
      %v2441 = vunpack.c.l.b16 %v1325
      %v2442 = vunpack.c.l.b16 %v1328
      %v2443 = vunpack.c.l.b16 %v1332
      %v2444 = vunpack.c.l.b16 %v1335
      %v2445 = vunpack.c.l.b16 %v1339
      %v2446 = vunpack.c.l.b16 %v1342
      %v2447 = vunpack.c.l.b16 %v1346
      %v2448 = vunpack.c.l.b16 %v1349
      %v2449 = vunpack.c.l.b16 %v1353
      %v2450 = vunpack.c.l.b16 %v1356
      %v2451 = vunpack.c.l.b16 %v1360
      %v2452 = vunpack.c.l.b16 %v1363
      %v2453 = vunpack.c.l.b16 %v1367
      %v2454 = vunpack.c.l.b16 %v1370
      %v2455 = vunpack.c.l.b16 %v1374
      %v2456 = vunpack.c.l.b16 %v1377
      %v2457 = vunpack.c.l.b16 %v1381
      %v2458 = vunpack.c.l.b16 %v1384
      %v2459 = vunpack.c.l.b16 %v1388
      %v2460 = vunpack.c.l.b16 %v1391
      %v2461 = vunpack.c.l.b16 %v1395
      %v2462 = vunpack.c.l.b16 %v1398
      %v2463 = vunpack.c.l.b16 %v1402
      %v2464 = vunpack.c.l.b16 %v1405
      %v2465 = vunpack.c.l.b16 %v1409
      %v2466 = vunpack.c.l.b16 %v1412
      %v2467 = vunpack.c.l.b16 %v1416
      %v2468 = vunpack.c.l.b16 %v1419
      %v2469 = vunpack.c.l.b16 %v1423
      %v2470 = vunpack.c.l.b16 %v1426
      %v2471 = vpack.c.b16 %v2440, %v2439
      %v2472 = vpack.c.b16 %v2442, %v2441
      %v2473 = vpack.c.b16 %v2444, %v2443
      %v2474 = vpack.c.b16 %v2446, %v2445
      %v2475 = vpack.c.b16 %v2448, %v2447
      %v2476 = vpack.c.b16 %v2450, %v2449
      %v2477 = vpack.c.b16 %v2452, %v2451
      %v2478 = vpack.c.b16 %v2454, %v2453
      %v2479 = vpack.c.b16 %v2456, %v2455
      %v2480 = vpack.c.b16 %v2458, %v2457
      %v2481 = vpack.c.b16 %v2460, %v2459
      %v2482 = vpack.c.b16 %v2462, %v2461
      %v2483 = vpack.c.b16 %v2464, %v2463
      %v2484 = vpack.c.b16 %v2466, %v2465
      %v2485 = vpack.c.b16 %v2468, %v2467
      %v2486 = vpack.c.b16 %v2470, %v2469
      %2487 = vrot.lane.b32.xlu0 %v2471, 80
      %v2488 = vpop.permute.xlu0 %2487
      %2489 = vrot.lane.b32.xlu0 %v2472, 80
      %v2490 = vpop.permute.xlu0 %2489
      %2491 = vrot.lane.b32.xlu0 %v2473, 80
      %v2492 = vpop.permute.xlu0 %2491
      %2493 = vrot.lane.b32.xlu0 %v2474, 80
      %v2494 = vpop.permute.xlu0 %2493
      %2495 = vrot.lane.b32.xlu0 %v2475, 80
      %v2496 = vpop.permute.xlu0 %2495
      %2497 = vrot.lane.b32.xlu0 %v2476, 80
      %v2498 = vpop.permute.xlu0 %2497
      %2499 = vrot.lane.b32.xlu0 %v2477, 80
      %v2500 = vpop.permute.xlu0 %2499
      %2501 = vrot.lane.b32.xlu0 %v2478, 80
      %v2502 = vpop.permute.xlu0 %2501
      %2503 = vrot.lane.b32.xlu0 %v2479, 80
      %v2504 = vpop.permute.xlu0 %2503
      %2505 = vrot.lane.b32.xlu0 %v2480, 80
      %v2506 = vpop.permute.xlu0 %2505
      %2507 = vrot.lane.b32.xlu0 %v2481, 80
      %v2508 = vpop.permute.xlu0 %2507
      %2509 = vrot.lane.b32.xlu0 %v2482, 80
      %v2510 = vpop.permute.xlu0 %2509
      %2511 = vrot.lane.b32.xlu0 %v2483, 80
      %v2512 = vpop.permute.xlu0 %2511
      %2513 = vrot.lane.b32.xlu0 %v2484, 80
      %v2514 = vpop.permute.xlu0 %2513
      %2515 = vrot.lane.b32.xlu0 %v2485, 80
      %v2516 = vpop.permute.xlu0 %2515
      %2517 = vrot.lane.b32.xlu0 %v2486, 80
      %v2518 = vpop.permute.xlu0 %2517
      %v2535 = vunpack.c.l.b16 %v1431
      %v2536 = vunpack.c.l.b16 %v1432
      %v2537 = vunpack.c.l.b16 %v1433
      %v2538 = vunpack.c.l.b16 %v1434
      %v2539 = vunpack.c.l.b16 %v1435
      %v2540 = vunpack.c.l.b16 %v1436
      %v2541 = vunpack.c.l.b16 %v1437
      %v2542 = vunpack.c.l.b16 %v1438
      %v2543 = vunpack.c.l.b16 %v1439
      %v2544 = vunpack.c.l.b16 %v1440
      %v2545 = vunpack.c.l.b16 %v1441
      %v2546 = vunpack.c.l.b16 %v1442
      %v2547 = vunpack.c.l.b16 %v1443
      %v2548 = vunpack.c.l.b16 %v1444
      %v2549 = vunpack.c.l.b16 %v1445
      %v2550 = vunpack.c.l.b16 %v1446
      %v2551 = vunpack.c.l.b16 %v1447
      %v2552 = vunpack.c.l.b16 %v1448
      %v2553 = vunpack.c.l.b16 %v1449
      %v2554 = vunpack.c.l.b16 %v1450
      %v2555 = vunpack.c.l.b16 %v1451
      %v2556 = vunpack.c.l.b16 %v1452
      %v2557 = vunpack.c.l.b16 %v1453
      %v2558 = vunpack.c.l.b16 %v1454
      %v2559 = vunpack.c.l.b16 %v1455
      %v2560 = vunpack.c.l.b16 %v1456
      %v2561 = vunpack.c.l.b16 %v1457
      %v2562 = vunpack.c.l.b16 %v1458
      %v2563 = vunpack.c.l.b16 %v1459
      %v2564 = vunpack.c.l.b16 %v1460
      %v2565 = vunpack.c.l.b16 %v1461
      %v2566 = vunpack.c.l.b16 %v1462
      %v2567 = vpack.c.b16 %v2536, %v2535
      %v2568 = vpack.c.b16 %v2538, %v2537
      %v2569 = vpack.c.b16 %v2540, %v2539
      %v2570 = vpack.c.b16 %v2542, %v2541
      %v2571 = vpack.c.b16 %v2544, %v2543
      %v2572 = vpack.c.b16 %v2546, %v2545
      %v2573 = vpack.c.b16 %v2548, %v2547
      %v2574 = vpack.c.b16 %v2550, %v2549
      %v2575 = vpack.c.b16 %v2552, %v2551
      %v2576 = vpack.c.b16 %v2554, %v2553
      %v2577 = vpack.c.b16 %v2556, %v2555
      %v2578 = vpack.c.b16 %v2558, %v2557
      %v2579 = vpack.c.b16 %v2560, %v2559
      %v2580 = vpack.c.b16 %v2562, %v2561
      %v2581 = vpack.c.b16 %v2564, %v2563
      %v2582 = vpack.c.b16 %v2566, %v2565
      %2583 = vrot.lane.b32.xlu0 %v2567, 96
      %v2584 = vpop.permute.xlu0 %2583
      %2585 = vrot.lane.b32.xlu0 %v2568, 96
      %v2586 = vpop.permute.xlu0 %2585
      %2587 = vrot.lane.b32.xlu0 %v2569, 96
      %v2588 = vpop.permute.xlu0 %2587
      %2589 = vrot.lane.b32.xlu0 %v2570, 96
      %v2590 = vpop.permute.xlu0 %2589
      %2591 = vrot.lane.b32.xlu0 %v2571, 96
      %v2592 = vpop.permute.xlu0 %2591
      %2593 = vrot.lane.b32.xlu0 %v2572, 96
      %v2594 = vpop.permute.xlu0 %2593
      %2595 = vrot.lane.b32.xlu0 %v2573, 96
      %v2596 = vpop.permute.xlu0 %2595
      %2597 = vrot.lane.b32.xlu0 %v2574, 96
      %v2598 = vpop.permute.xlu0 %2597
      %2599 = vrot.lane.b32.xlu0 %v2575, 96
      %v2600 = vpop.permute.xlu0 %2599
      %2601 = vrot.lane.b32.xlu0 %v2576, 96
      %v2602 = vpop.permute.xlu0 %2601
      %2603 = vrot.lane.b32.xlu0 %v2577, 96
      %v2604 = vpop.permute.xlu0 %2603
      %2605 = vrot.lane.b32.xlu0 %v2578, 96
      %v2606 = vpop.permute.xlu0 %2605
      %2607 = vrot.lane.b32.xlu0 %v2579, 96
      %v2608 = vpop.permute.xlu0 %2607
      %2609 = vrot.lane.b32.xlu0 %v2580, 96
      %v2610 = vpop.permute.xlu0 %2609
      %2611 = vrot.lane.b32.xlu0 %v2581, 96
      %v2612 = vpop.permute.xlu0 %2611
      %2613 = vrot.lane.b32.xlu0 %v2582, 96
      %v2614 = vpop.permute.xlu0 %2613
      %v2615 = vunpack.c.l.b16 %v1492
      %v2616 = vunpack.c.l.b16 %v1502
      %v2617 = vunpack.c.l.b16 %v1516
      %v2618 = vunpack.c.l.b16 %v1526
      %v2619 = vunpack.c.l.b16 %v1540
      %v2620 = vunpack.c.l.b16 %v1550
      %v2621 = vunpack.c.l.b16 %v1564
      %v2622 = vunpack.c.l.b16 %v1574
      %v2623 = vunpack.c.l.b16 %v1588
      %v2624 = vunpack.c.l.b16 %v1598
      %v2625 = vunpack.c.l.b16 %v1612
      %v2626 = vunpack.c.l.b16 %v1622
      %v2627 = vunpack.c.l.b16 %v1636
      %v2628 = vunpack.c.l.b16 %v1646
      %v2629 = vunpack.c.l.b16 %v1660
      %v2630 = vunpack.c.l.b16 %v1670
      %v2631 = vunpack.c.l.b16 %v1684
      %v2632 = vunpack.c.l.b16 %v1694
      %v2633 = vunpack.c.l.b16 %v1708
      %v2634 = vunpack.c.l.b16 %v1718
      %v2635 = vunpack.c.l.b16 %v1732
      %v2636 = vunpack.c.l.b16 %v1742
      %v2637 = vunpack.c.l.b16 %v1756
      %v2638 = vunpack.c.l.b16 %v1766
      %v2639 = vunpack.c.l.b16 %v1780
      %v2640 = vunpack.c.l.b16 %v1790
      %v2641 = vunpack.c.l.b16 %v1804
      %v2642 = vunpack.c.l.b16 %v1814
      %v2643 = vunpack.c.l.b16 %v1828
      %v2644 = vunpack.c.l.b16 %v1838
      %v2645 = vunpack.c.l.b16 %v1852
      %v2646 = vunpack.c.l.b16 %v1862
      %v2647 = vpack.c.b16 %v2616, %v2615
      %v2648 = vpack.c.b16 %v2618, %v2617
      %v2649 = vpack.c.b16 %v2620, %v2619
      %v2650 = vpack.c.b16 %v2622, %v2621
      %v2651 = vpack.c.b16 %v2624, %v2623
      %v2652 = vpack.c.b16 %v2626, %v2625
      %v2653 = vpack.c.b16 %v2628, %v2627
      %v2654 = vpack.c.b16 %v2630, %v2629
      %v2655 = vpack.c.b16 %v2632, %v2631
      %v2656 = vpack.c.b16 %v2634, %v2633
      %v2657 = vpack.c.b16 %v2636, %v2635
      %v2658 = vpack.c.b16 %v2638, %v2637
      %v2659 = vpack.c.b16 %v2640, %v2639
      %v2660 = vpack.c.b16 %v2642, %v2641
      %v2661 = vpack.c.b16 %v2644, %v2643
      %v2662 = vpack.c.b16 %v2646, %v2645
      %2663 = vrot.lane.b32.xlu0 %v2647, 112
      %v2664 = vpop.permute.xlu0 %2663
      %2665 = vrot.lane.b32.xlu0 %v2648, 112
      %v2666 = vpop.permute.xlu0 %2665
      %2667 = vrot.lane.b32.xlu0 %v2649, 112
      %v2668 = vpop.permute.xlu0 %2667
      %2669 = vrot.lane.b32.xlu0 %v2650, 112
      %v2670 = vpop.permute.xlu0 %2669
      %2671 = vrot.lane.b32.xlu0 %v2651, 112
      %v2672 = vpop.permute.xlu0 %2671
      %2673 = vrot.lane.b32.xlu0 %v2652, 112
      %v2674 = vpop.permute.xlu0 %2673
      %2675 = vrot.lane.b32.xlu0 %v2653, 112
      %v2676 = vpop.permute.xlu0 %2675
      %2677 = vrot.lane.b32.xlu0 %v2654, 112
      %v2678 = vpop.permute.xlu0 %2677
      %2679 = vrot.lane.b32.xlu0 %v2655, 112
      %v2680 = vpop.permute.xlu0 %2679
      %2681 = vrot.lane.b32.xlu0 %v2656, 112
      %v2682 = vpop.permute.xlu0 %2681
      %2683 = vrot.lane.b32.xlu0 %v2657, 112
      %v2684 = vpop.permute.xlu0 %2683
      %2685 = vrot.lane.b32.xlu0 %v2658, 112
      %v2686 = vpop.permute.xlu0 %2685
      %2687 = vrot.lane.b32.xlu0 %v2659, 112
      %v2688 = vpop.permute.xlu0 %2687
      %2689 = vrot.lane.b32.xlu0 %v2660, 112
      %v2690 = vpop.permute.xlu0 %2689
      %2691 = vrot.lane.b32.xlu0 %v2661, 112
      %v2692 = vpop.permute.xlu0 %2691
      %2693 = vrot.lane.b32.xlu0 %v2662, 112
      %v2694 = vpop.permute.xlu0 %2693
      %v2695 = vunpack.c.l.b16 %v1930
      %v2696 = vunpack.c.l.b16 %v1933
      %v2697 = vunpack.c.l.b16 %v1937
      %v2698 = vunpack.c.l.b16 %v1940
      %v2699 = vunpack.c.l.b16 %v1944
      %v2700 = vunpack.c.l.b16 %v1947
      %v2701 = vunpack.c.l.b16 %v1951
      %v2702 = vunpack.c.l.b16 %v1954
      %v2703 = vunpack.c.l.b16 %v1958
      %v2704 = vunpack.c.l.b16 %v1961
      %v2705 = vunpack.c.l.b16 %v1965
      %v2706 = vunpack.c.l.b16 %v1968
      %v2707 = vunpack.c.l.b16 %v1972
      %v2708 = vunpack.c.l.b16 %v1975
      %v2709 = vunpack.c.l.b16 %v1979
      %v2710 = vunpack.c.l.b16 %v1982
      %v2711 = vunpack.c.l.b16 %v1986
      %v2712 = vunpack.c.l.b16 %v1989
      %v2713 = vunpack.c.l.b16 %v1993
      %v2714 = vunpack.c.l.b16 %v1996
      %v2715 = vunpack.c.l.b16 %v2000
      %v2716 = vunpack.c.l.b16 %v2003
      %v2717 = vunpack.c.l.b16 %v2007
      %v2718 = vunpack.c.l.b16 %v2010
      %v2719 = vunpack.c.l.b16 %v2014
      %v2720 = vunpack.c.l.b16 %v2017
      %v2721 = vunpack.c.l.b16 %v2021
      %v2722 = vunpack.c.l.b16 %v2024
      %v2723 = vunpack.c.l.b16 %v2028
      %v2724 = vunpack.c.l.b16 %v2031
      %v2725 = vunpack.c.l.b16 %v2035
      %v2726 = vunpack.c.l.b16 %v2038
      %v2727 = vpack.c.b16 %v2696, %v2695
      %v2728 = vpack.c.b16 %v2698, %v2697
      %v2729 = vpack.c.b16 %v2700, %v2699
      %v2730 = vpack.c.b16 %v2702, %v2701
      %v2731 = vpack.c.b16 %v2704, %v2703
      %v2732 = vpack.c.b16 %v2706, %v2705
      %v2733 = vpack.c.b16 %v2708, %v2707
      %v2734 = vpack.c.b16 %v2710, %v2709
      %v2735 = vpack.c.b16 %v2712, %v2711
      %v2736 = vpack.c.b16 %v2714, %v2713
      %v2737 = vpack.c.b16 %v2716, %v2715
      %v2738 = vpack.c.b16 %v2718, %v2717
      %v2739 = vpack.c.b16 %v2720, %v2719
      %v2740 = vpack.c.b16 %v2722, %v2721
      %v2741 = vpack.c.b16 %v2724, %v2723
      %v2742 = vpack.c.b16 %v2726, %v2725
      %vm2743 = vcmask 130048
      %v2746 = vsel %vm2743, %v2087, %v2152
      %v2749 = vsel %vm2743, %v2088, %v2154
      %v2752 = vsel %vm2743, %v2089, %v2156
      %v2755 = vsel %vm2743, %v2090, %v2158
      %v2758 = vsel %vm2743, %v2091, %v2160
      %v2761 = vsel %vm2743, %v2092, %v2162
      %v2764 = vsel %vm2743, %v2093, %v2164
      %v2767 = vsel %vm2743, %v2094, %v2166
      %v2770 = vsel %vm2743, %v2095, %v2168
      %v2773 = vsel %vm2743, %v2096, %v2170
      %v2776 = vsel %vm2743, %v2097, %v2172
      %v2779 = vsel %vm2743, %v2098, %v2174
      %v2782 = vsel %vm2743, %v2099, %v2176
      %v2785 = vsel %vm2743, %v2100, %v2178
      %v2788 = vsel %vm2743, %v2101, %v2180
      %v2791 = vsel %vm2743, %v2102, %v2182
      %vm2792 = vcmask 261120
      %v2794 = vsel %vm2792, %v2746, %v2232
      %v2796 = vsel %vm2792, %v2749, %v2234
      %v2798 = vsel %vm2792, %v2752, %v2236
      %v2800 = vsel %vm2792, %v2755, %v2238
      %v2802 = vsel %vm2792, %v2758, %v2240
      %v2804 = vsel %vm2792, %v2761, %v2242
      %v2806 = vsel %vm2792, %v2764, %v2244
      %v2808 = vsel %vm2792, %v2767, %v2246
      %v2810 = vsel %vm2792, %v2770, %v2248
      %v2812 = vsel %vm2792, %v2773, %v2250
      %v2814 = vsel %vm2792, %v2776, %v2252
      %v2816 = vsel %vm2792, %v2779, %v2254
      %v2818 = vsel %vm2792, %v2782, %v2256
      %v2820 = vsel %vm2792, %v2785, %v2258
      %v2822 = vsel %vm2792, %v2788, %v2260
      %v2824 = vsel %vm2792, %v2791, %v2262
      %vm2825 = vcmask 392192
      %v2827 = vsel %vm2825, %v2794, %v2328
      %v2829 = vsel %vm2825, %v2796, %v2330
      %v2831 = vsel %vm2825, %v2798, %v2332
      %v2833 = vsel %vm2825, %v2800, %v2334
      %v2835 = vsel %vm2825, %v2802, %v2336
      %v2837 = vsel %vm2825, %v2804, %v2338
      %v2839 = vsel %vm2825, %v2806, %v2340
      %v2841 = vsel %vm2825, %v2808, %v2342
      %v2843 = vsel %vm2825, %v2810, %v2344
      %v2845 = vsel %vm2825, %v2812, %v2346
      %v2847 = vsel %vm2825, %v2814, %v2348
      %v2849 = vsel %vm2825, %v2816, %v2350
      %v2851 = vsel %vm2825, %v2818, %v2352
      %v2853 = vsel %vm2825, %v2820, %v2354
      %v2855 = vsel %vm2825, %v2822, %v2356
      %v2857 = vsel %vm2825, %v2824, %v2358
      %vm2858 = vcmask 523264
      %v2860 = vsel %vm2858, %v2827, %v2408
      %v2862 = vsel %vm2858, %v2829, %v2410
      %v2864 = vsel %vm2858, %v2831, %v2412
      %v2866 = vsel %vm2858, %v2833, %v2414
      %v2868 = vsel %vm2858, %v2835, %v2416
      %v2870 = vsel %vm2858, %v2837, %v2418
      %v2872 = vsel %vm2858, %v2839, %v2420
      %v2874 = vsel %vm2858, %v2841, %v2422
      %v2876 = vsel %vm2858, %v2843, %v2424
      %v2878 = vsel %vm2858, %v2845, %v2426
      %v2880 = vsel %vm2858, %v2847, %v2428
      %v2882 = vsel %vm2858, %v2849, %v2430
      %v2884 = vsel %vm2858, %v2851, %v2432
      %v2886 = vsel %vm2858, %v2853, %v2434
      %v2888 = vsel %vm2858, %v2855, %v2436
      %v2890 = vsel %vm2858, %v2857, %v2438
      %vm2891 = vcmask 654336
      %v2893 = vsel %vm2891, %v2860, %v2488
      %v2895 = vsel %vm2891, %v2862, %v2490
      %v2897 = vsel %vm2891, %v2864, %v2492
      %v2899 = vsel %vm2891, %v2866, %v2494
      %v2901 = vsel %vm2891, %v2868, %v2496
      %v2903 = vsel %vm2891, %v2870, %v2498
      %v2905 = vsel %vm2891, %v2872, %v2500
      %v2907 = vsel %vm2891, %v2874, %v2502
      %v2909 = vsel %vm2891, %v2876, %v2504
      %v2911 = vsel %vm2891, %v2878, %v2506
      %v2913 = vsel %vm2891, %v2880, %v2508
      %v2915 = vsel %vm2891, %v2882, %v2510
      %v2917 = vsel %vm2891, %v2884, %v2512
      %v2919 = vsel %vm2891, %v2886, %v2514
      %v2921 = vsel %vm2891, %v2888, %v2516
      %v2923 = vsel %vm2891, %v2890, %v2518
      %vm2924 = vcmask 785408
      %v2926 = vsel %vm2924, %v2893, %v2584
      %v2928 = vsel %vm2924, %v2895, %v2586
      %v2930 = vsel %vm2924, %v2897, %v2588
      %v2932 = vsel %vm2924, %v2899, %v2590
      %v2934 = vsel %vm2924, %v2901, %v2592
      %v2936 = vsel %vm2924, %v2903, %v2594
      %v2938 = vsel %vm2924, %v2905, %v2596
      %v2940 = vsel %vm2924, %v2907, %v2598
      %v2942 = vsel %vm2924, %v2909, %v2600
      %v2944 = vsel %vm2924, %v2911, %v2602
      %v2946 = vsel %vm2924, %v2913, %v2604
      %v2948 = vsel %vm2924, %v2915, %v2606
      %v2950 = vsel %vm2924, %v2917, %v2608
      %v2952 = vsel %vm2924, %v2919, %v2610
      %v2954 = vsel %vm2924, %v2921, %v2612
      %v2956 = vsel %vm2924, %v2923, %v2614
      %vm2957 = vcmask 916480
      %v2959 = vsel %vm2957, %v2926, %v2664
      %v2962 = vsel %vm2957, %v2928, %v2666
      %v2965 = vsel %vm2957, %v2930, %v2668
      %v2968 = vsel %vm2957, %v2932, %v2670
      %v2971 = vsel %vm2957, %v2934, %v2672
      %v2974 = vsel %vm2957, %v2936, %v2674
      %v2977 = vsel %vm2957, %v2938, %v2676
      %v2980 = vsel %vm2957, %v2940, %v2678
      %v2983 = vsel %vm2957, %v2942, %v2680
      %v2986 = vsel %vm2957, %v2944, %v2682
      %v2989 = vsel %vm2957, %v2946, %v2684
      %v2992 = vsel %vm2957, %v2948, %v2686
      %v2995 = vsel %vm2957, %v2950, %v2688
      %v2998 = vsel %vm2957, %v2952, %v2690
      %v3001 = vsel %vm2957, %v2954, %v2692
      %v3004 = vsel %vm2957, %v2956, %v2694
      %v3006 = vld [vmem:[%s1] sm:$0xf]
      %v3007 = vld [vmem:[%s1 + $0x4] sm:$0xf]
      %v3008 = vld [vmem:[%s1 + $0x8] sm:$0xf]
      %v3009 = vld [vmem:[%s1 + $0xc] sm:$0xf]
      %v3010 = vld [vmem:[%s1 + $0x10] sm:$0xf]
      %v3011 = vld [vmem:[%s1 + $0x14] sm:$0xf]
      %v3012 = vld [vmem:[%s1 + $0x18] sm:$0xf]
      %v3013 = vld [vmem:[%s1 + $0x1c] sm:$0xf]
      %v3014 = vld [vmem:[%s1 + $0x20] sm:$0xf]
      %v3015 = vld [vmem:[%s1 + $0x24] sm:$0xf]
      %v3016 = vld [vmem:[%s1 + $0x28] sm:$0xf]
      %v3017 = vld [vmem:[%s1 + $0x2c] sm:$0xf]
      %v3018 = vld [vmem:[%s1 + $0x30] sm:$0xf]
      %v3019 = vld [vmem:[%s1 + $0x34] sm:$0xf]
      %v3020 = vld [vmem:[%s1 + $0x38] sm:$0xf]
      %v3021 = vld [vmem:[%s1 + $0x3c] sm:$0xf]
      %v3022 = vld [vmem:[%s1 + $0x40] sm:$0xf]
      %v3023 = vld [vmem:[%s1 + $0x44] sm:$0xf]
      %v3024 = vld [vmem:[%s2] sm:$0x1]
      %v3026 = vlaneseq
      %v3027 = vshrl.u32 %v3026, 7
      %v3028 = vsub.s32 0, %v3027
      %v3029 = vrot.slane %v3024, %v3028
      %v3049 = vunpack.c.l.b16 %v3006
      %v3050 = vunpack.c.l.b16 %v3007
      %v3051 = vunpack.c.l.b16 %v3008
      %v3052 = vunpack.c.l.b16 %v3009
      %v3053 = vunpack.c.l.b16 %v3010
      %v3054 = vunpack.c.l.b16 %v3011
      %v3055 = vunpack.c.l.b16 %v3012
      %v3056 = vunpack.c.l.b16 %v3013
      %v3057 = vunpack.c.l.b16 %v3014
      %v3058 = vunpack.c.l.b16 %v3015
      %v3059 = vunpack.c.l.b16 %v3016
      %v3060 = vunpack.c.l.b16 %v3017
      %v3061 = vunpack.c.l.b16 %v3018
      %v3062 = vunpack.c.l.b16 %v3019
      %v3063 = vunpack.c.l.b16 %v3020
      %v3064 = vunpack.c.l.b16 %v3021
      %v3065 = vunpack.c.l.b16 %v3022
      %v3066 = vunpack.c.l.b16 %v3023
      %v3067 = vpack.c.b16 %v3050, %v3049
      %v3068 = vpack.c.b16 %v3052, %v3051
      %v3069 = vpack.c.b16 %v3054, %v3053
      %v3070 = vpack.c.b16 %v3056, %v3055
      %v3071 = vpack.c.b16 %v3058, %v3057
      %v3072 = vpack.c.b16 %v3060, %v3059
      %v3073 = vpack.c.b16 %v3062, %v3061
      %v3074 = vpack.c.b16 %v3064, %v3063
      %v3075 = vpack.c.b16 %v3066, %v3065
      %v3086 = vsel %vm2743, %v2727, 0
      %v3089 = vsel %vm2743, %v2728, 0
      %v3092 = vsel %vm2743, %v2729, 0
      %v3095 = vsel %vm2743, %v2730, 0
      %v3098 = vsel %vm2743, %v2731, 0
      %v3101 = vsel %vm2743, %v2732, 0
      %v3104 = vsel %vm2743, %v2733, 0
      %v3107 = vsel %vm2743, %v2734, 0
      %v3110 = vsel %vm2743, %v2735, 0
      %v3113 = vsel %vm2743, %v2736, 0
      %v3116 = vsel %vm2743, %v2737, 0
      %v3119 = vsel %vm2743, %v2738, 0
      %v3122 = vsel %vm2743, %v2739, 0
      %v3125 = vsel %vm2743, %v2740, 0
      %v3128 = vsel %vm2743, %v2741, 0
      %v3131 = vsel %vm2743, %v2742, 0
      %3133 = vmatprep.subr.bf16.mxu0 0
      %3134 = vmatpush1.bf16.msra.mxu0 %v3067
      %3135 = vmatprep.subr.bf16.mxu0 0
      %3136 = vmatpush1.bf16.msra.mxu0 %v3068
      %3137 = vmatprep.subr.bf16.mxu0 0
      %3138 = vmatpush1.bf16.msra.mxu0 %v3069
      %3139 = vmatprep.subr.bf16.mxu0 0
      %3140 = vmatpush1.bf16.msra.mxu0 %v3070
      %3141 = vmatprep.subr.bf16.mxu0 0
      %3142 = vmatpush1.bf16.msra.mxu0 %v3071
      %3143 = vmatprep.subr.bf16.mxu0 0
      %3144 = vmatpush1.bf16.msra.mxu0 %v3072
      %3145 = vmatprep.subr.bf16.mxu0 0
      %3146 = vmatpush1.bf16.msra.mxu0 %v3073
      %3147 = vmatprep.subr.bf16.mxu0 0
      %3148 = vmatpush1.bf16.msra.mxu0 %v3074
      %3149 = vmatprep.subr.bf16.mxu0 0
      %3150 = vmatpush1.bf16.msra.mxu0 %v3075
      %3151 = vmatprep.subr.bf16.mxu0 0
      %3152 = vmatpush1.bf16.msra.mxu0 0
      %3153 = vmatprep.subr.bf16.mxu0 0
      %3154 = vmatpush1.bf16.msra.mxu0 0
      %3155 = vmatprep.subr.bf16.mxu0 0
      %3156 = vmatpush1.bf16.msra.mxu0 0
      %3157 = vmatprep.subr.bf16.mxu0 0
      %3158 = vmatpush1.bf16.msra.mxu0 0
      %3159 = vmatprep.subr.bf16.mxu0 0
      %3160 = vmatpush1.bf16.msra.mxu0 0
      %3161 = vmatprep.subr.bf16.mxu0 0
      %3162 = vmatpush1.bf16.msra.mxu0 0
      %3163 = vmatprep.subr.bf16.mxu0 0
      %3164 = vmatpush1.bf16.msra.mxu0 0
      %3165 = vmatprep.mubr.bf16.mxu0 %v3086
      %3166 = vmatmul.mubr.bf16.gmra.mrb[0].mxu0 %v2959
      %v3167 = vpop.f32.mrb[0].mxu0
      %v3168 = vadd.f32 %v3029, %v3167
      %v3169 = vpop.f32.mrb[0].mxu0
      %v3170 = vpop.f32.mrb[0].mxu0
      %v3171 = vadd.f32 %v3029, %v3170
      %v3172 = vpop.f32.mrb[0].mxu0
      %3173 = vmatprep.mubr.bf16.mxu0 %v3089
      %3174 = vmatmul.mubr.bf16.gmra.mrb[0].mxu0 %v2962
      %v3175 = vpop.f32.mrb[0].mxu0
      %v3176 = vadd.f32 %v3029, %v3175
      %v3177 = vpop.f32.mrb[0].mxu0
      %v3178 = vpop.f32.mrb[0].mxu0
      %v3179 = vadd.f32 %v3029, %v3178
      %v3180 = vpop.f32.mrb[0].mxu0
      %3181 = vmatprep.mubr.bf16.mxu0 %v3092
      %3182 = vmatmul.mubr.bf16.gmra.mrb[0].mxu0 %v2965
      %v3183 = vpop.f32.mrb[0].mxu0
      %v3184 = vadd.f32 %v3029, %v3183
      %v3185 = vpop.f32.mrb[0].mxu0
      %v3186 = vpop.f32.mrb[0].mxu0
      %v3187 = vadd.f32 %v3029, %v3186
      %v3188 = vpop.f32.mrb[0].mxu0
      %3189 = vmatprep.mubr.bf16.mxu0 %v3095
      %3190 = vmatmul.mubr.bf16.gmra.mrb[0].mxu0 %v2968
      %v3191 = vpop.f32.mrb[0].mxu0
      %v3192 = vadd.f32 %v3029, %v3191
      %v3193 = vpop.f32.mrb[0].mxu0
      %v3194 = vpop.f32.mrb[0].mxu0
      %v3195 = vadd.f32 %v3029, %v3194
      %v3196 = vpop.f32.mrb[0].mxu0
      %3197 = vmatprep.mubr.bf16.mxu0 %v3098
      %3198 = vmatmul.mubr.bf16.gmra.mrb[0].mxu0 %v2971
      %v3199 = vpop.f32.mrb[0].mxu0
      %v3200 = vadd.f32 %v3029, %v3199
      %v3201 = vpop.f32.mrb[0].mxu0
      %v3202 = vpop.f32.mrb[0].mxu0
      %v3203 = vadd.f32 %v3029, %v3202
      %v3204 = vpop.f32.mrb[0].mxu0
      %3205 = vmatprep.mubr.bf16.mxu0 %v3101
      %3206 = vmatmul.mubr.bf16.gmra.mrb[0].mxu0 %v2974
      %v3207 = vpop.f32.mrb[0].mxu0
      %v3208 = vadd.f32 %v3029, %v3207
      %v3209 = vpop.f32.mrb[0].mxu0
      %v3210 = vpop.f32.mrb[0].mxu0
      %v3211 = vadd.f32 %v3029, %v3210
      %v3212 = vpop.f32.mrb[0].mxu0
      %3213 = vmatprep.mubr.bf16.mxu0 %v3104
      %3214 = vmatmul.mubr.bf16.gmra.mrb[0].mxu0 %v2977
      %v3215 = vpop.f32.mrb[0].mxu0
      %v3216 = vadd.f32 %v3029, %v3215
      %v3217 = vpop.f32.mrb[0].mxu0
      %v3218 = vpop.f32.mrb[0].mxu0
      %v3219 = vadd.f32 %v3029, %v3218
      %v3220 = vpop.f32.mrb[0].mxu0
      %3221 = vmatprep.mubr.bf16.mxu0 %v3107
      %3222 = vmatmul.mubr.bf16.gmra.mrb[0].mxu0 %v2980
      %v3223 = vpop.f32.mrb[0].mxu0
      %v3224 = vadd.f32 %v3029, %v3223
      %v3225 = vpop.f32.mrb[0].mxu0
      %v3226 = vpop.f32.mrb[0].mxu0
      %v3227 = vadd.f32 %v3029, %v3226
      %v3228 = vpop.f32.mrb[0].mxu0
      %3229 = vmatprep.mubr.bf16.mxu0 %v3110
      %3230 = vmatmul.mubr.bf16.gmra.mrb[0].mxu0 %v2983
      %v3231 = vpop.f32.mrb[0].mxu0
      %v3232 = vadd.f32 %v3029, %v3231
      %v3233 = vpop.f32.mrb[0].mxu0
      %v3234 = vpop.f32.mrb[0].mxu0
      %v3235 = vadd.f32 %v3029, %v3234
      %v3236 = vpop.f32.mrb[0].mxu0
      %3237 = vmatprep.mubr.bf16.mxu0 %v3113
      %3238 = vmatmul.mubr.bf16.gmra.mrb[0].mxu0 %v2986
      %v3239 = vpop.f32.mrb[0].mxu0
      %v3240 = vadd.f32 %v3029, %v3239
      %v3241 = vpop.f32.mrb[0].mxu0
      %v3242 = vpop.f32.mrb[0].mxu0
      %v3243 = vadd.f32 %v3029, %v3242
      %v3244 = vpop.f32.mrb[0].mxu0
      %3245 = vmatprep.mubr.bf16.mxu0 %v3116
      %3246 = vmatmul.mubr.bf16.gmra.mrb[0].mxu0 %v2989
      %v3247 = vpop.f32.mrb[0].mxu0
      %v3248 = vadd.f32 %v3029, %v3247
      %v3249 = vpop.f32.mrb[0].mxu0
      %v3250 = vpop.f32.mrb[0].mxu0
      %v3251 = vadd.f32 %v3029, %v3250
      %v3252 = vpop.f32.mrb[0].mxu0
      %3253 = vmatprep.mubr.bf16.mxu0 %v3119
      %3254 = vmatmul.mubr.bf16.gmra.mrb[0].mxu0 %v2992
      %v3255 = vpop.f32.mrb[0].mxu0
      %v3256 = vadd.f32 %v3029, %v3255
      %v3257 = vpop.f32.mrb[0].mxu0
      %v3258 = vpop.f32.mrb[0].mxu0
      %v3259 = vadd.f32 %v3029, %v3258
      %v3260 = vpop.f32.mrb[0].mxu0
      %3261 = vmatprep.mubr.bf16.mxu0 %v3122
      %3262 = vmatmul.mubr.bf16.gmra.mrb[0].mxu0 %v2995
      %v3263 = vpop.f32.mrb[0].mxu0
      %v3264 = vadd.f32 %v3029, %v3263
      %v3265 = vpop.f32.mrb[0].mxu0
      %v3266 = vpop.f32.mrb[0].mxu0
      %v3267 = vadd.f32 %v3029, %v3266
      %v3268 = vpop.f32.mrb[0].mxu0
      %3269 = vmatprep.mubr.bf16.mxu0 %v3125
      %3270 = vmatmul.mubr.bf16.gmra.mrb[0].mxu0 %v2998
      %v3271 = vpop.f32.mrb[0].mxu0
      %v3272 = vadd.f32 %v3029, %v3271
      %v3273 = vpop.f32.mrb[0].mxu0
      %v3274 = vpop.f32.mrb[0].mxu0
      %v3275 = vadd.f32 %v3029, %v3274
      %v3276 = vpop.f32.mrb[0].mxu0
      %3277 = vmatprep.mubr.bf16.mxu0 %v3128
      %3278 = vmatmul.mubr.bf16.gmra.mrb[0].mxu0 %v3001
      %v3279 = vpop.f32.mrb[0].mxu0
      %v3280 = vadd.f32 %v3029, %v3279
      %v3281 = vpop.f32.mrb[0].mxu0
      %v3282 = vpop.f32.mrb[0].mxu0
      %v3283 = vadd.f32 %v3029, %v3282
      %v3284 = vpop.f32.mrb[0].mxu0
      %3285 = vmatprep.mubr.bf16.mxu0 %v3131
      %3286 = vmatmul.mubr.bf16.gmra.mrb[0].mxu0 %v3004
      %v3287 = vpop.f32.mrb[0].mxu0
      %v3288 = vadd.f32 %v3029, %v3287
      %v3289 = vpop.f32.mrb[0].mxu0
      %v3290 = vpop.f32.mrb[0].mxu0
      %v3291 = vadd.f32 %v3029, %v3290
      %v3292 = vpop.f32.mrb[0].mxu0
      %3293 = vdwg.mxu0
      %v3294 = vpack.c.bf16 %v3171, %v3168
      %v3295 = vpack.c.bf16 %v3179, %v3176
      %v3296 = vpack.c.bf16 %v3187, %v3184
      %v3297 = vpack.c.bf16 %v3195, %v3192
      %v3298 = vpack.c.bf16 %v3203, %v3200
      %v3299 = vpack.c.bf16 %v3211, %v3208
      %v3300 = vpack.c.bf16 %v3219, %v3216
      %v3301 = vpack.c.bf16 %v3227, %v3224
      %v3302 = vpack.c.bf16 %v3235, %v3232
      %v3303 = vpack.c.bf16 %v3243, %v3240
      %v3304 = vpack.c.bf16 %v3251, %v3248
      %v3305 = vpack.c.bf16 %v3259, %v3256
      %v3306 = vpack.c.bf16 %v3267, %v3264
      %v3307 = vpack.c.bf16 %v3275, %v3272
      %v3308 = vpack.c.bf16 %v3283, %v3280
      %v3309 = vpack.c.bf16 %v3291, %v3288
      %v3326 = vunpack.c.l.b16 %v3294
      %v3327 = vunpack.c.h.b16 %v3294
      %v3328 = vunpack.c.l.b16 %v3295
      %v3329 = vunpack.c.h.b16 %v3295
      %v3330 = vunpack.c.l.b16 %v3296
      %v3331 = vunpack.c.h.b16 %v3296
      %v3332 = vunpack.c.l.b16 %v3297
      %v3333 = vunpack.c.h.b16 %v3297
      %v3334 = vunpack.c.l.b16 %v3298
      %v3335 = vunpack.c.h.b16 %v3298
      %v3336 = vunpack.c.l.b16 %v3299
      %v3337 = vunpack.c.h.b16 %v3299
      %v3338 = vunpack.c.l.b16 %v3300
      %v3339 = vunpack.c.h.b16 %v3300
      %v3340 = vunpack.c.l.b16 %v3301
      %v3341 = vunpack.c.h.b16 %v3301
      %v3342 = vunpack.c.l.b16 %v3302
      %v3343 = vunpack.c.h.b16 %v3302
      %v3344 = vunpack.c.l.b16 %v3303
      %v3345 = vunpack.c.h.b16 %v3303
      %v3346 = vunpack.c.l.b16 %v3304
      %v3347 = vunpack.c.h.b16 %v3304
      %v3348 = vunpack.c.l.b16 %v3305
      %v3349 = vunpack.c.h.b16 %v3305
      %v3350 = vunpack.c.l.b16 %v3306
      %v3351 = vunpack.c.h.b16 %v3306
      %v3352 = vunpack.c.l.b16 %v3307
      %v3353 = vunpack.c.h.b16 %v3307
      %v3354 = vunpack.c.l.b16 %v3308
      %v3355 = vunpack.c.h.b16 %v3308
      %v3356 = vunpack.c.l.b16 %v3309
      %v3357 = vunpack.c.h.b16 %v3309
      %v3358 = vpack.c.b16 %v3326, %v3326
      %v3359 = vpack.c.b16 %v3327, %v3327
      %v3360 = vpack.c.b16 %v3328, %v3328
      %v3361 = vpack.c.b16 %v3329, %v3329
      %v3362 = vpack.c.b16 %v3330, %v3330
      %v3363 = vpack.c.b16 %v3331, %v3331
      %v3364 = vpack.c.b16 %v3332, %v3332
      %v3365 = vpack.c.b16 %v3333, %v3333
      %v3366 = vpack.c.b16 %v3334, %v3334
      %v3367 = vpack.c.b16 %v3335, %v3335
      %v3368 = vpack.c.b16 %v3336, %v3336
      %v3369 = vpack.c.b16 %v3337, %v3337
      %v3370 = vpack.c.b16 %v3338, %v3338
      %v3371 = vpack.c.b16 %v3339, %v3339
      %v3372 = vpack.c.b16 %v3340, %v3340
      %v3373 = vpack.c.b16 %v3341, %v3341
      %v3374 = vpack.c.b16 %v3342, %v3342
      %v3375 = vpack.c.b16 %v3343, %v3343
      %v3376 = vpack.c.b16 %v3344, %v3344
      %v3377 = vpack.c.b16 %v3345, %v3345
      %v3378 = vpack.c.b16 %v3346, %v3346
      %v3379 = vpack.c.b16 %v3347, %v3347
      %v3380 = vpack.c.b16 %v3348, %v3348
      %v3381 = vpack.c.b16 %v3349, %v3349
      %v3382 = vpack.c.b16 %v3350, %v3350
      %v3383 = vpack.c.b16 %v3351, %v3351
      %v3384 = vpack.c.b16 %v3352, %v3352
      %v3385 = vpack.c.b16 %v3353, %v3353
      %v3386 = vpack.c.b16 %v3354, %v3354
      %v3387 = vpack.c.b16 %v3355, %v3355
      %v3388 = vpack.c.b16 %v3356, %v3356
      %v3389 = vpack.c.b16 %v3357, %v3357
      %vm3422 = vcmask 60416
      %3423 = vst.msk [vmem:[%s194] sm:$0xf] %vm3422, %v3358
      %3424 = vst.msk [vmem:[%s194 + $0x4] sm:$0xf] %vm3422, %v3359
      %3425 = vst.msk [vmem:[%s194 + $0x8] sm:$0xf] %vm3422, %v3360
      %3426 = vst.msk [vmem:[%s194 + $0xc] sm:$0xf] %vm3422, %v3361
      %3427 = vst.msk [vmem:[%s194 + $0x10] sm:$0xf] %vm3422, %v3362
      %3428 = vst.msk [vmem:[%s194 + $0x14] sm:$0xf] %vm3422, %v3363
      %3429 = vst.msk [vmem:[%s194 + $0x18] sm:$0xf] %vm3422, %v3364
      %3430 = vst.msk [vmem:[%s194 + $0x1c] sm:$0xf] %vm3422, %v3365
      %3431 = vst.msk [vmem:[%s194 + $0x20] sm:$0xf] %vm3422, %v3366
      %3432 = vst.msk [vmem:[%s194 + $0x24] sm:$0xf] %vm3422, %v3367
      %3433 = vst.msk [vmem:[%s194 + $0x28] sm:$0xf] %vm3422, %v3368
      %3434 = vst.msk [vmem:[%s194 + $0x2c] sm:$0xf] %vm3422, %v3369
      %3435 = vst.msk [vmem:[%s194 + $0x30] sm:$0xf] %vm3422, %v3370
      %3436 = vst.msk [vmem:[%s194 + $0x34] sm:$0xf] %vm3422, %v3371
      %3437 = vst.msk [vmem:[%s194 + $0x38] sm:$0xf] %vm3422, %v3372
      %3438 = vst.msk [vmem:[%s194 + $0x3c] sm:$0xf] %vm3422, %v3373
      %3439 = vst.msk [vmem:[%s194 + $0x40] sm:$0xf] %vm3422, %v3374
      %3440 = vst.msk [vmem:[%s194 + $0x44] sm:$0xf] %vm3422, %v3375
      %3441 = vst.msk [vmem:[%s194 + $0x48] sm:$0xf] %vm3422, %v3376
      %3442 = vst.msk [vmem:[%s194 + $0x4c] sm:$0xf] %vm3422, %v3377
      %3443 = vst.msk [vmem:[%s194 + $0x50] sm:$0xf] %vm3422, %v3378
      %3444 = vst.msk [vmem:[%s194 + $0x54] sm:$0xf] %vm3422, %v3379
      %3445 = vst.msk [vmem:[%s194 + $0x58] sm:$0xf] %vm3422, %v3380
      %3446 = vst.msk [vmem:[%s194 + $0x5c] sm:$0xf] %vm3422, %v3381
      %3447 = vst.msk [vmem:[%s194 + $0x60] sm:$0xf] %vm3422, %v3382
      %3448 = vst.msk [vmem:[%s194 + $0x64] sm:$0xf] %vm3422, %v3383
      %3449 = vst.msk [vmem:[%s194 + $0x68] sm:$0xf] %vm3422, %v3384
      %3450 = vst.msk [vmem:[%s194 + $0x6c] sm:$0xf] %vm3422, %v3385
      %3451 = vst.msk [vmem:[%s194 + $0x70] sm:$0xf] %vm3422, %v3386
      %3452 = vst.msk [vmem:[%s194 + $0x74] sm:$0xf] %vm3422, %v3387
      %3453 = vst.msk [vmem:[%s194 + $0x78] sm:$0xf] %vm3422, %v3388
      %3454 = vst.msk [vmem:[%s194 + $0x7c] sm:$0xf] %vm3422, %v3389
      %s3455 = smul.u32 16, %s19
      %p3456 = scmp.lt.s32.totalorder %s18, 1
      %s3457 = scalar_select %p3456, %s18, 1
      %p3458 = scmp.lt.s32.totalorder %s3455, 15
      %s3459 = scalar_select %p3458, %s3455, 15
      %s3460 = smul.addr %s3459, 2
      %s3461 = smul.addr %s3457, 32
      %s3462 = sadd.s32 %s3460, %s3461
      %s3463 = smul.addr %s3462, 4
      %s3464 = scalar_lea.vmem %s3, %s3463
      // Predicated region
      $region33: #{a_call__.3} parent=31 // pred_check
        %p3465 = pneg %p114
      $region34: #{a_call__.3} parent=31 // pred_check_branch
        %3467 = sbr.rel (%p3465) target = $region36
      $region35: #{a_call__.3} parent=31 // pred_region
        %s3468 = smul.u32 16, %s19
      $region36: #{a_call__.3} parent=31 // pred_fallthru
        _
    $region32: #{a_call__.3} parent=5 // pred_fallthru
      _
    %p3469 = scmp.le.s32.totalorder 2, %s9
    // Predicated region
    $region37: #{a_call__.3} parent=5 // pred_check
      %p3470 = pneg %p3469
    $region38: #{a_call__.3} parent=5 // pred_check_branch
      %3472 = sbr.rel (%p3470) target = $region40
    $region39: #{a_call__.3} parent=5 // pred_region
      %s3473 = ssub.s32 %s9, 2
      // Predicated region
      $region41: #{a_call__.3} parent=39 // pred_check
        %p3474 = pneg %p120
      $region42: #{a_call__.3} parent=39 // pred_check_branch
        %3476 = sbr.rel (%p3474) target = $region44
      $region43: #{a_call__.3} parent=39 // pred_region
        %s3477 = smul.u32 16, %s21
        %p3478 = scmp.lt.s32.totalorder %s20, 1
        %s3479 = scalar_select %p3478, %s20, 1
        %p3480 = scmp.lt.s32.totalorder %s3477, 15
        %s3481 = scalar_select %p3480, %s3477, 15
        %s3482 = smul.addr %s3481, 2
        %s3483 = smul.addr %s3479, 32
        %s3484 = sadd.s32 %s3482, %s3483
        %s3485 = smul.addr %s3484, 4
        %s3486 = scalar_lea.vmem %s3, %s3485
      $region44: #{a_call__.3} parent=39 // pred_fallthru
        _
    $region40: #{a_call__.3} parent=5 // pred_fallthru
      _
  $region6: #{a_call__.3} parent=0 // loop_footer
    %s13 = sadd.s32 1, %s9
  $region7: #{a_call__.3} parent=0 // loop_footer_branch
    %8 = sbr.rel target = $region3
  $region8: #{a_call__.3} parent=0 // loop_exit
    _

</llo_original>
